<compile_context>
chip_gen: v5e
topology: v5e:2x2
jax: 0.10.0
libtpu: 0.0.40
codegen_flags: <defaults>
</compile_context>

<pallas_src>
import functools

import jax
import jax.numpy as jnp
from jax import lax
from jax.experimental import pallas as pl
from jax.experimental.pallas import tpu as pltpu


# Contract the last dims of both operands: (8, H) x (tm, H) -> (8, tm)  ("NT" matmul).
_NT_DIMS = (((1,), (1,)), ((), ()))


def _mlp_tail(h1, w2_ref, b2_ref, w3_ref, b3_ref, out_ref, lane_dense):
    """Layers 2..3 given the pre-activation of layer 1.  Dropout = identity (eval)."""
    f32 = jnp.float32
    h = jnp.maximum(h1, 0.0)                                   # ReLU (dropout = id)
    h = jnp.dot(h, w2_ref[...], preferred_element_type=f32) + b2_ref[...]
    h = jnp.maximum(h, 0.0)                                    # ReLU (dropout = id)
    if lane_dense:
        # Final Linear(H -> 1) as a transposed-RHS matmul so the result lands as a
        # (1, tm) lane vector -> dense stores into the (1, N) output slab.
        # w3_ref holds the w3 row replicated to 8 sublanes (keeps MXU M-dim native).
        z = lax.dot_general(w3_ref[...], h, _NT_DIMS,
                            preferred_element_type=f32)[0:1, :] + b3_ref[...]
    else:
        z = jnp.dot(h, w3_ref[...], preferred_element_type=f32) + b3_ref[...]
    out_ref[...] = jax.nn.sigmoid(z).astype(out_ref.dtype)


def _lp_kernel_split(xi_ref, xj_ref, xin_ref, xjn_ref,
                     w1a_ref, w1b_ref, b1_ref, w2_ref, b2_ref, w3_ref, b3_ref,
                     out_ref, *, lane_dense):
    """Neighbor variant: the feature-axis concat is fused into two split-w1 dots."""
    f32 = jnp.float32
    xm = xi_ref[...].astype(f32) * xj_ref[...].astype(f32)
    xn = xin_ref[...].astype(f32) * xjn_ref[...].astype(f32)
    h1 = (jnp.dot(xm, w1a_ref[...], preferred_element_type=f32)
          + jnp.dot(xn, w1b_ref[...], preferred_element_type=f32)
          + b1_ref[...])
    _mlp_tail(h1, w2_ref, b2_ref, w3_ref, b3_ref, out_ref, lane_dense)


def _lp_kernel_plain(xi_ref, xj_ref,
                     w1_ref, b1_ref, w2_ref, b2_ref, w3_ref, b3_ref,
                     out_ref, *, lane_dense):
    """No-neighbor variant: x_i / x_j already carry the full 2*in_channels features."""
    f32 = jnp.float32
    x = xi_ref[...].astype(f32) * xj_ref[...].astype(f32)
    h1 = jnp.dot(x, w1_ref[...], preferred_element_type=f32) + b1_ref[...]
    _mlp_tail(h1, w2_ref, b2_ref, w3_ref, b3_ref, out_ref, lane_dense)


def _pick_tile(n_rows, tm):
    """Largest row tile <= tm that divides n_rows (n_rows is a multiple of 128)."""
    tm = max(128, min(tm, n_rows))
    tm = (tm // 128) * 128
    while tm > 128 and n_rows % tm != 0:
        tm -= 128
    # v7x has 2 TensorCores: keep at least 2 grid steps so the 'parallel' grid axis
    # can be sharded across them (harmless on single-core v5e/v6e).
    if n_rows // tm < 2 and tm % 256 == 0:
        tm //= 2
    return tm


def _pad_rows(a, n_pad):
    if n_pad == 0:
        return a
    return jnp.pad(a, ((0, n_pad), (0, 0)))


def link_predictor_forward(x_i, x_j, params, *,
                           x_i_neighbors=None, x_j_neighbors=None, tm=1024):
    """LinkPredictor forward (eval mode) with a Pallas TPU kernel.

    x_i, x_j:        [N, C]  (bf16 recommended: halves HBM input traffic; math is f32)
    x_*_neighbors:   optional [N, Cn]; fused into the first layer (no HBM concat)
    params: w1 [C(+Cn), H], b1 [1, H], w2 [H, H], b2 [1, H], w3 [H, O], b3 [1, O]
    Returns [N, O] float32 probabilities.  Any N is accepted; rows are zero-padded to
    a multiple of 128 internally and the padding is sliced off the output.
    `tm` is a sweep knob (1024-4096); re-budget VMEM if raised a lot on v7x.
    """
    has_nb_i = x_i_neighbors is not None and x_i_neighbors.size > 0
    has_nb_j = x_j_neighbors is not None and x_j_neighbors.size > 0
    assert has_nb_i == has_nb_j, "pass both neighbor tensors or neither"
    has_nb = has_nb_i

    N, C = x_i.shape
    assert x_j.shape == (N, C)
    w1, b1 = params["w1"], params["b1"]
    w2, b2 = params["w2"], params["b2"]
    w3, b3 = params["w3"], params["b3"]
    H = w1.shape[1]
    O = w3.shape[1]

    # Pad the row count up to a multiple of 128 (kernel tiling requirement).
    n_pad = (-N) % 128
    Np = N + n_pad
    x_i_p = _pad_rows(x_i, n_pad)
    x_j_p = _pad_rows(x_j, n_pad)

    tm = _pick_tile(Np, tm)
    grid = (Np // tm,)
    lane_dense = (O == 1)

    row = lambda d: pl.BlockSpec((tm, d), lambda i: (i, 0))
    full = lambda a: pl.BlockSpec(a.shape, lambda i: (0, 0))

    if lane_dense:
        # Lane-dense output slab: each grid step writes a dense (1, tm) lane vector.
        out_shape = jax.ShapeDtypeStruct((1, Np), jnp.float32)
        out_spec = pl.BlockSpec((1, tm), lambda i: (0, i))
        w3_in = jnp.broadcast_to(w3.reshape(1, H), (8, H))   # row vector, 8 sublanes
        b3_in = b3.reshape(1, 1)
    else:
        out_shape = jax.ShapeDtypeStruct((Np, O), jnp.float32)
        out_spec = pl.BlockSpec((tm, O), lambda i: (i, 0))
        w3_in, b3_in = w3, b3

    if has_nb:
        Cn = x_i_neighbors.shape[1]
        assert x_j_neighbors.shape == (N, Cn)
        assert w1.shape[0] == C + Cn
        x_in_p = _pad_rows(x_i_neighbors, n_pad)
        x_jn_p = _pad_rows(x_j_neighbors, n_pad)
        w1a, w1b = w1[:C], w1[C:]          # tiny weight slices, done once per call
        kernel = functools.partial(_lp_kernel_split, lane_dense=lane_dense)
        operands = (x_i_p, x_j_p, x_in_p, x_jn_p,
                    w1a, w1b, b1, w2, b2, w3_in, b3_in)
        in_specs = [row(C), row(C), row(Cn), row(Cn),
                    full(w1a), full(w1b), full(b1), full(w2), full(b2),
                    full(w3_in), full(b3_in)]
    else:
        assert w1.shape[0] == C
        kernel = functools.partial(_lp_kernel_plain, lane_dense=lane_dense)
        operands = (x_i_p, x_j_p, w1, b1, w2, b2, w3_in, b3_in)
        in_specs = [row(C), row(C),
                    full(w1), full(b1), full(w2), full(b2),
                    full(w3_in), full(b3_in)]

    out = pl.pallas_call(
        kernel,
        out_shape=out_shape,
        grid_spec=pltpu.PrefetchScalarGridSpec(
            num_scalar_prefetch=0,
            grid=grid,
            in_specs=in_specs,
            out_specs=out_spec,
        ),
        compiler_params=pltpu.CompilerParams(
            dimension_semantics=("parallel",),
            # Explicit budget (fits v7x's smaller VMEM): double-buffered bf16 row
            # tiles + f32 (tm, H) intermediates are well under 32 MiB at tm <= 2048.
            vmem_limit_bytes=32 * 1024 * 1024,
        ),
    )(*operands)

    if lane_dense:
        out = out[:, :N].reshape(N, 1)
    else:
        out = out[:N]
    return out


def init_params(key, in_channels, hidden_channels, out_channels):
    """torch.nn.Linear-style init (uniform +-1/sqrt(fan_in)); weights stored [in, out]."""
    def linear(key, fan_in, fan_out):
        kw, kb = jax.random.split(key)
        bound = 1.0 / jnp.sqrt(fan_in)
        w = jax.random.uniform(kw, (fan_in, fan_out), jnp.float32, -bound, bound)
        b = jax.random.uniform(kb, (1, fan_out), jnp.float32, -bound, bound)
        return w, b

    k1, k2, k3 = jax.random.split(key, 3)
    w1, b1 = linear(k1, 2 * in_channels, hidden_channels)
    w2, b2 = linear(k2, hidden_channels, hidden_channels)
    w3, b3 = linear(k3, hidden_channels, out_channels)
    return dict(w1=w1, b1=b1, w2=w2, b2=b2, w3=w3, b3=b3)


def reference_forward(x_i, x_j, params, x_i_neighbors=None, x_j_neighbors=None):
    """Pure-JAX reference (f32 math) for correctness checking."""
    f32 = jnp.float32
    x_i = x_i.astype(f32)
    x_j = x_j.astype(f32)
    if x_i_neighbors is not None and x_i_neighbors.size > 0:
        x_i = jnp.concatenate([x_i, x_i_neighbors.astype(f32)], axis=1)
    if x_j_neighbors is not None and x_j_neighbors.size > 0:
        x_j = jnp.concatenate([x_j, x_j_neighbors.astype(f32)], axis=1)
    x = x_i * x_j
    x = jnp.maximum(x @ params["w1"] + params["b1"], 0.0)
    x = jnp.maximum(x @ params["w2"] + params["b2"], 0.0)
    return jax.nn.sigmoid(x @ params["w3"] + params["b3"])


if __name__ == "__main__":
    # Small, module-consistent shapes:
    #   in_channels=16, hidden_channels=128, out_channels=1, num_layers=3, dropout=0.0
    in_channels = 16
    hidden_channels = 128
    out_channels = 1
    N = 4096          # candidate links -> 4 grid steps at tm=1024

    key = jax.random.PRNGKey(0)
    kp, ki, kj, kin, kjn = jax.random.split(key, 5)

    params = init_params(kp, in_channels, hidden_channels, out_channels)

    # bf16 inputs in HBM (half the input traffic); all kernel math stays in f32.
    x_i = jax.random.normal(ki, (N, in_channels), jnp.bfloat16)
    x_j = jax.random.normal(kj, (N, in_channels), jnp.bfloat16)
    x_i_nb = jax.random.normal(kin, (N, in_channels), jnp.bfloat16)
    x_j_nb = jax.random.normal(kjn, (N, in_channels), jnp.bfloat16)

    out = link_predictor_forward(x_i, x_j, params,
                                 x_i_neighbors=x_i_nb, x_j_neighbors=x_j_nb,
                                 tm=1024)
    out = jax.block_until_ready(out)

    ref = reference_forward(x_i, x_j, params,
                            x_i_neighbors=x_i_nb, x_j_neighbors=x_j_nb)
    assert out.shape == (N, out_channels)
    # Tolerance covers MXU default-precision reassociation (split-K first layer and
    # transposed final dot reorder the accumulations vs. the XLA reference).
    assert jnp.allclose(out, ref, atol=2e-3, rtol=2e-3), "mismatch vs. reference"

    print("KERNEL_OK")
</pallas_src>

<mosaic_0001>
module attributes {stable_mosaic.version = 11 : i64} {
  func.func @_lp_kernel_split(%arg0: i32, %arg1: memref<1024x16xbf16, #tpu.memory_space<vmem>>, %arg2: memref<1024x16xbf16, #tpu.memory_space<vmem>>, %arg3: memref<1024x16xbf16, #tpu.memory_space<vmem>>, %arg4: memref<1024x16xbf16, #tpu.memory_space<vmem>>, %arg5: memref<16x128xf32, #tpu.memory_space<vmem>>, %arg6: memref<16x128xf32, #tpu.memory_space<vmem>>, %arg7: memref<1x128xf32, #tpu.memory_space<vmem>>, %arg8: memref<128x128xf32, #tpu.memory_space<vmem>>, %arg9: memref<1x128xf32, #tpu.memory_space<vmem>>, %arg10: memref<8x128xf32, #tpu.memory_space<vmem>>, %arg11: memref<1x1xf32, #tpu.memory_space<vmem>>, %arg12: memref<1x1024xf32, #tpu.memory_space<vmem>>) attributes {dimension_semantics = [#tpu.dimension_semantics<parallel>], iteration_bounds = array<i64: 4>, scalar_prefetch = 0 : i64, scratch_operands = 0 : i64, tpu.core_type = #tpu.core_type<tc>, window_params = [{transform_indices = @transform_0, window_bounds = array<i64: 1024, 16>}, {transform_indices = @transform_1, window_bounds = array<i64: 1024, 16>}, {transform_indices = @transform_2, window_bounds = array<i64: 1024, 16>}, {transform_indices = @transform_3, window_bounds = array<i64: 1024, 16>}, {pipeline_mode = #tpu.pipeline_mode<synchronous>, transform_indices = @transform_4, window_bounds = array<i64: 16, 128>}, {pipeline_mode = #tpu.pipeline_mode<synchronous>, transform_indices = @transform_5, window_bounds = array<i64: 16, 128>}, {pipeline_mode = #tpu.pipeline_mode<synchronous>, transform_indices = @transform_6, window_bounds = array<i64: 1, 128>}, {pipeline_mode = #tpu.pipeline_mode<synchronous>, transform_indices = @transform_7, window_bounds = array<i64: 128, 128>}, {pipeline_mode = #tpu.pipeline_mode<synchronous>, transform_indices = @transform_8, window_bounds = array<i64: 1, 128>}, {pipeline_mode = #tpu.pipeline_mode<synchronous>, transform_indices = @transform_9, window_bounds = array<i64: 8, 128>}, {pipeline_mode = #tpu.pipeline_mode<synchronous>, transform_indices = @transform_10, window_bounds = array<i64: 1, 1>}, {transform_indices = @transform_11, window_bounds = array<i64: 1, 1024>}]} {
    %c0 = arith.constant 0 : index
    %c0_0 = arith.constant 0 : index
    %0 = vector.load %arg1[%c0, %c0_0] : memref<1024x16xbf16, #tpu.memory_space<vmem>>, vector<1024x16xbf16>
    %1 = arith.extf %0 : vector<1024x16xbf16> to vector<1024x16xf32>
    %c0_1 = arith.constant 0 : index
    %c0_2 = arith.constant 0 : index
    %2 = vector.load %arg2[%c0_1, %c0_2] : memref<1024x16xbf16, #tpu.memory_space<vmem>>, vector<1024x16xbf16>
    %3 = arith.extf %2 : vector<1024x16xbf16> to vector<1024x16xf32>
    %4 = arith.mulf %1, %3 : vector<1024x16xf32>
    %c0_3 = arith.constant 0 : index
    %c0_4 = arith.constant 0 : index
    %5 = vector.load %arg3[%c0_3, %c0_4] : memref<1024x16xbf16, #tpu.memory_space<vmem>>, vector<1024x16xbf16>
    %6 = arith.extf %5 : vector<1024x16xbf16> to vector<1024x16xf32>
    %c0_5 = arith.constant 0 : index
    %c0_6 = arith.constant 0 : index
    %7 = vector.load %arg4[%c0_5, %c0_6] : memref<1024x16xbf16, #tpu.memory_space<vmem>>, vector<1024x16xbf16>
    %8 = arith.extf %7 : vector<1024x16xbf16> to vector<1024x16xf32>
    %9 = arith.mulf %6, %8 : vector<1024x16xf32>
    %c0_7 = arith.constant 0 : index
    %c0_8 = arith.constant 0 : index
    %10 = vector.load %arg5[%c0_7, %c0_8] : memref<16x128xf32, #tpu.memory_space<vmem>>, vector<16x128xf32>
    %cst = arith.constant dense<0.000000e+00> : vector<1024x128xf32>
    %11 = tpu.matmul %4, %10, %cst {dimension_numbers = #tpu.dot_dimension_numbers<[1], [0], [0], [1], [0, 0, 1, 1], [], []>} : vector<1024x16xf32>, vector<16x128xf32>, vector<1024x128xf32> -> vector<1024x128xf32>
    %c0_9 = arith.constant 0 : index
    %c0_10 = arith.constant 0 : index
    %12 = vector.load %arg6[%c0_9, %c0_10] : memref<16x128xf32, #tpu.memory_space<vmem>>, vector<16x128xf32>
    %cst_11 = arith.constant dense<0.000000e+00> : vector<1024x128xf32>
    %13 = tpu.matmul %9, %12, %cst_11 {dimension_numbers = #tpu.dot_dimension_numbers<[1], [0], [0], [1], [0, 0, 1, 1], [], []>} : vector<1024x16xf32>, vector<16x128xf32>, vector<1024x128xf32> -> vector<1024x128xf32>
    %14 = arith.addf %11, %13 : vector<1024x128xf32>
    %c0_12 = arith.constant 0 : index
    %c0_13 = arith.constant 0 : index
    %15 = vector.load %arg7[%c0_12, %c0_13] : memref<1x128xf32, #tpu.memory_space<vmem>>, vector<1x128xf32>
    %16 = vector.broadcast %15 : vector<1x128xf32> to vector<1024x128xf32>
    %17 = arith.addf %14, %16 : vector<1024x128xf32>
    %cst_14 = arith.constant 0.000000e+00 : f32
    %18 = vector.broadcast %cst_14 : f32 to vector<1024x128xf32>
    %19 = arith.maximumf %17, %18 : vector<1024x128xf32>
    %c0_15 = arith.constant 0 : index
    %c0_16 = arith.constant 0 : index
    %20 = vector.load %arg8[%c0_15, %c0_16] : memref<128x128xf32, #tpu.memory_space<vmem>>, vector<128x128xf32>
    %cst_17 = arith.constant dense<0.000000e+00> : vector<1024x128xf32>
    %21 = tpu.matmul %19, %20, %cst_17 {dimension_numbers = #tpu.dot_dimension_numbers<[1], [0], [0], [1], [0, 0, 1, 1], [], []>} : vector<1024x128xf32>, vector<128x128xf32>, vector<1024x128xf32> -> vector<1024x128xf32>
    %c0_18 = arith.constant 0 : index
    %c0_19 = arith.constant 0 : index
    %22 = vector.load %arg9[%c0_18, %c0_19] : memref<1x128xf32, #tpu.memory_space<vmem>>, vector<1x128xf32>
    %23 = vector.broadcast %22 : vector<1x128xf32> to vector<1024x128xf32>
    %24 = arith.addf %21, %23 : vector<1024x128xf32>
    %cst_20 = arith.constant 0.000000e+00 : f32
    %25 = vector.broadcast %cst_20 : f32 to vector<1024x128xf32>
    %26 = arith.maximumf %24, %25 : vector<1024x128xf32>
    %c0_21 = arith.constant 0 : index
    %c0_22 = arith.constant 0 : index
    %27 = vector.load %arg10[%c0_21, %c0_22] : memref<8x128xf32, #tpu.memory_space<vmem>>, vector<8x128xf32>
    %cst_23 = arith.constant dense<0.000000e+00> : vector<8x1024xf32>
    %28 = tpu.matmul %27, %26, %cst_23 {dimension_numbers = #tpu.dot_dimension_numbers<[1], [1], [0], [0], [0, 0, 1, 0], [], []>} : vector<8x128xf32>, vector<1024x128xf32>, vector<8x1024xf32> -> vector<8x1024xf32>
    %29 = vector.extract_strided_slice %28 {offsets = [0, 0], sizes = [1, 1024], strides = [1, 1]} : vector<8x1024xf32> to vector<1x1024xf32>
    %c0_24 = arith.constant 0 : index
    %c0_25 = arith.constant 0 : index
    %30 = vector.load %arg11[%c0_24, %c0_25] : memref<1x1xf32, #tpu.memory_space<vmem>>, vector<1x1xf32>
    %31 = vector.broadcast %30 : vector<1x1xf32> to vector<1x1024xf32>
    %32 = arith.addf %29, %31 : vector<1x1024xf32>
    %33 = arith.negf %32 : vector<1x1024xf32>
    %34 = math.exp %33 : vector<1x1024xf32>
    %cst_26 = arith.constant 1.000000e+00 : f32
    %35 = vector.broadcast %cst_26 : f32 to vector<1x1024xf32>
    %36 = arith.addf %35, %34 : vector<1x1024xf32>
    %37 = arith.divf %35, %36 : vector<1x1024xf32>
    %c0_27 = arith.constant 0 : index
    %c0_28 = arith.constant 0 : index
    %38 = vector.load %arg12[%c0_27, %c0_28] : memref<1x1024xf32, #tpu.memory_space<vmem>>, vector<1x1024xf32>
    tpu.vector_store %arg12[%c0_27, %c0_28], %37 {strides = array<i32>} : memref<1x1024xf32, #tpu.memory_space<vmem>>, vector<1x1024xf32>,
    return
  }
  func.func @transform_0(%arg0: i32) -> (i32, i32) {
    %c0_i32 = arith.constant 0 : i32
    %c0_i32_0 = arith.constant 0 : i32
    return %arg0, %c0_i32 : i32, i32
  }
  func.func @transform_1(%arg0: i32) -> (i32, i32) {
    %c0_i32 = arith.constant 0 : i32
    %c0_i32_0 = arith.constant 0 : i32
    return %arg0, %c0_i32 : i32, i32
  }
  func.func @transform_2(%arg0: i32) -> (i32, i32) {
    %c0_i32 = arith.constant 0 : i32
    %c0_i32_0 = arith.constant 0 : i32
    return %arg0, %c0_i32 : i32, i32
  }
  func.func @transform_3(%arg0: i32) -> (i32, i32) {
    %c0_i32 = arith.constant 0 : i32
    %c0_i32_0 = arith.constant 0 : i32
    return %arg0, %c0_i32 : i32, i32
  }
  func.func @transform_4(%arg0: i32) -> (i32, i32) {
    %c0_i32 = arith.constant 0 : i32
    %c0_i32_0 = arith.constant 0 : i32
    %c0_i32_1 = arith.constant 0 : i32
    return %c0_i32, %c0_i32_0 : i32, i32
  }
  func.func @transform_5(%arg0: i32) -> (i32, i32) {
    %c0_i32 = arith.constant 0 : i32
    %c0_i32_0 = arith.constant 0 : i32
    %c0_i32_1 = arith.constant 0 : i32
    return %c0_i32, %c0_i32_0 : i32, i32
  }
  func.func @transform_6(%arg0: i32) -> (i32, i32) {
    %c0_i32 = arith.constant 0 : i32
    %c0_i32_0 = arith.constant 0 : i32
    %c0_i32_1 = arith.constant 0 : i32
    return %c0_i32, %c0_i32_0 : i32, i32
  }
  func.func @transform_7(%arg0: i32) -> (i32, i32) {
    %c0_i32 = arith.constant 0 : i32
    %c0_i32_0 = arith.constant 0 : i32
    %c0_i32_1 = arith.constant 0 : i32
    return %c0_i32, %c0_i32_0 : i32, i32
  }
  func.func @transform_8(%arg0: i32) -> (i32, i32) {
    %c0_i32 = arith.constant 0 : i32
    %c0_i32_0 = arith.constant 0 : i32
    %c0_i32_1 = arith.constant 0 : i32
    return %c0_i32, %c0_i32_0 : i32, i32
  }
  func.func @transform_9(%arg0: i32) -> (i32, i32) {
    %c0_i32 = arith.constant 0 : i32
    %c0_i32_0 = arith.constant 0 : i32
    %c0_i32_1 = arith.constant 0 : i32
    return %c0_i32, %c0_i32_0 : i32, i32
  }
  func.func @transform_10(%arg0: i32) -> (i32, i32) {
    %c0_i32 = arith.constant 0 : i32
    %c0_i32_0 = arith.constant 0 : i32
    %c0_i32_1 = arith.constant 0 : i32
    return %c0_i32, %c0_i32_0 : i32, i32
  }
  func.func @transform_11(%arg0: i32) -> (i32, i32) {
    %c0_i32 = arith.constant 0 : i32
    %c0_i32_0 = arith.constant 0 : i32
    return %c0_i32, %arg0 : i32, i32
  }
}

</mosaic_0001>

<llo_original>
// kernel: tpu_custom_call.1
$region0: #{tpu_custom_call.1}
  #allocation0 [shape = 'u32[]', space=smem, size = 0x4, offset = 0x4, fixed_abs, tag = 'smem constant byte address 0x4 - core index']
  #allocation1 [shape = 'u32[72,128]{1,0:T(1,128)}', space=vmem, size = 0x9000, scoped, tag = 'internal scratch']
  #allocation2 [shape = 'f32[1,1]{1,0:T(1,128)S(1)}', space=vmem, size = 0x200, scoped, tag = 'scoped memory for tpu_custom_call.1']
  %s0 = inlined_call_operand.vmem [shape: bf16[4096,16], index: 0, kind: input, shape index: {}]
  %s1 = inlined_call_operand.vmem [shape: bf16[4096,16], index: 1, kind: input, shape index: {}]
  %s2 = inlined_call_operand.vmem [shape: bf16[4096,16], index: 2, kind: input, shape index: {}]
  %s3 = inlined_call_operand.vmem [shape: bf16[4096,16], index: 3, kind: input, shape index: {}]
  %s4 = inlined_call_operand.vmem [shape: f32[16,128], index: 4, kind: input, shape index: {}]
  %s5 = inlined_call_operand.vmem [shape: f32[16,128], index: 5, kind: input, shape index: {}]
  %s6 = inlined_call_operand.vmem [shape: f32[1,128], index: 6, kind: input, shape index: {}]
  %s7 = inlined_call_operand.vmem [shape: f32[128,128], index: 7, kind: input, shape index: {}]
  %s8 = inlined_call_operand.vmem [shape: f32[1,128], index: 8, kind: input, shape index: {}]
  %s9 = inlined_call_operand.vmem [shape: f32[8,128], index: 9, kind: input, shape index: {}]
  %s10 = inlined_call_operand.<no memory space> [shape: f32[1,1], index: 10, kind: input, shape index: {}]
  %s11 = inlined_call_operand.hbm [shape: f32[1,4096], index: 11, kind: output, shape index: {}]
  %s12 = sld [smem:[#allocation0]]
  $region77: #{tpu_custom_call.1} parent=0
    _
  %s14 = ssub.s32 1, %s12
  %s15 = scalar_select 0, %s14, %s12
  %v16 = vstv %s10
  %17 = vst [vmem:[#allocation2] sm:$0x1] %v16
  $region1: #{tpu_custom_call.1} parent=0
    #allocation3 [shape = 'u8[8192]{0}', space=vmem, size = 0x2000, scoped, tag = 'output window, operand 0']
    #allocation4 [shape = 's32[2]{0}', space=sflag, size = 0x8, scoped, tag = 'scoped memory for tpu_custom_call.1']
    %18 = vsyncpa [#allocation4], 0
    %s19 = scalar_lea.sflag [#allocation4], 1
    %20 = vsyncpa %s19, 0
    loop: start=0, step=1, limit=6
    $region2: #{tpu_custom_call.1} parent=1 // loop_pre_header
      _
    $region3: #{tpu_custom_call.1} parent=1 // loop_header
      %s22 = sphi 0, %s26
      %p23 = scmp.ge.s32.totalorder %s22, 6
      %s32 = sphi 0, %s34
      %s35 = sphi 0, %s32
      %s36 = sphi 0, %s35
      %s52 = sphi 0, %s36
      %s58 = sphi 0, %s60
      %s61 = sphi 0, %s58
      %s62 = sphi 0, %s61
      %s78 = sphi 0, %s62
      %s84 = sphi 0, %s86
      %s87 = sphi 0, %s84
      %s88 = sphi 0, %s87
      %s104 = sphi 0, %s88
      %s110 = sphi 0, %s112
      %s113 = sphi 0, %s110
      %s114 = sphi 0, %s113
      %s130 = sphi 0, %s114
      %s134 = sphi 0, %s134
      %s136 = sphi 0, %s134
      %s137 = sphi 0, %s136
      %s151 = sphi 0, %s137
      %s155 = sphi 0, %s155
      %s157 = sphi 0, %s155
      %s158 = sphi 0, %s157
      %s172 = sphi 0, %s158
      %s176 = sphi 0, %s176
      %s178 = sphi 0, %s176
      %s179 = sphi 0, %s178
      %s193 = sphi 0, %s179
      %s197 = sphi 0, %s197
      %s199 = sphi 0, %s197
      %s200 = sphi 0, %s199
      %s214 = sphi 0, %s200
      %s218 = sphi 0, %s218
      %s220 = sphi 0, %s218
      %s221 = sphi 0, %s220
      %s235 = sphi 0, %s221
      %s239 = sphi 0, %s239
      %s241 = sphi 0, %s239
      %s242 = sphi 0, %s241
      %s256 = sphi 0, %s242
      %s260 = sphi 0, %s260
      %s262 = sphi 0, %s260
      %s263 = sphi 0, %s262
      %s277 = sphi 0, %s263
      %s283 = sphi 0, %s285
      %s286 = sphi 0, %s283
      %s287 = sphi 0, %s286
      %s303 = sphi 0, %s287
    $region4: #{tpu_custom_call.1} parent=1 // loop_header_branch
      %25 = sbr.rel (%p23) target = $region8
    $region5: #{tpu_custom_call.1} parent=1 // loop_body
      %s27 = ssub.s32 %s22, 1
      %s28 = ssub.s32 %s22, 2
      %s29 = sadd.s32 %s22, 1
      %s30 = ssub.s32 %s22, %s29
      %p31 = scmp.eq.s32.totalorder %s30, 0
      %s33 = sadd.s32 %s32, 1
      %s34 = scalar_select %p31, %s32, %s33
      %p37 = pneg %p31
      %p38 = scmp.eq.s32.totalorder %s22, 3
      %p39 = por %p37, %p38
      %p40 = scmp.ne.s32.totalorder %s32, %s35
      %p41 = scmp.eq.s32.totalorder %s22, 0
      %p42 = por %p40, %p41
      %p43 = scmp.ne.s32.totalorder %s32, %s35
      %p44 = scmp.eq.s32.totalorder %s27, 3
      %p45 = por %p43, %p44
      %p46 = scmp.ne.s32.totalorder %s35, %s36
      %p47 = scmp.eq.s32.totalorder %s27, 0
      %p48 = por %p46, %p47
      %p49 = scmp.ne.s32.totalorder %s35, %s36
      %p50 = scmp.eq.s32.totalorder %s28, 3
      %p51 = por %p49, %p50
      %p53 = scmp.ne.s32.totalorder %s36, %s52
      %p54 = scmp.eq.s32.totalorder %s28, 0
      %p55 = por %p53, %p54
      %s56 = ssub.s32 %s22, %s29
      %p57 = scmp.eq.s32.totalorder %s56, 0
      %s59 = sadd.s32 %s58, 1
      %s60 = scalar_select %p57, %s58, %s59
      %p63 = pneg %p57
      %p64 = scmp.eq.s32.totalorder %s22, 3
      %p65 = por %p63, %p64
      %p66 = scmp.ne.s32.totalorder %s58, %s61
      %p67 = scmp.eq.s32.totalorder %s22, 0
      %p68 = por %p66, %p67
      %p69 = scmp.ne.s32.totalorder %s58, %s61
      %p70 = scmp.eq.s32.totalorder %s27, 3
      %p71 = por %p69, %p70
      %p72 = scmp.ne.s32.totalorder %s61, %s62
      %p73 = scmp.eq.s32.totalorder %s27, 0
      %p74 = por %p72, %p73
      %p75 = scmp.ne.s32.totalorder %s61, %s62
      %p76 = scmp.eq.s32.totalorder %s28, 3
      %p77 = por %p75, %p76
      %p79 = scmp.ne.s32.totalorder %s62, %s78
      %p80 = scmp.eq.s32.totalorder %s28, 0
      %p81 = por %p79, %p80
      %s82 = ssub.s32 %s22, %s29
      %p83 = scmp.eq.s32.totalorder %s82, 0
      %s85 = sadd.s32 %s84, 1
      %s86 = scalar_select %p83, %s84, %s85
      %p89 = pneg %p83
      %p90 = scmp.eq.s32.totalorder %s22, 3
      %p91 = por %p89, %p90
      %p92 = scmp.ne.s32.totalorder %s84, %s87
      %p93 = scmp.eq.s32.totalorder %s22, 0
      %p94 = por %p92, %p93
      %p95 = scmp.ne.s32.totalorder %s84, %s87
      %p96 = scmp.eq.s32.totalorder %s27, 3
      %p97 = por %p95, %p96
      %p98 = scmp.ne.s32.totalorder %s87, %s88
      %p99 = scmp.eq.s32.totalorder %s27, 0
      %p100 = por %p98, %p99
      %p101 = scmp.ne.s32.totalorder %s87, %s88
      %p102 = scmp.eq.s32.totalorder %s28, 3
      %p103 = por %p101, %p102
      %p105 = scmp.ne.s32.totalorder %s88, %s104
      %p106 = scmp.eq.s32.totalorder %s28, 0
      %p107 = por %p105, %p106
      %s108 = ssub.s32 %s22, %s29
      %p109 = scmp.eq.s32.totalorder %s108, 0
      %s111 = sadd.s32 %s110, 1
      %s112 = scalar_select %p109, %s110, %s111
      %p115 = pneg %p109
      %p116 = scmp.eq.s32.totalorder %s22, 3
      %p117 = por %p115, %p116
      %p118 = scmp.ne.s32.totalorder %s110, %s113
      %p119 = scmp.eq.s32.totalorder %s22, 0
      %p120 = por %p118, %p119
      %p121 = scmp.ne.s32.totalorder %s110, %s113
      %p122 = scmp.eq.s32.totalorder %s27, 3
      %p123 = por %p121, %p122
      %p124 = scmp.ne.s32.totalorder %s113, %s114
      %p125 = scmp.eq.s32.totalorder %s27, 0
      %p126 = por %p124, %p125
      %p127 = scmp.ne.s32.totalorder %s113, %s114
      %p128 = scmp.eq.s32.totalorder %s28, 3
      %p129 = por %p127, %p128
      %p131 = scmp.ne.s32.totalorder %s114, %s130
      %p132 = scmp.eq.s32.totalorder %s28, 0
      %p133 = por %p131, %p132
      %s135 = sadd.s32 %s134, 1
      %p138 = scmp.eq.s32.totalorder %s22, 3
      %p139 = scmp.ne.s32.totalorder %s134, %s136
      %p140 = scmp.eq.s32.totalorder %s22, 0
      %p141 = por %p139, %p140
      %p142 = scmp.ne.s32.totalorder %s134, %s136
      %p143 = scmp.eq.s32.totalorder %s27, 3
      %p144 = por %p142, %p143
      %p145 = scmp.ne.s32.totalorder %s136, %s137
      %p146 = scmp.eq.s32.totalorder %s27, 0
      %p147 = por %p145, %p146
      %p148 = scmp.ne.s32.totalorder %s136, %s137
      %p149 = scmp.eq.s32.totalorder %s28, 3
      %p150 = por %p148, %p149
      %p152 = scmp.ne.s32.totalorder %s137, %s151
      %p153 = scmp.eq.s32.totalorder %s28, 0
      %p154 = por %p152, %p153
      %s156 = sadd.s32 %s155, 1
      %p159 = scmp.eq.s32.totalorder %s22, 3
      %p160 = scmp.ne.s32.totalorder %s155, %s157
      %p161 = scmp.eq.s32.totalorder %s22, 0
      %p162 = por %p160, %p161
      %p163 = scmp.ne.s32.totalorder %s155, %s157
      %p164 = scmp.eq.s32.totalorder %s27, 3
      %p165 = por %p163, %p164
      %p166 = scmp.ne.s32.totalorder %s157, %s158
      %p167 = scmp.eq.s32.totalorder %s27, 0
      %p168 = por %p166, %p167
      %p169 = scmp.ne.s32.totalorder %s157, %s158
      %p170 = scmp.eq.s32.totalorder %s28, 3
      %p171 = por %p169, %p170
      %p173 = scmp.ne.s32.totalorder %s158, %s172
      %p174 = scmp.eq.s32.totalorder %s28, 0
      %p175 = por %p173, %p174
      %s177 = sadd.s32 %s176, 1
      %p180 = scmp.eq.s32.totalorder %s22, 3
      %p181 = scmp.ne.s32.totalorder %s176, %s178
      %p182 = scmp.eq.s32.totalorder %s22, 0
      %p183 = por %p181, %p182
      %p184 = scmp.ne.s32.totalorder %s176, %s178
      %p185 = scmp.eq.s32.totalorder %s27, 3
      %p186 = por %p184, %p185
      %p187 = scmp.ne.s32.totalorder %s178, %s179
      %p188 = scmp.eq.s32.totalorder %s27, 0
      %p189 = por %p187, %p188
      %p190 = scmp.ne.s32.totalorder %s178, %s179
      %p191 = scmp.eq.s32.totalorder %s28, 3
      %p192 = por %p190, %p191
      %p194 = scmp.ne.s32.totalorder %s179, %s193
      %p195 = scmp.eq.s32.totalorder %s28, 0
      %p196 = por %p194, %p195
      %s198 = sadd.s32 %s197, 1
      %p201 = scmp.eq.s32.totalorder %s22, 3
      %p202 = scmp.ne.s32.totalorder %s197, %s199
      %p203 = scmp.eq.s32.totalorder %s22, 0
      %p204 = por %p202, %p203
      %p205 = scmp.ne.s32.totalorder %s197, %s199
      %p206 = scmp.eq.s32.totalorder %s27, 3
      %p207 = por %p205, %p206
      %p208 = scmp.ne.s32.totalorder %s199, %s200
      %p209 = scmp.eq.s32.totalorder %s27, 0
      %p210 = por %p208, %p209
      %p211 = scmp.ne.s32.totalorder %s199, %s200
      %p212 = scmp.eq.s32.totalorder %s28, 3
      %p213 = por %p211, %p212
      %p215 = scmp.ne.s32.totalorder %s200, %s214
      %p216 = scmp.eq.s32.totalorder %s28, 0
      %p217 = por %p215, %p216
      %s219 = sadd.s32 %s218, 1
      %p222 = scmp.eq.s32.totalorder %s22, 3
      %p223 = scmp.ne.s32.totalorder %s218, %s220
      %p224 = scmp.eq.s32.totalorder %s22, 0
      %p225 = por %p223, %p224
      %p226 = scmp.ne.s32.totalorder %s218, %s220
      %p227 = scmp.eq.s32.totalorder %s27, 3
      %p228 = por %p226, %p227
      %p229 = scmp.ne.s32.totalorder %s220, %s221
      %p230 = scmp.eq.s32.totalorder %s27, 0
      %p231 = por %p229, %p230
      %p232 = scmp.ne.s32.totalorder %s220, %s221
      %p233 = scmp.eq.s32.totalorder %s28, 3
      %p234 = por %p232, %p233
      %p236 = scmp.ne.s32.totalorder %s221, %s235
      %p237 = scmp.eq.s32.totalorder %s28, 0
      %p238 = por %p236, %p237
      %s240 = sadd.s32 %s239, 1
      %p243 = scmp.eq.s32.totalorder %s22, 3
      %p244 = scmp.ne.s32.totalorder %s239, %s241
      %p245 = scmp.eq.s32.totalorder %s22, 0
      %p246 = por %p244, %p245
      %p247 = scmp.ne.s32.totalorder %s239, %s241
      %p248 = scmp.eq.s32.totalorder %s27, 3
      %p249 = por %p247, %p248
      %p250 = scmp.ne.s32.totalorder %s241, %s242
      %p251 = scmp.eq.s32.totalorder %s27, 0
      %p252 = por %p250, %p251
      %p253 = scmp.ne.s32.totalorder %s241, %s242
      %p254 = scmp.eq.s32.totalorder %s28, 3
      %p255 = por %p253, %p254
      %p257 = scmp.ne.s32.totalorder %s242, %s256
      %p258 = scmp.eq.s32.totalorder %s28, 0
      %p259 = por %p257, %p258
      %s261 = sadd.s32 %s260, 1
      %p264 = scmp.eq.s32.totalorder %s22, 3
      %p265 = scmp.ne.s32.totalorder %s260, %s262
      %p266 = scmp.eq.s32.totalorder %s22, 0
      %p267 = por %p265, %p266
      %p268 = scmp.ne.s32.totalorder %s260, %s262
      %p269 = scmp.eq.s32.totalorder %s27, 3
      %p270 = por %p268, %p269
      %p271 = scmp.ne.s32.totalorder %s262, %s263
      %p272 = scmp.eq.s32.totalorder %s27, 0
      %p273 = por %p271, %p272
      %p274 = scmp.ne.s32.totalorder %s262, %s263
      %p275 = scmp.eq.s32.totalorder %s28, 3
      %p276 = por %p274, %p275
      %p278 = scmp.ne.s32.totalorder %s263, %s277
      %p279 = scmp.eq.s32.totalorder %s28, 0
      %p280 = por %p278, %p279
      %s281 = ssub.s32 %s22, %s29
      %p282 = scmp.eq.s32.totalorder %s281, 0
      %s284 = sadd.s32 %s283, 1
      %s285 = scalar_select %p282, %s283, %s284
      %p288 = pneg %p282
      %p289 = scmp.eq.s32.totalorder %s22, 3
      %p290 = por %p288, %p289
      %p291 = scmp.ne.s32.totalorder %s283, %s286
      %p292 = scmp.eq.s32.totalorder %s22, 0
      %p293 = por %p291, %p292
      %p294 = scmp.ne.s32.totalorder %s283, %s286
      %p295 = scmp.eq.s32.totalorder %s27, 3
      %p296 = por %p294, %p295
      %p297 = scmp.ne.s32.totalorder %s286, %s287
      %p298 = scmp.eq.s32.totalorder %s27, 0
      %p299 = por %p297, %p298
      %p300 = scmp.ne.s32.totalorder %s286, %s287
      %p301 = scmp.eq.s32.totalorder %s28, 3
      %p302 = por %p300, %p301
      %p304 = scmp.ne.s32.totalorder %s287, %s303
      %p305 = scmp.eq.s32.totalorder %s28, 0
      %p306 = por %p304, %p305
      %p307 = scmp.le.s32.totalorder 1, %s22
      %p308 = scmp.lt.s32.totalorder %s22, 5
      %p309 = pnand %p307, %p308
      %p310 = pneg %p309
      // Predicated region
      $region9: #{tpu_custom_call.1} parent=5 // pred_check
        _
      $region10: #{tpu_custom_call.1} parent=5 // pred_check_branch
        %312 = sbr.rel (%p309) target = $region12
      $region11: #{tpu_custom_call.1} parent=5 // pred_region
        %s313 = ssub.s32 %s22, 1
        // Predicated region
        $region13: #{tpu_custom_call.1} parent=11 // pred_check
          %p314 = pneg %p147
        $region14: #{tpu_custom_call.1} parent=11 // pred_check_branch
          %316 = sbr.rel (%p314) target = $region16
        $region15: #{tpu_custom_call.1} parent=11 // pred_region
          _
        $region16: #{tpu_custom_call.1} parent=11 // pred_fallthru
          _
        // Predicated region
        $region17: #{tpu_custom_call.1} parent=11 // pred_check
          %p317 = pneg %p168
        $region18: #{tpu_custom_call.1} parent=11 // pred_check_branch
          %319 = sbr.rel (%p317) target = $region20
        $region19: #{tpu_custom_call.1} parent=11 // pred_region
          _
        $region20: #{tpu_custom_call.1} parent=11 // pred_fallthru
          _
        // Predicated region
        $region21: #{tpu_custom_call.1} parent=11 // pred_check
          %p320 = pneg %p189
        $region22: #{tpu_custom_call.1} parent=11 // pred_check_branch
          %322 = sbr.rel (%p320) target = $region24
        $region23: #{tpu_custom_call.1} parent=11 // pred_region
          _
        $region24: #{tpu_custom_call.1} parent=11 // pred_fallthru
          _
        // Predicated region
        $region25: #{tpu_custom_call.1} parent=11 // pred_check
          %p323 = pneg %p210
        $region26: #{tpu_custom_call.1} parent=11 // pred_check_branch
          %325 = sbr.rel (%p323) target = $region28
        $region27: #{tpu_custom_call.1} parent=11 // pred_region
          _
        $region28: #{tpu_custom_call.1} parent=11 // pred_fallthru
          _
        // Predicated region
        $region29: #{tpu_custom_call.1} parent=11 // pred_check
          %p326 = pneg %p231
        $region30: #{tpu_custom_call.1} parent=11 // pred_check_branch
          %328 = sbr.rel (%p326) target = $region32
        $region31: #{tpu_custom_call.1} parent=11 // pred_region
          _
        $region32: #{tpu_custom_call.1} parent=11 // pred_fallthru
          _
        // Predicated region
        $region33: #{tpu_custom_call.1} parent=11 // pred_check
          %p329 = pneg %p252
        $region34: #{tpu_custom_call.1} parent=11 // pred_check_branch
          %331 = sbr.rel (%p329) target = $region36
        $region35: #{tpu_custom_call.1} parent=11 // pred_region
          _
        $region36: #{tpu_custom_call.1} parent=11 // pred_fallthru
          _
        // Predicated region
        $region37: #{tpu_custom_call.1} parent=11 // pred_check
          %p332 = pneg %p273
        $region38: #{tpu_custom_call.1} parent=11 // pred_check_branch
          %334 = sbr.rel (%p332) target = $region40
        $region39: #{tpu_custom_call.1} parent=11 // pred_region
          _
        $region40: #{tpu_custom_call.1} parent=11 // pred_fallthru
          _
      $region12: #{tpu_custom_call.1} parent=5 // pred_fallthru
        _
      %p335 = scmp.lt.s32.totalorder %s22, 4
      // Predicated region
      $region41: #{tpu_custom_call.1} parent=5 // pred_check
        %p336 = pneg %p335
      $region42: #{tpu_custom_call.1} parent=5 // pred_check_branch
        %338 = sbr.rel (%p336) target = $region44
      $region43: #{tpu_custom_call.1} parent=5 // pred_region
        // Predicated region
        $region45: #{tpu_custom_call.1} parent=43 // pred_check
          %p339 = pneg %p42
        $region46: #{tpu_custom_call.1} parent=43 // pred_check_branch
          %341 = sbr.rel (%p339) target = $region48
        $region47: #{tpu_custom_call.1} parent=43 // pred_region
          %s342 = smul.u32 128, %s22
          %p343 = scmp.lt.s32.totalorder %s342, 511
          %s344 = scalar_select %p343, %s342, 511
          %s345 = smul.addr %s344, 4
          %s346 = scalar_lea.vmem %s0, %s345
          %s347 = smul.u32 128, %s22
        $region48: #{tpu_custom_call.1} parent=43 // pred_fallthru
          _
        // Predicated region
        $region49: #{tpu_custom_call.1} parent=43 // pred_check
          %p348 = pneg %p68
        $region50: #{tpu_custom_call.1} parent=43 // pred_check_branch
          %350 = sbr.rel (%p348) target = $region52
        $region51: #{tpu_custom_call.1} parent=43 // pred_region
          %s351 = smul.u32 128, %s22
          %p352 = scmp.lt.s32.totalorder %s351, 511
          %s353 = scalar_select %p352, %s351, 511
          %s354 = smul.addr %s353, 4
          %s355 = scalar_lea.vmem %s1, %s354
          %s356 = smul.u32 128, %s22
        $region52: #{tpu_custom_call.1} parent=43 // pred_fallthru
          _
        // Predicated region
        $region53: #{tpu_custom_call.1} parent=43 // pred_check
          %p357 = pneg %p94
        $region54: #{tpu_custom_call.1} parent=43 // pred_check_branch
          %359 = sbr.rel (%p357) target = $region56
        $region55: #{tpu_custom_call.1} parent=43 // pred_region
          %s360 = smul.u32 128, %s22
          %p361 = scmp.lt.s32.totalorder %s360, 511
          %s362 = scalar_select %p361, %s360, 511
          %s363 = smul.addr %s362, 4
          %s364 = scalar_lea.vmem %s2, %s363
          %s365 = smul.u32 128, %s22
        $region56: #{tpu_custom_call.1} parent=43 // pred_fallthru
          _
        // Predicated region
        $region57: #{tpu_custom_call.1} parent=43 // pred_check
          %p366 = pneg %p120
        $region58: #{tpu_custom_call.1} parent=43 // pred_check_branch
          %368 = sbr.rel (%p366) target = $region60
        $region59: #{tpu_custom_call.1} parent=43 // pred_region
          %s369 = smul.u32 128, %s22
          %p370 = scmp.lt.s32.totalorder %s369, 511
          %s371 = scalar_select %p370, %s369, 511
          %s372 = smul.addr %s371, 4
          %s373 = scalar_lea.vmem %s3, %s372
          %s374 = smul.u32 128, %s22
        $region60: #{tpu_custom_call.1} parent=43 // pred_fallthru
          _
      $region44: #{tpu_custom_call.1} parent=5 // pred_fallthru
        _
      %p375 = scmp.le.s32.totalorder 1, %s22
      %p376 = scmp.lt.s32.totalorder %s22, 5
      %p377 = pnand %p375, %p376
      %p378 = pneg %p377
      // Predicated region
      $region61: #{tpu_custom_call.1} parent=5 // pred_check
        _
      $region62: #{tpu_custom_call.1} parent=5 // pred_check_branch
        %380 = sbr.rel (%p377) target = $region64
      $region63: #{tpu_custom_call.1} parent=5 // pred_region
        %s381 = ssub.s32 %s22, 1
        %s382 = smul.u32 128, %s27
        %p383 = scmp.lt.s32.totalorder %s382, 511
        %s384 = scalar_select %p383, %s382, 511
        %s385 = smul.addr %s384, 4
        %s386 = scalar_lea.vmem %s0, %s385
        %p387 = pneg %p48
        %p388 = pneg %p45
        %s389 = smul.u32 128, %s27
        %p390 = scmp.lt.s32.totalorder %s389, 511
        %s391 = scalar_select %p390, %s389, 511
        %s392 = smul.addr %s391, 4
        %s393 = scalar_lea.vmem %s1, %s392
        %p394 = pneg %p74
        %p395 = pneg %p71
        %s396 = smul.u32 128, %s27
        %p397 = scmp.lt.s32.totalorder %s396, 511
        %s398 = scalar_select %p397, %s396, 511
        %s399 = smul.addr %s398, 4
        %s400 = scalar_lea.vmem %s2, %s399
        %p401 = pneg %p100
        %p402 = pneg %p97
        %s403 = smul.u32 128, %s27
        %p404 = scmp.lt.s32.totalorder %s403, 511
        %s405 = scalar_select %p404, %s403, 511
        %s406 = smul.addr %s405, 4
        %s407 = scalar_lea.vmem %s3, %s406
        %p408 = pneg %p126
        %p409 = pneg %p123
        %p410 = pneg %p147
        %p411 = pneg %p144
        %p412 = pneg %p168
        %p413 = pneg %p165
        %p414 = pneg %p189
        %p415 = pneg %p186
        %p416 = pneg %p210
        %p417 = pneg %p207
        %p418 = pneg %p231
        %p419 = pneg %p228
        %p420 = pneg %p252
        %p421 = pneg %p249
        %p422 = pneg %p273
        %p423 = pneg %p270
        %p424 = pneg %p299
        %p425 = pneg %p296
        %s426 = sand.u32 %s286, 1
        %s427 = scalar_lea.sflag [#allocation4], %s426
        %s428 = sand.u32 %s286, 1
        %s429 = smul.addr %s428, 8
        %s430 = scalar_lea.vmem [#allocation3], %s429
        %s431 = smul.u32 128, %s27
        %p432 = scmp.lt.s32.totalorder %s431, 511
        %s433 = scalar_select %p432, %s431, 511
        %s434 = smul.addr %s433, 4
        %s435 = scalar_lea.vmem %s0, %s434
        %s436 = smul.u32 128, %s27
        %s437 = smul.u32 128, %s27
        %p438 = scmp.lt.s32.totalorder %s437, 511
        %s439 = scalar_select %p438, %s437, 511
        %s440 = smul.addr %s439, 4
        %s441 = scalar_lea.vmem %s1, %s440
        %s442 = smul.u32 128, %s27
        %s443 = smul.u32 128, %s27
        %p444 = scmp.lt.s32.totalorder %s443, 511
        %s445 = scalar_select %p444, %s443, 511
        %s446 = smul.addr %s445, 4
        %s447 = scalar_lea.vmem %s2, %s446
        %s448 = smul.u32 128, %s27
        %s449 = smul.u32 128, %s27
        %p450 = scmp.lt.s32.totalorder %s449, 511
        %s451 = scalar_select %p450, %s449, 511
        %s452 = smul.addr %s451, 4
        %s453 = scalar_lea.vmem %s3, %s452
        %s454 = smul.u32 128, %s27
        %s455 = smul.u32 8, %s27
        %v456 = vld [vmem:[%s435] sm:$0xf]
        %v457 = vld [vmem:[%s435 + $0x4] sm:$0xf]
        %v458 = vld [vmem:[%s435 + $0x8] sm:$0xf]
        %v459 = vld [vmem:[%s435 + $0xc] sm:$0xf]
        %v460 = vld [vmem:[%s435 + $0x10] sm:$0xf]
        %v461 = vld [vmem:[%s435 + $0x14] sm:$0xf]
        %v462 = vld [vmem:[%s435 + $0x18] sm:$0xf]
        %v463 = vld [vmem:[%s435 + $0x1c] sm:$0xf]
        %v464 = vld [vmem:[%s435 + $0x20] sm:$0xf]
        %v465 = vld [vmem:[%s435 + $0x24] sm:$0xf]
        %v466 = vld [vmem:[%s435 + $0x28] sm:$0xf]
        %v467 = vld [vmem:[%s435 + $0x2c] sm:$0xf]
        %v468 = vld [vmem:[%s435 + $0x30] sm:$0xf]
        %v469 = vld [vmem:[%s435 + $0x34] sm:$0xf]
        %v470 = vld [vmem:[%s435 + $0x38] sm:$0xf]
        %v471 = vld [vmem:[%s435 + $0x3c] sm:$0xf]
        %v472 = vld [vmem:[%s435 + $0x40] sm:$0xf]
        %v473 = vld [vmem:[%s435 + $0x44] sm:$0xf]
        %v474 = vld [vmem:[%s435 + $0x48] sm:$0xf]
        %v475 = vld [vmem:[%s435 + $0x4c] sm:$0xf]
        %v476 = vld [vmem:[%s435 + $0x50] sm:$0xf]
        %v477 = vld [vmem:[%s435 + $0x54] sm:$0xf]
        %v478 = vld [vmem:[%s435 + $0x58] sm:$0xf]
        %v479 = vld [vmem:[%s435 + $0x5c] sm:$0xf]
        %v480 = vld [vmem:[%s435 + $0x60] sm:$0xf]
        %v481 = vld [vmem:[%s435 + $0x64] sm:$0xf]
        %v482 = vld [vmem:[%s435 + $0x68] sm:$0xf]
        %v483 = vld [vmem:[%s435 + $0x6c] sm:$0xf]
        %v484 = vld [vmem:[%s435 + $0x70] sm:$0xf]
        %v485 = vld [vmem:[%s435 + $0x74] sm:$0xf]
        %v486 = vld [vmem:[%s435 + $0x78] sm:$0xf]
        %v487 = vld [vmem:[%s435 + $0x7c] sm:$0xf]
        %v488 = vld [vmem:[%s435 + $0x80] sm:$0xf]
        %v489 = vld [vmem:[%s435 + $0x84] sm:$0xf]
        %v490 = vld [vmem:[%s435 + $0x88] sm:$0xf]
        %v491 = vld [vmem:[%s435 + $0x8c] sm:$0xf]
        %v492 = vld [vmem:[%s435 + $0x90] sm:$0xf]
        %v493 = vld [vmem:[%s435 + $0x94] sm:$0xf]
        %v494 = vld [vmem:[%s435 + $0x98] sm:$0xf]
        %v495 = vld [vmem:[%s435 + $0x9c] sm:$0xf]
        %v496 = vld [vmem:[%s435 + $0xa0] sm:$0xf]
        %v497 = vld [vmem:[%s435 + $0xa4] sm:$0xf]
        %v498 = vld [vmem:[%s435 + $0xa8] sm:$0xf]
        %v499 = vld [vmem:[%s435 + $0xac] sm:$0xf]
        %v500 = vld [vmem:[%s435 + $0xb0] sm:$0xf]
        %v501 = vld [vmem:[%s435 + $0xb4] sm:$0xf]
        %v502 = vld [vmem:[%s435 + $0xb8] sm:$0xf]
        %v503 = vld [vmem:[%s435 + $0xbc] sm:$0xf]
        %v504 = vld [vmem:[%s435 + $0xc0] sm:$0xf]
        %v505 = vld [vmem:[%s435 + $0xc4] sm:$0xf]
        %v506 = vld [vmem:[%s435 + $0xc8] sm:$0xf]
        %v507 = vld [vmem:[%s435 + $0xcc] sm:$0xf]
        %v508 = vld [vmem:[%s435 + $0xd0] sm:$0xf]
        %v509 = vld [vmem:[%s435 + $0xd4] sm:$0xf]
        %v510 = vld [vmem:[%s435 + $0xd8] sm:$0xf]
        %v511 = vld [vmem:[%s435 + $0xdc] sm:$0xf]
        %v512 = vld [vmem:[%s435 + $0xe0] sm:$0xf]
        %v513 = vld [vmem:[%s435 + $0xe4] sm:$0xf]
        %v514 = vld [vmem:[%s435 + $0xe8] sm:$0xf]
        %v515 = vld [vmem:[%s435 + $0xec] sm:$0xf]
        %v516 = vld [vmem:[%s435 + $0xf0] sm:$0xf]
        %v517 = vld [vmem:[%s435 + $0xf4] sm:$0xf]
        %v518 = vld [vmem:[%s435 + $0xf8] sm:$0xf]
        %v519 = vld [vmem:[%s435 + $0xfc] sm:$0xf]
        %v520 = vld [vmem:[%s435 + $0x100] sm:$0xf]
        %v521 = vld [vmem:[%s435 + $0x104] sm:$0xf]
        %v522 = vld [vmem:[%s435 + $0x108] sm:$0xf]
        %v523 = vld [vmem:[%s435 + $0x10c] sm:$0xf]
        %v524 = vld [vmem:[%s435 + $0x110] sm:$0xf]
        %v525 = vld [vmem:[%s435 + $0x114] sm:$0xf]
        %v526 = vld [vmem:[%s435 + $0x118] sm:$0xf]
        %v527 = vld [vmem:[%s435 + $0x11c] sm:$0xf]
        %v528 = vld [vmem:[%s435 + $0x120] sm:$0xf]
        %v529 = vld [vmem:[%s435 + $0x124] sm:$0xf]
        %v530 = vld [vmem:[%s435 + $0x128] sm:$0xf]
        %v531 = vld [vmem:[%s435 + $0x12c] sm:$0xf]
        %v532 = vld [vmem:[%s435 + $0x130] sm:$0xf]
        %v533 = vld [vmem:[%s435 + $0x134] sm:$0xf]
        %v534 = vld [vmem:[%s435 + $0x138] sm:$0xf]
        %v535 = vld [vmem:[%s435 + $0x13c] sm:$0xf]
        %v536 = vld [vmem:[%s435 + $0x140] sm:$0xf]
        %v537 = vld [vmem:[%s435 + $0x144] sm:$0xf]
        %v538 = vld [vmem:[%s435 + $0x148] sm:$0xf]
        %v539 = vld [vmem:[%s435 + $0x14c] sm:$0xf]
        %v540 = vld [vmem:[%s435 + $0x150] sm:$0xf]
        %v541 = vld [vmem:[%s435 + $0x154] sm:$0xf]
        %v542 = vld [vmem:[%s435 + $0x158] sm:$0xf]
        %v543 = vld [vmem:[%s435 + $0x15c] sm:$0xf]
        %v544 = vld [vmem:[%s435 + $0x160] sm:$0xf]
        %v545 = vld [vmem:[%s435 + $0x164] sm:$0xf]
        %v546 = vld [vmem:[%s435 + $0x168] sm:$0xf]
        %v547 = vld [vmem:[%s435 + $0x16c] sm:$0xf]
        %v548 = vld [vmem:[%s435 + $0x170] sm:$0xf]
        %v549 = vld [vmem:[%s435 + $0x174] sm:$0xf]
        %v550 = vld [vmem:[%s435 + $0x178] sm:$0xf]
        %v551 = vld [vmem:[%s435 + $0x17c] sm:$0xf]
        %v552 = vld [vmem:[%s435 + $0x180] sm:$0xf]
        %v553 = vld [vmem:[%s435 + $0x184] sm:$0xf]
        %v554 = vld [vmem:[%s435 + $0x188] sm:$0xf]
        %v555 = vld [vmem:[%s435 + $0x18c] sm:$0xf]
        %v556 = vld [vmem:[%s435 + $0x190] sm:$0xf]
        %v557 = vld [vmem:[%s435 + $0x194] sm:$0xf]
        %v558 = vld [vmem:[%s435 + $0x198] sm:$0xf]
        %v559 = vld [vmem:[%s435 + $0x19c] sm:$0xf]
        %v560 = vld [vmem:[%s435 + $0x1a0] sm:$0xf]
        %v561 = vld [vmem:[%s435 + $0x1a4] sm:$0xf]
        %v562 = vld [vmem:[%s435 + $0x1a8] sm:$0xf]
        %v563 = vld [vmem:[%s435 + $0x1ac] sm:$0xf]
        %v564 = vld [vmem:[%s435 + $0x1b0] sm:$0xf]
        %v565 = vld [vmem:[%s435 + $0x1b4] sm:$0xf]
        %v566 = vld [vmem:[%s435 + $0x1b8] sm:$0xf]
        %v567 = vld [vmem:[%s435 + $0x1bc] sm:$0xf]
        %v568 = vld [vmem:[%s435 + $0x1c0] sm:$0xf]
        %v569 = vld [vmem:[%s435 + $0x1c4] sm:$0xf]
        %v570 = vld [vmem:[%s435 + $0x1c8] sm:$0xf]
        %v571 = vld [vmem:[%s435 + $0x1cc] sm:$0xf]
        %v572 = vld [vmem:[%s435 + $0x1d0] sm:$0xf]
        %v573 = vld [vmem:[%s435 + $0x1d4] sm:$0xf]
        %v574 = vld [vmem:[%s435 + $0x1d8] sm:$0xf]
        %v575 = vld [vmem:[%s435 + $0x1dc] sm:$0xf]
        %v576 = vld [vmem:[%s435 + $0x1e0] sm:$0xf]
        %v577 = vld [vmem:[%s435 + $0x1e4] sm:$0xf]
        %v578 = vld [vmem:[%s435 + $0x1e8] sm:$0xf]
        %v579 = vld [vmem:[%s435 + $0x1ec] sm:$0xf]
        %v580 = vld [vmem:[%s435 + $0x1f0] sm:$0xf]
        %v581 = vld [vmem:[%s435 + $0x1f4] sm:$0xf]
        %v582 = vld [vmem:[%s435 + $0x1f8] sm:$0xf]
        %v583 = vld [vmem:[%s435 + $0x1fc] sm:$0xf]
        %v584 = vunpack.c.l.bf16 %v456
        %v585 = vunpack.c.l.bf16 %v457
        %v586 = vunpack.c.l.bf16 %v458
        %v587 = vunpack.c.l.bf16 %v459
        %v588 = vunpack.c.l.bf16 %v460
        %v589 = vunpack.c.l.bf16 %v461
        %v590 = vunpack.c.l.bf16 %v462
        %v591 = vunpack.c.l.bf16 %v463
        %v592 = vunpack.c.l.bf16 %v464
        %v593 = vunpack.c.l.bf16 %v465
        %v594 = vunpack.c.l.bf16 %v466
        %v595 = vunpack.c.l.bf16 %v467
        %v596 = vunpack.c.l.bf16 %v468
        %v597 = vunpack.c.l.bf16 %v469
        %v598 = vunpack.c.l.bf16 %v470
        %v599 = vunpack.c.l.bf16 %v471
        %v600 = vunpack.c.l.bf16 %v472
        %v601 = vunpack.c.l.bf16 %v473
        %v602 = vunpack.c.l.bf16 %v474
        %v603 = vunpack.c.l.bf16 %v475
        %v604 = vunpack.c.l.bf16 %v476
        %v605 = vunpack.c.l.bf16 %v477
        %v606 = vunpack.c.l.bf16 %v478
        %v607 = vunpack.c.l.bf16 %v479
        %v608 = vunpack.c.l.bf16 %v480
        %v609 = vunpack.c.l.bf16 %v481
        %v610 = vunpack.c.l.bf16 %v482
        %v611 = vunpack.c.l.bf16 %v483
        %v612 = vunpack.c.l.bf16 %v484
        %v613 = vunpack.c.l.bf16 %v485
        %v614 = vunpack.c.l.bf16 %v486
        %v615 = vunpack.c.l.bf16 %v487
        %v616 = vunpack.c.l.bf16 %v488
        %v617 = vunpack.c.l.bf16 %v489
        %v618 = vunpack.c.l.bf16 %v490
        %v619 = vunpack.c.l.bf16 %v491
        %v620 = vunpack.c.l.bf16 %v492
        %v621 = vunpack.c.l.bf16 %v493
        %v622 = vunpack.c.l.bf16 %v494
        %v623 = vunpack.c.l.bf16 %v495
        %v624 = vunpack.c.l.bf16 %v496
        %v625 = vunpack.c.l.bf16 %v497
        %v626 = vunpack.c.l.bf16 %v498
        %v627 = vunpack.c.l.bf16 %v499
        %v628 = vunpack.c.l.bf16 %v500
        %v629 = vunpack.c.l.bf16 %v501
        %v630 = vunpack.c.l.bf16 %v502
        %v631 = vunpack.c.l.bf16 %v503
        %v632 = vunpack.c.l.bf16 %v504
        %v633 = vunpack.c.l.bf16 %v505
        %v634 = vunpack.c.l.bf16 %v506
        %v635 = vunpack.c.l.bf16 %v507
        %v636 = vunpack.c.l.bf16 %v508
        %v637 = vunpack.c.l.bf16 %v509
        %v638 = vunpack.c.l.bf16 %v510
        %v639 = vunpack.c.l.bf16 %v511
        %v640 = vunpack.c.l.bf16 %v512
        %v641 = vunpack.c.l.bf16 %v513
        %v642 = vunpack.c.l.bf16 %v514
        %v643 = vunpack.c.l.bf16 %v515
        %v644 = vunpack.c.l.bf16 %v516
        %v645 = vunpack.c.l.bf16 %v517
        %v646 = vunpack.c.l.bf16 %v518
        %v647 = vunpack.c.l.bf16 %v519
        %v648 = vunpack.c.l.bf16 %v520
        %v649 = vunpack.c.l.bf16 %v521
        %v650 = vunpack.c.l.bf16 %v522
        %v651 = vunpack.c.l.bf16 %v523
        %v652 = vunpack.c.l.bf16 %v524
        %v653 = vunpack.c.l.bf16 %v525
        %v654 = vunpack.c.l.bf16 %v526
        %v655 = vunpack.c.l.bf16 %v527
        %v656 = vunpack.c.l.bf16 %v528
        %v657 = vunpack.c.l.bf16 %v529
        %v658 = vunpack.c.l.bf16 %v530
        %v659 = vunpack.c.l.bf16 %v531
        %v660 = vunpack.c.l.bf16 %v532
        %v661 = vunpack.c.l.bf16 %v533
        %v662 = vunpack.c.l.bf16 %v534
        %v663 = vunpack.c.l.bf16 %v535
        %v664 = vunpack.c.l.bf16 %v536
        %v665 = vunpack.c.l.bf16 %v537
        %v666 = vunpack.c.l.bf16 %v538
        %v667 = vunpack.c.l.bf16 %v539
        %v668 = vunpack.c.l.bf16 %v540
        %v669 = vunpack.c.l.bf16 %v541
        %v670 = vunpack.c.l.bf16 %v542
        %v671 = vunpack.c.l.bf16 %v543
        %v672 = vunpack.c.l.bf16 %v544
        %v673 = vunpack.c.l.bf16 %v545
        %v674 = vunpack.c.l.bf16 %v546
        %v675 = vunpack.c.l.bf16 %v547
        %v676 = vunpack.c.l.bf16 %v548
        %v677 = vunpack.c.l.bf16 %v549
        %v678 = vunpack.c.l.bf16 %v550
        %v679 = vunpack.c.l.bf16 %v551
        %v680 = vunpack.c.l.bf16 %v552
        %v681 = vunpack.c.l.bf16 %v553
        %v682 = vunpack.c.l.bf16 %v554
        %v683 = vunpack.c.l.bf16 %v555
        %v684 = vunpack.c.l.bf16 %v556
        %v685 = vunpack.c.l.bf16 %v557
        %v686 = vunpack.c.l.bf16 %v558
        %v687 = vunpack.c.l.bf16 %v559
        %v688 = vunpack.c.l.bf16 %v560
        %v689 = vunpack.c.l.bf16 %v561
        %v690 = vunpack.c.l.bf16 %v562
        %v691 = vunpack.c.l.bf16 %v563
        %v692 = vunpack.c.l.bf16 %v564
        %v693 = vunpack.c.l.bf16 %v565
        %v694 = vunpack.c.l.bf16 %v566
        %v695 = vunpack.c.l.bf16 %v567
        %v696 = vunpack.c.l.bf16 %v568
        %v697 = vunpack.c.l.bf16 %v569
        %v698 = vunpack.c.l.bf16 %v570
        %v699 = vunpack.c.l.bf16 %v571
        %v700 = vunpack.c.l.bf16 %v572
        %v701 = vunpack.c.l.bf16 %v573
        %v702 = vunpack.c.l.bf16 %v574
        %v703 = vunpack.c.l.bf16 %v575
        %v704 = vunpack.c.l.bf16 %v576
        %v705 = vunpack.c.l.bf16 %v577
        %v706 = vunpack.c.l.bf16 %v578
        %v707 = vunpack.c.l.bf16 %v579
        %v708 = vunpack.c.l.bf16 %v580
        %v709 = vunpack.c.l.bf16 %v581
        %v710 = vunpack.c.l.bf16 %v582
        %v711 = vunpack.c.l.bf16 %v583
        %v712 = vld [vmem:[%s441] sm:$0xf]
        %v713 = vld [vmem:[%s441 + $0x4] sm:$0xf]
        %v714 = vld [vmem:[%s441 + $0x8] sm:$0xf]
        %v715 = vld [vmem:[%s441 + $0xc] sm:$0xf]
        %v716 = vld [vmem:[%s441 + $0x10] sm:$0xf]
        %v717 = vld [vmem:[%s441 + $0x14] sm:$0xf]
        %v718 = vld [vmem:[%s441 + $0x18] sm:$0xf]
        %v719 = vld [vmem:[%s441 + $0x1c] sm:$0xf]
        %v720 = vld [vmem:[%s441 + $0x20] sm:$0xf]
        %v721 = vld [vmem:[%s441 + $0x24] sm:$0xf]
        %v722 = vld [vmem:[%s441 + $0x28] sm:$0xf]
        %v723 = vld [vmem:[%s441 + $0x2c] sm:$0xf]
        %v724 = vld [vmem:[%s441 + $0x30] sm:$0xf]
        %v725 = vld [vmem:[%s441 + $0x34] sm:$0xf]
        %v726 = vld [vmem:[%s441 + $0x38] sm:$0xf]
        %v727 = vld [vmem:[%s441 + $0x3c] sm:$0xf]
        %v728 = vld [vmem:[%s441 + $0x40] sm:$0xf]
        %v729 = vld [vmem:[%s441 + $0x44] sm:$0xf]
        %v730 = vld [vmem:[%s441 + $0x48] sm:$0xf]
        %v731 = vld [vmem:[%s441 + $0x4c] sm:$0xf]
        %v732 = vld [vmem:[%s441 + $0x50] sm:$0xf]
        %v733 = vld [vmem:[%s441 + $0x54] sm:$0xf]
        %v734 = vld [vmem:[%s441 + $0x58] sm:$0xf]
        %v735 = vld [vmem:[%s441 + $0x5c] sm:$0xf]
        %v736 = vld [vmem:[%s441 + $0x60] sm:$0xf]
        %v737 = vld [vmem:[%s441 + $0x64] sm:$0xf]
        %v738 = vld [vmem:[%s441 + $0x68] sm:$0xf]
        %v739 = vld [vmem:[%s441 + $0x6c] sm:$0xf]
        %v740 = vld [vmem:[%s441 + $0x70] sm:$0xf]
        %v741 = vld [vmem:[%s441 + $0x74] sm:$0xf]
        %v742 = vld [vmem:[%s441 + $0x78] sm:$0xf]
        %v743 = vld [vmem:[%s441 + $0x7c] sm:$0xf]
        %v744 = vld [vmem:[%s441 + $0x80] sm:$0xf]
        %v745 = vld [vmem:[%s441 + $0x84] sm:$0xf]
        %v746 = vld [vmem:[%s441 + $0x88] sm:$0xf]
        %v747 = vld [vmem:[%s441 + $0x8c] sm:$0xf]
        %v748 = vld [vmem:[%s441 + $0x90] sm:$0xf]
        %v749 = vld [vmem:[%s441 + $0x94] sm:$0xf]
        %v750 = vld [vmem:[%s441 + $0x98] sm:$0xf]
        %v751 = vld [vmem:[%s441 + $0x9c] sm:$0xf]
        %v752 = vld [vmem:[%s441 + $0xa0] sm:$0xf]
        %v753 = vld [vmem:[%s441 + $0xa4] sm:$0xf]
        %v754 = vld [vmem:[%s441 + $0xa8] sm:$0xf]
        %v755 = vld [vmem:[%s441 + $0xac] sm:$0xf]
        %v756 = vld [vmem:[%s441 + $0xb0] sm:$0xf]
        %v757 = vld [vmem:[%s441 + $0xb4] sm:$0xf]
        %v758 = vld [vmem:[%s441 + $0xb8] sm:$0xf]
        %v759 = vld [vmem:[%s441 + $0xbc] sm:$0xf]
        %v760 = vld [vmem:[%s441 + $0xc0] sm:$0xf]
        %v761 = vld [vmem:[%s441 + $0xc4] sm:$0xf]
        %v762 = vld [vmem:[%s441 + $0xc8] sm:$0xf]
        %v763 = vld [vmem:[%s441 + $0xcc] sm:$0xf]
        %v764 = vld [vmem:[%s441 + $0xd0] sm:$0xf]
        %v765 = vld [vmem:[%s441 + $0xd4] sm:$0xf]
        %v766 = vld [vmem:[%s441 + $0xd8] sm:$0xf]
        %v767 = vld [vmem:[%s441 + $0xdc] sm:$0xf]
        %v768 = vld [vmem:[%s441 + $0xe0] sm:$0xf]
        %v769 = vld [vmem:[%s441 + $0xe4] sm:$0xf]
        %v770 = vld [vmem:[%s441 + $0xe8] sm:$0xf]
        %v771 = vld [vmem:[%s441 + $0xec] sm:$0xf]
        %v772 = vld [vmem:[%s441 + $0xf0] sm:$0xf]
        %v773 = vld [vmem:[%s441 + $0xf4] sm:$0xf]
        %v774 = vld [vmem:[%s441 + $0xf8] sm:$0xf]
        %v775 = vld [vmem:[%s441 + $0xfc] sm:$0xf]
        %v776 = vld [vmem:[%s441 + $0x100] sm:$0xf]
        %v777 = vld [vmem:[%s441 + $0x104] sm:$0xf]
        %v778 = vld [vmem:[%s441 + $0x108] sm:$0xf]
        %v779 = vld [vmem:[%s441 + $0x10c] sm:$0xf]
        %v780 = vld [vmem:[%s441 + $0x110] sm:$0xf]
        %v781 = vld [vmem:[%s441 + $0x114] sm:$0xf]
        %v782 = vld [vmem:[%s441 + $0x118] sm:$0xf]
        %v783 = vld [vmem:[%s441 + $0x11c] sm:$0xf]
        %v784 = vld [vmem:[%s441 + $0x120] sm:$0xf]
        %v785 = vld [vmem:[%s441 + $0x124] sm:$0xf]
        %v786 = vld [vmem:[%s441 + $0x128] sm:$0xf]
        %v787 = vld [vmem:[%s441 + $0x12c] sm:$0xf]
        %v788 = vld [vmem:[%s441 + $0x130] sm:$0xf]
        %v789 = vld [vmem:[%s441 + $0x134] sm:$0xf]
        %v790 = vld [vmem:[%s441 + $0x138] sm:$0xf]
        %v791 = vld [vmem:[%s441 + $0x13c] sm:$0xf]
        %v792 = vld [vmem:[%s441 + $0x140] sm:$0xf]
        %v793 = vld [vmem:[%s441 + $0x144] sm:$0xf]
        %v794 = vld [vmem:[%s441 + $0x148] sm:$0xf]
        %v795 = vld [vmem:[%s441 + $0x14c] sm:$0xf]
        %v796 = vld [vmem:[%s441 + $0x150] sm:$0xf]
        %v797 = vld [vmem:[%s441 + $0x154] sm:$0xf]
        %v798 = vld [vmem:[%s441 + $0x158] sm:$0xf]
        %v799 = vld [vmem:[%s441 + $0x15c] sm:$0xf]
        %v800 = vld [vmem:[%s441 + $0x160] sm:$0xf]
        %v801 = vld [vmem:[%s441 + $0x164] sm:$0xf]
        %v802 = vld [vmem:[%s441 + $0x168] sm:$0xf]
        %v803 = vld [vmem:[%s441 + $0x16c] sm:$0xf]
        %v804 = vld [vmem:[%s441 + $0x170] sm:$0xf]
        %v805 = vld [vmem:[%s441 + $0x174] sm:$0xf]
        %v806 = vld [vmem:[%s441 + $0x178] sm:$0xf]
        %v807 = vld [vmem:[%s441 + $0x17c] sm:$0xf]
        %v808 = vld [vmem:[%s441 + $0x180] sm:$0xf]
        %v809 = vld [vmem:[%s441 + $0x184] sm:$0xf]
        %v810 = vld [vmem:[%s441 + $0x188] sm:$0xf]
        %v811 = vld [vmem:[%s441 + $0x18c] sm:$0xf]
        %v812 = vld [vmem:[%s441 + $0x190] sm:$0xf]
        %v813 = vld [vmem:[%s441 + $0x194] sm:$0xf]
        %v814 = vld [vmem:[%s441 + $0x198] sm:$0xf]
        %v815 = vld [vmem:[%s441 + $0x19c] sm:$0xf]
        %v816 = vld [vmem:[%s441 + $0x1a0] sm:$0xf]
        %v817 = vld [vmem:[%s441 + $0x1a4] sm:$0xf]
        %v818 = vld [vmem:[%s441 + $0x1a8] sm:$0xf]
        %v819 = vld [vmem:[%s441 + $0x1ac] sm:$0xf]
        %v820 = vld [vmem:[%s441 + $0x1b0] sm:$0xf]
        %v821 = vld [vmem:[%s441 + $0x1b4] sm:$0xf]
        %v822 = vld [vmem:[%s441 + $0x1b8] sm:$0xf]
        %v823 = vld [vmem:[%s441 + $0x1bc] sm:$0xf]
        %v824 = vld [vmem:[%s441 + $0x1c0] sm:$0xf]
        %v825 = vld [vmem:[%s441 + $0x1c4] sm:$0xf]
        %v826 = vld [vmem:[%s441 + $0x1c8] sm:$0xf]
        %v827 = vld [vmem:[%s441 + $0x1cc] sm:$0xf]
        %v828 = vld [vmem:[%s441 + $0x1d0] sm:$0xf]
        %v829 = vld [vmem:[%s441 + $0x1d4] sm:$0xf]
        %v830 = vld [vmem:[%s441 + $0x1d8] sm:$0xf]
        %v831 = vld [vmem:[%s441 + $0x1dc] sm:$0xf]
        %v832 = vld [vmem:[%s441 + $0x1e0] sm:$0xf]
        %v833 = vld [vmem:[%s441 + $0x1e4] sm:$0xf]
        %v834 = vld [vmem:[%s441 + $0x1e8] sm:$0xf]
        %v835 = vld [vmem:[%s441 + $0x1ec] sm:$0xf]
        %v836 = vld [vmem:[%s441 + $0x1f0] sm:$0xf]
        %v837 = vld [vmem:[%s441 + $0x1f4] sm:$0xf]
        %v838 = vld [vmem:[%s441 + $0x1f8] sm:$0xf]
        %v839 = vld [vmem:[%s441 + $0x1fc] sm:$0xf]
        %v840 = vunpack.c.l.bf16 %v712
        %v841 = vunpack.c.l.bf16 %v713
        %v842 = vunpack.c.l.bf16 %v714
        %v843 = vunpack.c.l.bf16 %v715
        %v844 = vunpack.c.l.bf16 %v716
        %v845 = vunpack.c.l.bf16 %v717
        %v846 = vunpack.c.l.bf16 %v718
        %v847 = vunpack.c.l.bf16 %v719
        %v848 = vunpack.c.l.bf16 %v720
        %v849 = vunpack.c.l.bf16 %v721
        %v850 = vunpack.c.l.bf16 %v722
        %v851 = vunpack.c.l.bf16 %v723
        %v852 = vunpack.c.l.bf16 %v724
        %v853 = vunpack.c.l.bf16 %v725
        %v854 = vunpack.c.l.bf16 %v726
        %v855 = vunpack.c.l.bf16 %v727
        %v856 = vunpack.c.l.bf16 %v728
        %v857 = vunpack.c.l.bf16 %v729
        %v858 = vunpack.c.l.bf16 %v730
        %v859 = vunpack.c.l.bf16 %v731
        %v860 = vunpack.c.l.bf16 %v732
        %v861 = vunpack.c.l.bf16 %v733
        %v862 = vunpack.c.l.bf16 %v734
        %v863 = vunpack.c.l.bf16 %v735
        %v864 = vunpack.c.l.bf16 %v736
        %v865 = vunpack.c.l.bf16 %v737
        %v866 = vunpack.c.l.bf16 %v738
        %v867 = vunpack.c.l.bf16 %v739
        %v868 = vunpack.c.l.bf16 %v740
        %v869 = vunpack.c.l.bf16 %v741
        %v870 = vunpack.c.l.bf16 %v742
        %v871 = vunpack.c.l.bf16 %v743
        %v872 = vunpack.c.l.bf16 %v744
        %v873 = vunpack.c.l.bf16 %v745
        %v874 = vunpack.c.l.bf16 %v746
        %v875 = vunpack.c.l.bf16 %v747
        %v876 = vunpack.c.l.bf16 %v748
        %v877 = vunpack.c.l.bf16 %v749
        %v878 = vunpack.c.l.bf16 %v750
        %v879 = vunpack.c.l.bf16 %v751
        %v880 = vunpack.c.l.bf16 %v752
        %v881 = vunpack.c.l.bf16 %v753
        %v882 = vunpack.c.l.bf16 %v754
        %v883 = vunpack.c.l.bf16 %v755
        %v884 = vunpack.c.l.bf16 %v756
        %v885 = vunpack.c.l.bf16 %v757
        %v886 = vunpack.c.l.bf16 %v758
        %v887 = vunpack.c.l.bf16 %v759
        %v888 = vunpack.c.l.bf16 %v760
        %v889 = vunpack.c.l.bf16 %v761
        %v890 = vunpack.c.l.bf16 %v762
        %v891 = vunpack.c.l.bf16 %v763
        %v892 = vunpack.c.l.bf16 %v764
        %v893 = vunpack.c.l.bf16 %v765
        %v894 = vunpack.c.l.bf16 %v766
        %v895 = vunpack.c.l.bf16 %v767
        %v896 = vunpack.c.l.bf16 %v768
        %v897 = vunpack.c.l.bf16 %v769
        %v898 = vunpack.c.l.bf16 %v770
        %v899 = vunpack.c.l.bf16 %v771
        %v900 = vunpack.c.l.bf16 %v772
        %v901 = vunpack.c.l.bf16 %v773
        %v902 = vunpack.c.l.bf16 %v774
        %v903 = vunpack.c.l.bf16 %v775
        %v904 = vunpack.c.l.bf16 %v776
        %v905 = vunpack.c.l.bf16 %v777
        %v906 = vunpack.c.l.bf16 %v778
        %v907 = vunpack.c.l.bf16 %v779
        %v908 = vunpack.c.l.bf16 %v780
        %v909 = vunpack.c.l.bf16 %v781
        %v910 = vunpack.c.l.bf16 %v782
        %v911 = vunpack.c.l.bf16 %v783
        %v912 = vunpack.c.l.bf16 %v784
        %v913 = vunpack.c.l.bf16 %v785
        %v914 = vunpack.c.l.bf16 %v786
        %v915 = vunpack.c.l.bf16 %v787
        %v916 = vunpack.c.l.bf16 %v788
        %v917 = vunpack.c.l.bf16 %v789
        %v918 = vunpack.c.l.bf16 %v790
        %v919 = vunpack.c.l.bf16 %v791
        %v920 = vunpack.c.l.bf16 %v792
        %v921 = vunpack.c.l.bf16 %v793
        %v922 = vunpack.c.l.bf16 %v794
        %v923 = vunpack.c.l.bf16 %v795
        %v924 = vunpack.c.l.bf16 %v796
        %v925 = vunpack.c.l.bf16 %v797
        %v926 = vunpack.c.l.bf16 %v798
        %v927 = vunpack.c.l.bf16 %v799
        %v928 = vunpack.c.l.bf16 %v800
        %v929 = vunpack.c.l.bf16 %v801
        %v930 = vunpack.c.l.bf16 %v802
        %v931 = vunpack.c.l.bf16 %v803
        %v932 = vunpack.c.l.bf16 %v804
        %v933 = vunpack.c.l.bf16 %v805
        %v934 = vunpack.c.l.bf16 %v806
        %v935 = vunpack.c.l.bf16 %v807
        %v936 = vunpack.c.l.bf16 %v808
        %v937 = vunpack.c.l.bf16 %v809
        %v938 = vunpack.c.l.bf16 %v810
        %v939 = vunpack.c.l.bf16 %v811
        %v940 = vunpack.c.l.bf16 %v812
        %v941 = vunpack.c.l.bf16 %v813
        %v942 = vunpack.c.l.bf16 %v814
        %v943 = vunpack.c.l.bf16 %v815
        %v944 = vunpack.c.l.bf16 %v816
        %v945 = vunpack.c.l.bf16 %v817
        %v946 = vunpack.c.l.bf16 %v818
        %v947 = vunpack.c.l.bf16 %v819
        %v948 = vunpack.c.l.bf16 %v820
        %v949 = vunpack.c.l.bf16 %v821
        %v950 = vunpack.c.l.bf16 %v822
        %v951 = vunpack.c.l.bf16 %v823
        %v952 = vunpack.c.l.bf16 %v824
        %v953 = vunpack.c.l.bf16 %v825
        %v954 = vunpack.c.l.bf16 %v826
        %v955 = vunpack.c.l.bf16 %v827
        %v956 = vunpack.c.l.bf16 %v828
        %v957 = vunpack.c.l.bf16 %v829
        %v958 = vunpack.c.l.bf16 %v830
        %v959 = vunpack.c.l.bf16 %v831
        %v960 = vunpack.c.l.bf16 %v832
        %v961 = vunpack.c.l.bf16 %v833
        %v962 = vunpack.c.l.bf16 %v834
        %v963 = vunpack.c.l.bf16 %v835
        %v964 = vunpack.c.l.bf16 %v836
        %v965 = vunpack.c.l.bf16 %v837
        %v966 = vunpack.c.l.bf16 %v838
        %v967 = vunpack.c.l.bf16 %v839
        %v968 = vmul.f32 %v584, %v840
        %v969 = vmul.f32 %v585, %v841
        %v970 = vmul.f32 %v586, %v842
        %v971 = vmul.f32 %v587, %v843
        %v972 = vmul.f32 %v588, %v844
        %v973 = vmul.f32 %v589, %v845
        %v974 = vmul.f32 %v590, %v846
        %v975 = vmul.f32 %v591, %v847
        %v976 = vmul.f32 %v592, %v848
        %v977 = vmul.f32 %v593, %v849
        %v978 = vmul.f32 %v594, %v850
        %v979 = vmul.f32 %v595, %v851
        %v980 = vmul.f32 %v596, %v852
        %v981 = vmul.f32 %v597, %v853
        %v982 = vmul.f32 %v598, %v854
        %v983 = vmul.f32 %v599, %v855
        %v984 = vmul.f32 %v600, %v856
        %v985 = vmul.f32 %v601, %v857
        %v986 = vmul.f32 %v602, %v858
        %v987 = vmul.f32 %v603, %v859
        %v988 = vmul.f32 %v604, %v860
        %v989 = vmul.f32 %v605, %v861
        %v990 = vmul.f32 %v606, %v862
        %v991 = vmul.f32 %v607, %v863
        %v992 = vmul.f32 %v608, %v864
        %v993 = vmul.f32 %v609, %v865
        %v994 = vmul.f32 %v610, %v866
        %v995 = vmul.f32 %v611, %v867
        %v996 = vmul.f32 %v612, %v868
        %v997 = vmul.f32 %v613, %v869
        %v998 = vmul.f32 %v614, %v870
        %v999 = vmul.f32 %v615, %v871
        %v1000 = vmul.f32 %v616, %v872
        %v1001 = vmul.f32 %v617, %v873
        %v1002 = vmul.f32 %v618, %v874
        %v1003 = vmul.f32 %v619, %v875
        %v1004 = vmul.f32 %v620, %v876
        %v1005 = vmul.f32 %v621, %v877
        %v1006 = vmul.f32 %v622, %v878
        %v1007 = vmul.f32 %v623, %v879
        %v1008 = vmul.f32 %v624, %v880
        %v1009 = vmul.f32 %v625, %v881
        %v1010 = vmul.f32 %v626, %v882
        %v1011 = vmul.f32 %v627, %v883
        %v1012 = vmul.f32 %v628, %v884
        %v1013 = vmul.f32 %v629, %v885
        %v1014 = vmul.f32 %v630, %v886
        %v1015 = vmul.f32 %v631, %v887
        %v1016 = vmul.f32 %v632, %v888
        %v1017 = vmul.f32 %v633, %v889
        %v1018 = vmul.f32 %v634, %v890
        %v1019 = vmul.f32 %v635, %v891
        %v1020 = vmul.f32 %v636, %v892
        %v1021 = vmul.f32 %v637, %v893
        %v1022 = vmul.f32 %v638, %v894
        %v1023 = vmul.f32 %v639, %v895
        %v1024 = vmul.f32 %v640, %v896
        %v1025 = vmul.f32 %v641, %v897
        %v1026 = vmul.f32 %v642, %v898
        %v1027 = vmul.f32 %v643, %v899
        %v1028 = vmul.f32 %v644, %v900
        %v1029 = vmul.f32 %v645, %v901
        %v1030 = vmul.f32 %v646, %v902
        %v1031 = vmul.f32 %v647, %v903
        %v1032 = vmul.f32 %v648, %v904
        %v1033 = vmul.f32 %v649, %v905
        %v1034 = vmul.f32 %v650, %v906
        %v1035 = vmul.f32 %v651, %v907
        %v1036 = vmul.f32 %v652, %v908
        %v1037 = vmul.f32 %v653, %v909
        %v1038 = vmul.f32 %v654, %v910
        %v1039 = vmul.f32 %v655, %v911
        %v1040 = vmul.f32 %v656, %v912
        %v1041 = vmul.f32 %v657, %v913
        %v1042 = vmul.f32 %v658, %v914
        %v1043 = vmul.f32 %v659, %v915
        %v1044 = vmul.f32 %v660, %v916
        %v1045 = vmul.f32 %v661, %v917
        %v1046 = vmul.f32 %v662, %v918
        %v1047 = vmul.f32 %v663, %v919
        %v1048 = vmul.f32 %v664, %v920
        %v1049 = vmul.f32 %v665, %v921
        %v1050 = vmul.f32 %v666, %v922
        %v1051 = vmul.f32 %v667, %v923
        %v1052 = vmul.f32 %v668, %v924
        %v1053 = vmul.f32 %v669, %v925
        %v1054 = vmul.f32 %v670, %v926
        %v1055 = vmul.f32 %v671, %v927
        %v1056 = vmul.f32 %v672, %v928
        %v1057 = vmul.f32 %v673, %v929
        %v1058 = vmul.f32 %v674, %v930
        %v1059 = vmul.f32 %v675, %v931
        %v1060 = vmul.f32 %v676, %v932
        %v1061 = vmul.f32 %v677, %v933
        %v1062 = vmul.f32 %v678, %v934
        %v1063 = vmul.f32 %v679, %v935
        %v1064 = vmul.f32 %v680, %v936
        %v1065 = vmul.f32 %v681, %v937
        %v1066 = vmul.f32 %v682, %v938
        %v1067 = vmul.f32 %v683, %v939
        %v1068 = vmul.f32 %v684, %v940
        %v1069 = vmul.f32 %v685, %v941
        %v1070 = vmul.f32 %v686, %v942
        %v1071 = vmul.f32 %v687, %v943
        %v1072 = vmul.f32 %v688, %v944
        %v1073 = vmul.f32 %v689, %v945
        %v1074 = vmul.f32 %v690, %v946
        %v1075 = vmul.f32 %v691, %v947
        %v1076 = vmul.f32 %v692, %v948
        %v1077 = vmul.f32 %v693, %v949
        %v1078 = vmul.f32 %v694, %v950
        %v1079 = vmul.f32 %v695, %v951
        %v1080 = vmul.f32 %v696, %v952
        %v1081 = vmul.f32 %v697, %v953
        %v1082 = vmul.f32 %v698, %v954
        %v1083 = vmul.f32 %v699, %v955
        %v1084 = vmul.f32 %v700, %v956
        %v1085 = vmul.f32 %v701, %v957
        %v1086 = vmul.f32 %v702, %v958
        %v1087 = vmul.f32 %v703, %v959
        %v1088 = vmul.f32 %v704, %v960
        %v1089 = vmul.f32 %v705, %v961
        %v1090 = vmul.f32 %v706, %v962
        %v1091 = vmul.f32 %v707, %v963
        %v1092 = vmul.f32 %v708, %v964
        %v1093 = vmul.f32 %v709, %v965
        %v1094 = vmul.f32 %v710, %v966
        %v1095 = vmul.f32 %v711, %v967
        %v1096 = vld [vmem:[%s447] sm:$0xf]
        %v1097 = vld [vmem:[%s447 + $0x4] sm:$0xf]
        %v1098 = vld [vmem:[%s447 + $0x8] sm:$0xf]
        %v1099 = vld [vmem:[%s447 + $0xc] sm:$0xf]
        %v1100 = vld [vmem:[%s447 + $0x10] sm:$0xf]
        %v1101 = vld [vmem:[%s447 + $0x14] sm:$0xf]
        %v1102 = vld [vmem:[%s447 + $0x18] sm:$0xf]
        %v1103 = vld [vmem:[%s447 + $0x1c] sm:$0xf]
        %v1104 = vld [vmem:[%s447 + $0x20] sm:$0xf]
        %v1105 = vld [vmem:[%s447 + $0x24] sm:$0xf]
        %v1106 = vld [vmem:[%s447 + $0x28] sm:$0xf]
        %v1107 = vld [vmem:[%s447 + $0x2c] sm:$0xf]
        %v1108 = vld [vmem:[%s447 + $0x30] sm:$0xf]
        %v1109 = vld [vmem:[%s447 + $0x34] sm:$0xf]
        %v1110 = vld [vmem:[%s447 + $0x38] sm:$0xf]
        %v1111 = vld [vmem:[%s447 + $0x3c] sm:$0xf]
        %v1112 = vld [vmem:[%s447 + $0x40] sm:$0xf]
        %v1113 = vld [vmem:[%s447 + $0x44] sm:$0xf]
        %v1114 = vld [vmem:[%s447 + $0x48] sm:$0xf]
        %v1115 = vld [vmem:[%s447 + $0x4c] sm:$0xf]
        %v1116 = vld [vmem:[%s447 + $0x50] sm:$0xf]
        %v1117 = vld [vmem:[%s447 + $0x54] sm:$0xf]
        %v1118 = vld [vmem:[%s447 + $0x58] sm:$0xf]
        %v1119 = vld [vmem:[%s447 + $0x5c] sm:$0xf]
        %v1120 = vld [vmem:[%s447 + $0x60] sm:$0xf]
        %v1121 = vld [vmem:[%s447 + $0x64] sm:$0xf]
        %v1122 = vld [vmem:[%s447 + $0x68] sm:$0xf]
        %v1123 = vld [vmem:[%s447 + $0x6c] sm:$0xf]
        %v1124 = vld [vmem:[%s447 + $0x70] sm:$0xf]
        %v1125 = vld [vmem:[%s447 + $0x74] sm:$0xf]
        %v1126 = vld [vmem:[%s447 + $0x78] sm:$0xf]
        %v1127 = vld [vmem:[%s447 + $0x7c] sm:$0xf]
        %v1128 = vld [vmem:[%s447 + $0x80] sm:$0xf]
        %v1129 = vld [vmem:[%s447 + $0x84] sm:$0xf]
        %v1130 = vld [vmem:[%s447 + $0x88] sm:$0xf]
        %v1131 = vld [vmem:[%s447 + $0x8c] sm:$0xf]
        %v1132 = vld [vmem:[%s447 + $0x90] sm:$0xf]
        %v1133 = vld [vmem:[%s447 + $0x94] sm:$0xf]
        %v1134 = vld [vmem:[%s447 + $0x98] sm:$0xf]
        %v1135 = vld [vmem:[%s447 + $0x9c] sm:$0xf]
        %v1136 = vld [vmem:[%s447 + $0xa0] sm:$0xf]
        %v1137 = vld [vmem:[%s447 + $0xa4] sm:$0xf]
        %v1138 = vld [vmem:[%s447 + $0xa8] sm:$0xf]
        %v1139 = vld [vmem:[%s447 + $0xac] sm:$0xf]
        %v1140 = vld [vmem:[%s447 + $0xb0] sm:$0xf]
        %v1141 = vld [vmem:[%s447 + $0xb4] sm:$0xf]
        %v1142 = vld [vmem:[%s447 + $0xb8] sm:$0xf]
        %v1143 = vld [vmem:[%s447 + $0xbc] sm:$0xf]
        %v1144 = vld [vmem:[%s447 + $0xc0] sm:$0xf]
        %v1145 = vld [vmem:[%s447 + $0xc4] sm:$0xf]
        %v1146 = vld [vmem:[%s447 + $0xc8] sm:$0xf]
        %v1147 = vld [vmem:[%s447 + $0xcc] sm:$0xf]
        %v1148 = vld [vmem:[%s447 + $0xd0] sm:$0xf]
        %v1149 = vld [vmem:[%s447 + $0xd4] sm:$0xf]
        %v1150 = vld [vmem:[%s447 + $0xd8] sm:$0xf]
        %v1151 = vld [vmem:[%s447 + $0xdc] sm:$0xf]
        %v1152 = vld [vmem:[%s447 + $0xe0] sm:$0xf]
        %v1153 = vld [vmem:[%s447 + $0xe4] sm:$0xf]
        %v1154 = vld [vmem:[%s447 + $0xe8] sm:$0xf]
        %v1155 = vld [vmem:[%s447 + $0xec] sm:$0xf]
        %v1156 = vld [vmem:[%s447 + $0xf0] sm:$0xf]
        %v1157 = vld [vmem:[%s447 + $0xf4] sm:$0xf]
        %v1158 = vld [vmem:[%s447 + $0xf8] sm:$0xf]
        %v1159 = vld [vmem:[%s447 + $0xfc] sm:$0xf]
        %v1160 = vld [vmem:[%s447 + $0x100] sm:$0xf]
        %v1161 = vld [vmem:[%s447 + $0x104] sm:$0xf]
        %v1162 = vld [vmem:[%s447 + $0x108] sm:$0xf]
        %v1163 = vld [vmem:[%s447 + $0x10c] sm:$0xf]
        %v1164 = vld [vmem:[%s447 + $0x110] sm:$0xf]
        %v1165 = vld [vmem:[%s447 + $0x114] sm:$0xf]
        %v1166 = vld [vmem:[%s447 + $0x118] sm:$0xf]
        %v1167 = vld [vmem:[%s447 + $0x11c] sm:$0xf]
        %v1168 = vld [vmem:[%s447 + $0x120] sm:$0xf]
        %v1169 = vld [vmem:[%s447 + $0x124] sm:$0xf]
        %v1170 = vld [vmem:[%s447 + $0x128] sm:$0xf]
        %v1171 = vld [vmem:[%s447 + $0x12c] sm:$0xf]
        %v1172 = vld [vmem:[%s447 + $0x130] sm:$0xf]
        %v1173 = vld [vmem:[%s447 + $0x134] sm:$0xf]
        %v1174 = vld [vmem:[%s447 + $0x138] sm:$0xf]
        %v1175 = vld [vmem:[%s447 + $0x13c] sm:$0xf]
        %v1176 = vld [vmem:[%s447 + $0x140] sm:$0xf]
        %v1177 = vld [vmem:[%s447 + $0x144] sm:$0xf]
        %v1178 = vld [vmem:[%s447 + $0x148] sm:$0xf]
        %v1179 = vld [vmem:[%s447 + $0x14c] sm:$0xf]
        %v1180 = vld [vmem:[%s447 + $0x150] sm:$0xf]
        %v1181 = vld [vmem:[%s447 + $0x154] sm:$0xf]
        %v1182 = vld [vmem:[%s447 + $0x158] sm:$0xf]
        %v1183 = vld [vmem:[%s447 + $0x15c] sm:$0xf]
        %v1184 = vld [vmem:[%s447 + $0x160] sm:$0xf]
        %v1185 = vld [vmem:[%s447 + $0x164] sm:$0xf]
        %v1186 = vld [vmem:[%s447 + $0x168] sm:$0xf]
        %v1187 = vld [vmem:[%s447 + $0x16c] sm:$0xf]
        %v1188 = vld [vmem:[%s447 + $0x170] sm:$0xf]
        %v1189 = vld [vmem:[%s447 + $0x174] sm:$0xf]
        %v1190 = vld [vmem:[%s447 + $0x178] sm:$0xf]
        %v1191 = vld [vmem:[%s447 + $0x17c] sm:$0xf]
        %v1192 = vld [vmem:[%s447 + $0x180] sm:$0xf]
        %v1193 = vld [vmem:[%s447 + $0x184] sm:$0xf]
        %v1194 = vld [vmem:[%s447 + $0x188] sm:$0xf]
        %v1195 = vld [vmem:[%s447 + $0x18c] sm:$0xf]
        %v1196 = vld [vmem:[%s447 + $0x190] sm:$0xf]
        %v1197 = vld [vmem:[%s447 + $0x194] sm:$0xf]
        %v1198 = vld [vmem:[%s447 + $0x198] sm:$0xf]
        %v1199 = vld [vmem:[%s447 + $0x19c] sm:$0xf]
        %v1200 = vld [vmem:[%s447 + $0x1a0] sm:$0xf]
        %v1201 = vld [vmem:[%s447 + $0x1a4] sm:$0xf]
        %v1202 = vld [vmem:[%s447 + $0x1a8] sm:$0xf]
        %v1203 = vld [vmem:[%s447 + $0x1ac] sm:$0xf]
        %v1204 = vld [vmem:[%s447 + $0x1b0] sm:$0xf]
        %v1205 = vld [vmem:[%s447 + $0x1b4] sm:$0xf]
        %v1206 = vld [vmem:[%s447 + $0x1b8] sm:$0xf]
        %v1207 = vld [vmem:[%s447 + $0x1bc] sm:$0xf]
        %v1208 = vld [vmem:[%s447 + $0x1c0] sm:$0xf]
        %v1209 = vld [vmem:[%s447 + $0x1c4] sm:$0xf]
        %v1210 = vld [vmem:[%s447 + $0x1c8] sm:$0xf]
        %v1211 = vld [vmem:[%s447 + $0x1cc] sm:$0xf]
        %v1212 = vld [vmem:[%s447 + $0x1d0] sm:$0xf]
        %v1213 = vld [vmem:[%s447 + $0x1d4] sm:$0xf]
        %v1214 = vld [vmem:[%s447 + $0x1d8] sm:$0xf]
        %v1215 = vld [vmem:[%s447 + $0x1dc] sm:$0xf]
        %v1216 = vld [vmem:[%s447 + $0x1e0] sm:$0xf]
        %v1217 = vld [vmem:[%s447 + $0x1e4] sm:$0xf]
        %v1218 = vld [vmem:[%s447 + $0x1e8] sm:$0xf]
        %v1219 = vld [vmem:[%s447 + $0x1ec] sm:$0xf]
        %v1220 = vld [vmem:[%s447 + $0x1f0] sm:$0xf]
        %v1221 = vld [vmem:[%s447 + $0x1f4] sm:$0xf]
        %v1222 = vld [vmem:[%s447 + $0x1f8] sm:$0xf]
        %v1223 = vld [vmem:[%s447 + $0x1fc] sm:$0xf]
        %v1224 = vunpack.c.l.bf16 %v1096
        %v1225 = vunpack.c.l.bf16 %v1097
        %v1226 = vunpack.c.l.bf16 %v1098
        %v1227 = vunpack.c.l.bf16 %v1099
        %v1228 = vunpack.c.l.bf16 %v1100
        %v1229 = vunpack.c.l.bf16 %v1101
        %v1230 = vunpack.c.l.bf16 %v1102
        %v1231 = vunpack.c.l.bf16 %v1103
        %v1232 = vunpack.c.l.bf16 %v1104
        %v1233 = vunpack.c.l.bf16 %v1105
        %v1234 = vunpack.c.l.bf16 %v1106
        %v1235 = vunpack.c.l.bf16 %v1107
        %v1236 = vunpack.c.l.bf16 %v1108
        %v1237 = vunpack.c.l.bf16 %v1109
        %v1238 = vunpack.c.l.bf16 %v1110
        %v1239 = vunpack.c.l.bf16 %v1111
        %v1240 = vunpack.c.l.bf16 %v1112
        %v1241 = vunpack.c.l.bf16 %v1113
        %v1242 = vunpack.c.l.bf16 %v1114
        %v1243 = vunpack.c.l.bf16 %v1115
        %v1244 = vunpack.c.l.bf16 %v1116
        %v1245 = vunpack.c.l.bf16 %v1117
        %v1246 = vunpack.c.l.bf16 %v1118
        %v1247 = vunpack.c.l.bf16 %v1119
        %v1248 = vunpack.c.l.bf16 %v1120
        %v1249 = vunpack.c.l.bf16 %v1121
        %v1250 = vunpack.c.l.bf16 %v1122
        %v1251 = vunpack.c.l.bf16 %v1123
        %v1252 = vunpack.c.l.bf16 %v1124
        %v1253 = vunpack.c.l.bf16 %v1125
        %v1254 = vunpack.c.l.bf16 %v1126
        %v1255 = vunpack.c.l.bf16 %v1127
        %v1256 = vunpack.c.l.bf16 %v1128
        %v1257 = vunpack.c.l.bf16 %v1129
        %v1258 = vunpack.c.l.bf16 %v1130
        %v1259 = vunpack.c.l.bf16 %v1131
        %v1260 = vunpack.c.l.bf16 %v1132
        %v1261 = vunpack.c.l.bf16 %v1133
        %v1262 = vunpack.c.l.bf16 %v1134
        %v1263 = vunpack.c.l.bf16 %v1135
        %v1264 = vunpack.c.l.bf16 %v1136
        %v1265 = vunpack.c.l.bf16 %v1137
        %v1266 = vunpack.c.l.bf16 %v1138
        %v1267 = vunpack.c.l.bf16 %v1139
        %v1268 = vunpack.c.l.bf16 %v1140
        %v1269 = vunpack.c.l.bf16 %v1141
        %v1270 = vunpack.c.l.bf16 %v1142
        %v1271 = vunpack.c.l.bf16 %v1143
        %v1272 = vunpack.c.l.bf16 %v1144
        %v1273 = vunpack.c.l.bf16 %v1145
        %v1274 = vunpack.c.l.bf16 %v1146
        %v1275 = vunpack.c.l.bf16 %v1147
        %v1276 = vunpack.c.l.bf16 %v1148
        %v1277 = vunpack.c.l.bf16 %v1149
        %v1278 = vunpack.c.l.bf16 %v1150
        %v1279 = vunpack.c.l.bf16 %v1151
        %v1280 = vunpack.c.l.bf16 %v1152
        %v1281 = vunpack.c.l.bf16 %v1153
        %v1282 = vunpack.c.l.bf16 %v1154
        %v1283 = vunpack.c.l.bf16 %v1155
        %v1284 = vunpack.c.l.bf16 %v1156
        %v1285 = vunpack.c.l.bf16 %v1157
        %v1286 = vunpack.c.l.bf16 %v1158
        %v1287 = vunpack.c.l.bf16 %v1159
        %v1288 = vunpack.c.l.bf16 %v1160
        %v1289 = vunpack.c.l.bf16 %v1161
        %v1290 = vunpack.c.l.bf16 %v1162
        %v1291 = vunpack.c.l.bf16 %v1163
        %v1292 = vunpack.c.l.bf16 %v1164
        %v1293 = vunpack.c.l.bf16 %v1165
        %v1294 = vunpack.c.l.bf16 %v1166
        %v1295 = vunpack.c.l.bf16 %v1167
        %v1296 = vunpack.c.l.bf16 %v1168
        %v1297 = vunpack.c.l.bf16 %v1169
        %v1298 = vunpack.c.l.bf16 %v1170
        %v1299 = vunpack.c.l.bf16 %v1171
        %v1300 = vunpack.c.l.bf16 %v1172
        %v1301 = vunpack.c.l.bf16 %v1173
        %v1302 = vunpack.c.l.bf16 %v1174
        %v1303 = vunpack.c.l.bf16 %v1175
        %v1304 = vunpack.c.l.bf16 %v1176
        %v1305 = vunpack.c.l.bf16 %v1177
        %v1306 = vunpack.c.l.bf16 %v1178
        %v1307 = vunpack.c.l.bf16 %v1179
        %v1308 = vunpack.c.l.bf16 %v1180
        %v1309 = vunpack.c.l.bf16 %v1181
        %v1310 = vunpack.c.l.bf16 %v1182
        %v1311 = vunpack.c.l.bf16 %v1183
        %v1312 = vunpack.c.l.bf16 %v1184
        %v1313 = vunpack.c.l.bf16 %v1185
        %v1314 = vunpack.c.l.bf16 %v1186
        %v1315 = vunpack.c.l.bf16 %v1187
        %v1316 = vunpack.c.l.bf16 %v1188
        %v1317 = vunpack.c.l.bf16 %v1189
        %v1318 = vunpack.c.l.bf16 %v1190
        %v1319 = vunpack.c.l.bf16 %v1191
        %v1320 = vunpack.c.l.bf16 %v1192
        %v1321 = vunpack.c.l.bf16 %v1193
        %v1322 = vunpack.c.l.bf16 %v1194
        %v1323 = vunpack.c.l.bf16 %v1195
        %v1324 = vunpack.c.l.bf16 %v1196
        %v1325 = vunpack.c.l.bf16 %v1197
        %v1326 = vunpack.c.l.bf16 %v1198
        %v1327 = vunpack.c.l.bf16 %v1199
        %v1328 = vunpack.c.l.bf16 %v1200
        %v1329 = vunpack.c.l.bf16 %v1201
        %v1330 = vunpack.c.l.bf16 %v1202
        %v1331 = vunpack.c.l.bf16 %v1203
        %v1332 = vunpack.c.l.bf16 %v1204
        %v1333 = vunpack.c.l.bf16 %v1205
        %v1334 = vunpack.c.l.bf16 %v1206
        %v1335 = vunpack.c.l.bf16 %v1207
        %v1336 = vunpack.c.l.bf16 %v1208
        %v1337 = vunpack.c.l.bf16 %v1209
        %v1338 = vunpack.c.l.bf16 %v1210
        %v1339 = vunpack.c.l.bf16 %v1211
        %v1340 = vunpack.c.l.bf16 %v1212
        %v1341 = vunpack.c.l.bf16 %v1213
        %v1342 = vunpack.c.l.bf16 %v1214
        %v1343 = vunpack.c.l.bf16 %v1215
        %v1344 = vunpack.c.l.bf16 %v1216
        %v1345 = vunpack.c.l.bf16 %v1217
        %v1346 = vunpack.c.l.bf16 %v1218
        %v1347 = vunpack.c.l.bf16 %v1219
        %v1348 = vunpack.c.l.bf16 %v1220
        %v1349 = vunpack.c.l.bf16 %v1221
        %v1350 = vunpack.c.l.bf16 %v1222
        %v1351 = vunpack.c.l.bf16 %v1223
        %v1352 = vld [vmem:[%s453] sm:$0xf]
        %v1353 = vld [vmem:[%s453 + $0x4] sm:$0xf]
        %v1354 = vld [vmem:[%s453 + $0x8] sm:$0xf]
        %v1355 = vld [vmem:[%s453 + $0xc] sm:$0xf]
        %v1356 = vld [vmem:[%s453 + $0x10] sm:$0xf]
        %v1357 = vld [vmem:[%s453 + $0x14] sm:$0xf]
        %v1358 = vld [vmem:[%s453 + $0x18] sm:$0xf]
        %v1359 = vld [vmem:[%s453 + $0x1c] sm:$0xf]
        %v1360 = vld [vmem:[%s453 + $0x20] sm:$0xf]
        %v1361 = vld [vmem:[%s453 + $0x24] sm:$0xf]
        %v1362 = vld [vmem:[%s453 + $0x28] sm:$0xf]
        %v1363 = vld [vmem:[%s453 + $0x2c] sm:$0xf]
        %v1364 = vld [vmem:[%s453 + $0x30] sm:$0xf]
        %v1365 = vld [vmem:[%s453 + $0x34] sm:$0xf]
        %v1366 = vld [vmem:[%s453 + $0x38] sm:$0xf]
        %v1367 = vld [vmem:[%s453 + $0x3c] sm:$0xf]
        %v1368 = vld [vmem:[%s453 + $0x40] sm:$0xf]
        %v1369 = vld [vmem:[%s453 + $0x44] sm:$0xf]
        %v1370 = vld [vmem:[%s453 + $0x48] sm:$0xf]
        %v1371 = vld [vmem:[%s453 + $0x4c] sm:$0xf]
        %v1372 = vld [vmem:[%s453 + $0x50] sm:$0xf]
        %v1373 = vld [vmem:[%s453 + $0x54] sm:$0xf]
        %v1374 = vld [vmem:[%s453 + $0x58] sm:$0xf]
        %v1375 = vld [vmem:[%s453 + $0x5c] sm:$0xf]
        %v1376 = vld [vmem:[%s453 + $0x60] sm:$0xf]
        %v1377 = vld [vmem:[%s453 + $0x64] sm:$0xf]
        %v1378 = vld [vmem:[%s453 + $0x68] sm:$0xf]
        %v1379 = vld [vmem:[%s453 + $0x6c] sm:$0xf]
        %v1380 = vld [vmem:[%s453 + $0x70] sm:$0xf]
        %v1381 = vld [vmem:[%s453 + $0x74] sm:$0xf]
        %v1382 = vld [vmem:[%s453 + $0x78] sm:$0xf]
        %v1383 = vld [vmem:[%s453 + $0x7c] sm:$0xf]
        %v1384 = vld [vmem:[%s453 + $0x80] sm:$0xf]
        %v1385 = vld [vmem:[%s453 + $0x84] sm:$0xf]
        %v1386 = vld [vmem:[%s453 + $0x88] sm:$0xf]
        %v1387 = vld [vmem:[%s453 + $0x8c] sm:$0xf]
        %v1388 = vld [vmem:[%s453 + $0x90] sm:$0xf]
        %v1389 = vld [vmem:[%s453 + $0x94] sm:$0xf]
        %v1390 = vld [vmem:[%s453 + $0x98] sm:$0xf]
        %v1391 = vld [vmem:[%s453 + $0x9c] sm:$0xf]
        %v1392 = vld [vmem:[%s453 + $0xa0] sm:$0xf]
        %v1393 = vld [vmem:[%s453 + $0xa4] sm:$0xf]
        %v1394 = vld [vmem:[%s453 + $0xa8] sm:$0xf]
        %v1395 = vld [vmem:[%s453 + $0xac] sm:$0xf]
        %v1396 = vld [vmem:[%s453 + $0xb0] sm:$0xf]
        %v1397 = vld [vmem:[%s453 + $0xb4] sm:$0xf]
        %v1398 = vld [vmem:[%s453 + $0xb8] sm:$0xf]
        %v1399 = vld [vmem:[%s453 + $0xbc] sm:$0xf]
        %v1400 = vld [vmem:[%s453 + $0xc0] sm:$0xf]
        %v1401 = vld [vmem:[%s453 + $0xc4] sm:$0xf]
        %v1402 = vld [vmem:[%s453 + $0xc8] sm:$0xf]
        %v1403 = vld [vmem:[%s453 + $0xcc] sm:$0xf]
        %v1404 = vld [vmem:[%s453 + $0xd0] sm:$0xf]
        %v1405 = vld [vmem:[%s453 + $0xd4] sm:$0xf]
        %v1406 = vld [vmem:[%s453 + $0xd8] sm:$0xf]
        %v1407 = vld [vmem:[%s453 + $0xdc] sm:$0xf]
        %v1408 = vld [vmem:[%s453 + $0xe0] sm:$0xf]
        %v1409 = vld [vmem:[%s453 + $0xe4] sm:$0xf]
        %v1410 = vld [vmem:[%s453 + $0xe8] sm:$0xf]
        %v1411 = vld [vmem:[%s453 + $0xec] sm:$0xf]
        %v1412 = vld [vmem:[%s453 + $0xf0] sm:$0xf]
        %v1413 = vld [vmem:[%s453 + $0xf4] sm:$0xf]
        %v1414 = vld [vmem:[%s453 + $0xf8] sm:$0xf]
        %v1415 = vld [vmem:[%s453 + $0xfc] sm:$0xf]
        %v1416 = vld [vmem:[%s453 + $0x100] sm:$0xf]
        %v1417 = vld [vmem:[%s453 + $0x104] sm:$0xf]
        %v1418 = vld [vmem:[%s453 + $0x108] sm:$0xf]
        %v1419 = vld [vmem:[%s453 + $0x10c] sm:$0xf]
        %v1420 = vld [vmem:[%s453 + $0x110] sm:$0xf]
        %v1421 = vld [vmem:[%s453 + $0x114] sm:$0xf]
        %v1422 = vld [vmem:[%s453 + $0x118] sm:$0xf]
        %v1423 = vld [vmem:[%s453 + $0x11c] sm:$0xf]
        %v1424 = vld [vmem:[%s453 + $0x120] sm:$0xf]
        %v1425 = vld [vmem:[%s453 + $0x124] sm:$0xf]
        %v1426 = vld [vmem:[%s453 + $0x128] sm:$0xf]
        %v1427 = vld [vmem:[%s453 + $0x12c] sm:$0xf]
        %v1428 = vld [vmem:[%s453 + $0x130] sm:$0xf]
        %v1429 = vld [vmem:[%s453 + $0x134] sm:$0xf]
        %v1430 = vld [vmem:[%s453 + $0x138] sm:$0xf]
        %v1431 = vld [vmem:[%s453 + $0x13c] sm:$0xf]
        %v1432 = vld [vmem:[%s453 + $0x140] sm:$0xf]
        %v1433 = vld [vmem:[%s453 + $0x144] sm:$0xf]
        %v1434 = vld [vmem:[%s453 + $0x148] sm:$0xf]
        %v1435 = vld [vmem:[%s453 + $0x14c] sm:$0xf]
        %v1436 = vld [vmem:[%s453 + $0x150] sm:$0xf]
        %v1437 = vld [vmem:[%s453 + $0x154] sm:$0xf]
        %v1438 = vld [vmem:[%s453 + $0x158] sm:$0xf]
        %v1439 = vld [vmem:[%s453 + $0x15c] sm:$0xf]
        %v1440 = vld [vmem:[%s453 + $0x160] sm:$0xf]
        %v1441 = vld [vmem:[%s453 + $0x164] sm:$0xf]
        %v1442 = vld [vmem:[%s453 + $0x168] sm:$0xf]
        %v1443 = vld [vmem:[%s453 + $0x16c] sm:$0xf]
        %v1444 = vld [vmem:[%s453 + $0x170] sm:$0xf]
        %v1445 = vld [vmem:[%s453 + $0x174] sm:$0xf]
        %v1446 = vld [vmem:[%s453 + $0x178] sm:$0xf]
        %v1447 = vld [vmem:[%s453 + $0x17c] sm:$0xf]
        %v1448 = vld [vmem:[%s453 + $0x180] sm:$0xf]
        %v1449 = vld [vmem:[%s453 + $0x184] sm:$0xf]
        %v1450 = vld [vmem:[%s453 + $0x188] sm:$0xf]
        %v1451 = vld [vmem:[%s453 + $0x18c] sm:$0xf]
        %v1452 = vld [vmem:[%s453 + $0x190] sm:$0xf]
        %v1453 = vld [vmem:[%s453 + $0x194] sm:$0xf]
        %v1454 = vld [vmem:[%s453 + $0x198] sm:$0xf]
        %v1455 = vld [vmem:[%s453 + $0x19c] sm:$0xf]
        %v1456 = vld [vmem:[%s453 + $0x1a0] sm:$0xf]
        %v1457 = vld [vmem:[%s453 + $0x1a4] sm:$0xf]
        %v1458 = vld [vmem:[%s453 + $0x1a8] sm:$0xf]
        %v1459 = vld [vmem:[%s453 + $0x1ac] sm:$0xf]
        %v1460 = vld [vmem:[%s453 + $0x1b0] sm:$0xf]
        %v1461 = vld [vmem:[%s453 + $0x1b4] sm:$0xf]
        %v1462 = vld [vmem:[%s453 + $0x1b8] sm:$0xf]
        %v1463 = vld [vmem:[%s453 + $0x1bc] sm:$0xf]
        %v1464 = vld [vmem:[%s453 + $0x1c0] sm:$0xf]
        %v1465 = vld [vmem:[%s453 + $0x1c4] sm:$0xf]
        %v1466 = vld [vmem:[%s453 + $0x1c8] sm:$0xf]
        %v1467 = vld [vmem:[%s453 + $0x1cc] sm:$0xf]
        %v1468 = vld [vmem:[%s453 + $0x1d0] sm:$0xf]
        %v1469 = vld [vmem:[%s453 + $0x1d4] sm:$0xf]
        %v1470 = vld [vmem:[%s453 + $0x1d8] sm:$0xf]
        %v1471 = vld [vmem:[%s453 + $0x1dc] sm:$0xf]
        %v1472 = vld [vmem:[%s453 + $0x1e0] sm:$0xf]
        %v1473 = vld [vmem:[%s453 + $0x1e4] sm:$0xf]
        %v1474 = vld [vmem:[%s453 + $0x1e8] sm:$0xf]
        %v1475 = vld [vmem:[%s453 + $0x1ec] sm:$0xf]
        %v1476 = vld [vmem:[%s453 + $0x1f0] sm:$0xf]
        %v1477 = vld [vmem:[%s453 + $0x1f4] sm:$0xf]
        %v1478 = vld [vmem:[%s453 + $0x1f8] sm:$0xf]
        %v1479 = vld [vmem:[%s453 + $0x1fc] sm:$0xf]
        %v1480 = vunpack.c.l.bf16 %v1352
        %v1481 = vunpack.c.l.bf16 %v1353
        %v1482 = vunpack.c.l.bf16 %v1354
        %v1483 = vunpack.c.l.bf16 %v1355
        %v1484 = vunpack.c.l.bf16 %v1356
        %v1485 = vunpack.c.l.bf16 %v1357
        %v1486 = vunpack.c.l.bf16 %v1358
        %v1487 = vunpack.c.l.bf16 %v1359
        %v1488 = vunpack.c.l.bf16 %v1360
        %v1489 = vunpack.c.l.bf16 %v1361
        %v1490 = vunpack.c.l.bf16 %v1362
        %v1491 = vunpack.c.l.bf16 %v1363
        %v1492 = vunpack.c.l.bf16 %v1364
        %v1493 = vunpack.c.l.bf16 %v1365
        %v1494 = vunpack.c.l.bf16 %v1366
        %v1495 = vunpack.c.l.bf16 %v1367
        %v1496 = vunpack.c.l.bf16 %v1368
        %v1497 = vunpack.c.l.bf16 %v1369
        %v1498 = vunpack.c.l.bf16 %v1370
        %v1499 = vunpack.c.l.bf16 %v1371
        %v1500 = vunpack.c.l.bf16 %v1372
        %v1501 = vunpack.c.l.bf16 %v1373
        %v1502 = vunpack.c.l.bf16 %v1374
        %v1503 = vunpack.c.l.bf16 %v1375
        %v1504 = vunpack.c.l.bf16 %v1376
        %v1505 = vunpack.c.l.bf16 %v1377
        %v1506 = vunpack.c.l.bf16 %v1378
        %v1507 = vunpack.c.l.bf16 %v1379
        %v1508 = vunpack.c.l.bf16 %v1380
        %v1509 = vunpack.c.l.bf16 %v1381
        %v1510 = vunpack.c.l.bf16 %v1382
        %v1511 = vunpack.c.l.bf16 %v1383
        %v1512 = vunpack.c.l.bf16 %v1384
        %v1513 = vunpack.c.l.bf16 %v1385
        %v1514 = vunpack.c.l.bf16 %v1386
        %v1515 = vunpack.c.l.bf16 %v1387
        %v1516 = vunpack.c.l.bf16 %v1388
        %v1517 = vunpack.c.l.bf16 %v1389
        %v1518 = vunpack.c.l.bf16 %v1390
        %v1519 = vunpack.c.l.bf16 %v1391
        %v1520 = vunpack.c.l.bf16 %v1392
        %v1521 = vunpack.c.l.bf16 %v1393
        %v1522 = vunpack.c.l.bf16 %v1394
        %v1523 = vunpack.c.l.bf16 %v1395
        %v1524 = vunpack.c.l.bf16 %v1396
        %v1525 = vunpack.c.l.bf16 %v1397
        %v1526 = vunpack.c.l.bf16 %v1398
        %v1527 = vunpack.c.l.bf16 %v1399
        %v1528 = vunpack.c.l.bf16 %v1400
        %v1529 = vunpack.c.l.bf16 %v1401
        %v1530 = vunpack.c.l.bf16 %v1402
        %v1531 = vunpack.c.l.bf16 %v1403
        %v1532 = vunpack.c.l.bf16 %v1404
        %v1533 = vunpack.c.l.bf16 %v1405
        %v1534 = vunpack.c.l.bf16 %v1406
        %v1535 = vunpack.c.l.bf16 %v1407
        %v1536 = vunpack.c.l.bf16 %v1408
        %v1537 = vunpack.c.l.bf16 %v1409
        %v1538 = vunpack.c.l.bf16 %v1410
        %v1539 = vunpack.c.l.bf16 %v1411
        %v1540 = vunpack.c.l.bf16 %v1412
        %v1541 = vunpack.c.l.bf16 %v1413
        %v1542 = vunpack.c.l.bf16 %v1414
        %v1543 = vunpack.c.l.bf16 %v1415
        %v1544 = vunpack.c.l.bf16 %v1416
        %v1545 = vunpack.c.l.bf16 %v1417
        %v1546 = vunpack.c.l.bf16 %v1418
        %v1547 = vunpack.c.l.bf16 %v1419
        %v1548 = vunpack.c.l.bf16 %v1420
        %v1549 = vunpack.c.l.bf16 %v1421
        %v1550 = vunpack.c.l.bf16 %v1422
        %v1551 = vunpack.c.l.bf16 %v1423
        %v1552 = vunpack.c.l.bf16 %v1424
        %v1553 = vunpack.c.l.bf16 %v1425
        %v1554 = vunpack.c.l.bf16 %v1426
        %v1555 = vunpack.c.l.bf16 %v1427
        %v1556 = vunpack.c.l.bf16 %v1428
        %v1557 = vunpack.c.l.bf16 %v1429
        %v1558 = vunpack.c.l.bf16 %v1430
        %v1559 = vunpack.c.l.bf16 %v1431
        %v1560 = vunpack.c.l.bf16 %v1432
        %v1561 = vunpack.c.l.bf16 %v1433
        %v1562 = vunpack.c.l.bf16 %v1434
        %v1563 = vunpack.c.l.bf16 %v1435
        %v1564 = vunpack.c.l.bf16 %v1436
        %v1565 = vunpack.c.l.bf16 %v1437
        %v1566 = vunpack.c.l.bf16 %v1438
        %v1567 = vunpack.c.l.bf16 %v1439
        %v1568 = vunpack.c.l.bf16 %v1440
        %v1569 = vunpack.c.l.bf16 %v1441
        %v1570 = vunpack.c.l.bf16 %v1442
        %v1571 = vunpack.c.l.bf16 %v1443
        %v1572 = vunpack.c.l.bf16 %v1444
        %v1573 = vunpack.c.l.bf16 %v1445
        %v1574 = vunpack.c.l.bf16 %v1446
        %v1575 = vunpack.c.l.bf16 %v1447
        %v1576 = vunpack.c.l.bf16 %v1448
        %v1577 = vunpack.c.l.bf16 %v1449
        %v1578 = vunpack.c.l.bf16 %v1450
        %v1579 = vunpack.c.l.bf16 %v1451
        %v1580 = vunpack.c.l.bf16 %v1452
        %v1581 = vunpack.c.l.bf16 %v1453
        %v1582 = vunpack.c.l.bf16 %v1454
        %v1583 = vunpack.c.l.bf16 %v1455
        %v1584 = vunpack.c.l.bf16 %v1456
        %v1585 = vunpack.c.l.bf16 %v1457
        %v1586 = vunpack.c.l.bf16 %v1458
        %v1587 = vunpack.c.l.bf16 %v1459
        %v1588 = vunpack.c.l.bf16 %v1460
        %v1589 = vunpack.c.l.bf16 %v1461
        %v1590 = vunpack.c.l.bf16 %v1462
        %v1591 = vunpack.c.l.bf16 %v1463
        %v1592 = vunpack.c.l.bf16 %v1464
        %v1593 = vunpack.c.l.bf16 %v1465
        %v1594 = vunpack.c.l.bf16 %v1466
        %v1595 = vunpack.c.l.bf16 %v1467
        %v1596 = vunpack.c.l.bf16 %v1468
        %v1597 = vunpack.c.l.bf16 %v1469
        %v1598 = vunpack.c.l.bf16 %v1470
        %v1599 = vunpack.c.l.bf16 %v1471
        %v1600 = vunpack.c.l.bf16 %v1472
        %v1601 = vunpack.c.l.bf16 %v1473
        %v1602 = vunpack.c.l.bf16 %v1474
        %v1603 = vunpack.c.l.bf16 %v1475
        %v1604 = vunpack.c.l.bf16 %v1476
        %v1605 = vunpack.c.l.bf16 %v1477
        %v1606 = vunpack.c.l.bf16 %v1478
        %v1607 = vunpack.c.l.bf16 %v1479
        %v1608 = vmul.f32 %v1224, %v1480
        %v1609 = vmul.f32 %v1225, %v1481
        %v1610 = vmul.f32 %v1226, %v1482
        %v1611 = vmul.f32 %v1227, %v1483
        %v1612 = vmul.f32 %v1228, %v1484
        %v1613 = vmul.f32 %v1229, %v1485
        %v1614 = vmul.f32 %v1230, %v1486
        %v1615 = vmul.f32 %v1231, %v1487
        %v1616 = vmul.f32 %v1232, %v1488
        %v1617 = vmul.f32 %v1233, %v1489
        %v1618 = vmul.f32 %v1234, %v1490
        %v1619 = vmul.f32 %v1235, %v1491
        %v1620 = vmul.f32 %v1236, %v1492
        %v1621 = vmul.f32 %v1237, %v1493
        %v1622 = vmul.f32 %v1238, %v1494
        %v1623 = vmul.f32 %v1239, %v1495
        %v1624 = vmul.f32 %v1240, %v1496
        %v1625 = vmul.f32 %v1241, %v1497
        %v1626 = vmul.f32 %v1242, %v1498
        %v1627 = vmul.f32 %v1243, %v1499
        %v1628 = vmul.f32 %v1244, %v1500
        %v1629 = vmul.f32 %v1245, %v1501
        %v1630 = vmul.f32 %v1246, %v1502
        %v1631 = vmul.f32 %v1247, %v1503
        %v1632 = vmul.f32 %v1248, %v1504
        %v1633 = vmul.f32 %v1249, %v1505
        %v1634 = vmul.f32 %v1250, %v1506
        %v1635 = vmul.f32 %v1251, %v1507
        %v1636 = vmul.f32 %v1252, %v1508
        %v1637 = vmul.f32 %v1253, %v1509
        %v1638 = vmul.f32 %v1254, %v1510
        %v1639 = vmul.f32 %v1255, %v1511
        %v1640 = vmul.f32 %v1256, %v1512
        %v1641 = vmul.f32 %v1257, %v1513
        %v1642 = vmul.f32 %v1258, %v1514
        %v1643 = vmul.f32 %v1259, %v1515
        %v1644 = vmul.f32 %v1260, %v1516
        %v1645 = vmul.f32 %v1261, %v1517
        %v1646 = vmul.f32 %v1262, %v1518
        %v1647 = vmul.f32 %v1263, %v1519
        %v1648 = vmul.f32 %v1264, %v1520
        %v1649 = vmul.f32 %v1265, %v1521
        %v1650 = vmul.f32 %v1266, %v1522
        %v1651 = vmul.f32 %v1267, %v1523
        %v1652 = vmul.f32 %v1268, %v1524
        %v1653 = vmul.f32 %v1269, %v1525
        %v1654 = vmul.f32 %v1270, %v1526
        %v1655 = vmul.f32 %v1271, %v1527
        %v1656 = vmul.f32 %v1272, %v1528
        %v1657 = vmul.f32 %v1273, %v1529
        %v1658 = vmul.f32 %v1274, %v1530
        %v1659 = vmul.f32 %v1275, %v1531
        %v1660 = vmul.f32 %v1276, %v1532
        %v1661 = vmul.f32 %v1277, %v1533
        %v1662 = vmul.f32 %v1278, %v1534
        %v1663 = vmul.f32 %v1279, %v1535
        %v1664 = vmul.f32 %v1280, %v1536
        %v1665 = vmul.f32 %v1281, %v1537
        %v1666 = vmul.f32 %v1282, %v1538
        %v1667 = vmul.f32 %v1283, %v1539
        %v1668 = vmul.f32 %v1284, %v1540
        %v1669 = vmul.f32 %v1285, %v1541
        %v1670 = vmul.f32 %v1286, %v1542
        %v1671 = vmul.f32 %v1287, %v1543
        %v1672 = vmul.f32 %v1288, %v1544
        %v1673 = vmul.f32 %v1289, %v1545
        %v1674 = vmul.f32 %v1290, %v1546
        %v1675 = vmul.f32 %v1291, %v1547
        %v1676 = vmul.f32 %v1292, %v1548
        %v1677 = vmul.f32 %v1293, %v1549
        %v1678 = vmul.f32 %v1294, %v1550
        %v1679 = vmul.f32 %v1295, %v1551
        %v1680 = vmul.f32 %v1296, %v1552
        %v1681 = vmul.f32 %v1297, %v1553
        %v1682 = vmul.f32 %v1298, %v1554
        %v1683 = vmul.f32 %v1299, %v1555
        %v1684 = vmul.f32 %v1300, %v1556
        %v1685 = vmul.f32 %v1301, %v1557
        %v1686 = vmul.f32 %v1302, %v1558
        %v1687 = vmul.f32 %v1303, %v1559
        %v1688 = vmul.f32 %v1304, %v1560
        %v1689 = vmul.f32 %v1305, %v1561
        %v1690 = vmul.f32 %v1306, %v1562
        %v1691 = vmul.f32 %v1307, %v1563
        %v1692 = vmul.f32 %v1308, %v1564
        %v1693 = vmul.f32 %v1309, %v1565
        %v1694 = vmul.f32 %v1310, %v1566
        %v1695 = vmul.f32 %v1311, %v1567
        %v1696 = vmul.f32 %v1312, %v1568
        %v1697 = vmul.f32 %v1313, %v1569
        %v1698 = vmul.f32 %v1314, %v1570
        %v1699 = vmul.f32 %v1315, %v1571
        %v1700 = vmul.f32 %v1316, %v1572
        %v1701 = vmul.f32 %v1317, %v1573
        %v1702 = vmul.f32 %v1318, %v1574
        %v1703 = vmul.f32 %v1319, %v1575
        %v1704 = vmul.f32 %v1320, %v1576
        %v1705 = vmul.f32 %v1321, %v1577
        %v1706 = vmul.f32 %v1322, %v1578
        %v1707 = vmul.f32 %v1323, %v1579
        %v1708 = vmul.f32 %v1324, %v1580
        %v1709 = vmul.f32 %v1325, %v1581
        %v1710 = vmul.f32 %v1326, %v1582
        %v1711 = vmul.f32 %v1327, %v1583
        %v1712 = vmul.f32 %v1328, %v1584
        %v1713 = vmul.f32 %v1329, %v1585
        %v1714 = vmul.f32 %v1330, %v1586
        %v1715 = vmul.f32 %v1331, %v1587
        %v1716 = vmul.f32 %v1332, %v1588
        %v1717 = vmul.f32 %v1333, %v1589
        %v1718 = vmul.f32 %v1334, %v1590
        %v1719 = vmul.f32 %v1335, %v1591
        %v1720 = vmul.f32 %v1336, %v1592
        %v1721 = vmul.f32 %v1337, %v1593
        %v1722 = vmul.f32 %v1338, %v1594
        %v1723 = vmul.f32 %v1339, %v1595
        %v1724 = vmul.f32 %v1340, %v1596
        %v1725 = vmul.f32 %v1341, %v1597
        %v1726 = vmul.f32 %v1342, %v1598
        %v1727 = vmul.f32 %v1343, %v1599
        %v1728 = vmul.f32 %v1344, %v1600
        %v1729 = vmul.f32 %v1345, %v1601
        %v1730 = vmul.f32 %v1346, %v1602
        %v1731 = vmul.f32 %v1347, %v1603
        %v1732 = vmul.f32 %v1348, %v1604
        %v1733 = vmul.f32 %v1349, %v1605
        %v1734 = vmul.f32 %v1350, %v1606
        %v1735 = vmul.f32 %v1351, %v1607
        %v1736 = vld [vmem:[%s4] sm:$0xff]
        %v1737 = vld [vmem:[%s4 + $0x8] sm:$0xff]
        %v1738 = vld [vmem:[%s5] sm:$0xff]
        %v1739 = vld [vmem:[%s5 + $0x8] sm:$0xff]
        %vm1740 = vcmask 130048
        %v1742 = vsel %vm1740, %v1608, 0
        %v1745 = vsel %vm1740, %v1609, 0
        %v1748 = vsel %vm1740, %v1610, 0
        %v1751 = vsel %vm1740, %v1611, 0
        %v1754 = vsel %vm1740, %v1612, 0
        %v1757 = vsel %vm1740, %v1613, 0
        %v1760 = vsel %vm1740, %v1614, 0
        %v1763 = vsel %vm1740, %v1615, 0
        %v1766 = vsel %vm1740, %v1616, 0
        %v1769 = vsel %vm1740, %v1617, 0
        %v1772 = vsel %vm1740, %v1618, 0
        %v1775 = vsel %vm1740, %v1619, 0
        %v1778 = vsel %vm1740, %v1620, 0
        %v1781 = vsel %vm1740, %v1621, 0
        %v1784 = vsel %vm1740, %v1622, 0
        %v1787 = vsel %vm1740, %v1623, 0
        %v1790 = vsel %vm1740, %v1624, 0
        %v1793 = vsel %vm1740, %v1625, 0
        %v1796 = vsel %vm1740, %v1626, 0
        %v1799 = vsel %vm1740, %v1627, 0
        %v1802 = vsel %vm1740, %v1628, 0
        %v1805 = vsel %vm1740, %v1629, 0
        %v1808 = vsel %vm1740, %v1630, 0
        %v1811 = vsel %vm1740, %v1631, 0
        %v1814 = vsel %vm1740, %v1632, 0
        %v1817 = vsel %vm1740, %v1633, 0
        %v1820 = vsel %vm1740, %v1634, 0
        %v1823 = vsel %vm1740, %v1635, 0
        %v1826 = vsel %vm1740, %v1636, 0
        %v1829 = vsel %vm1740, %v1637, 0
        %v1832 = vsel %vm1740, %v1638, 0
        %v1835 = vsel %vm1740, %v1639, 0
        %v1838 = vsel %vm1740, %v1640, 0
        %v1841 = vsel %vm1740, %v1641, 0
        %v1844 = vsel %vm1740, %v1642, 0
        %v1847 = vsel %vm1740, %v1643, 0
        %v1850 = vsel %vm1740, %v1644, 0
        %v1853 = vsel %vm1740, %v1645, 0
        %v1856 = vsel %vm1740, %v1646, 0
        %v1859 = vsel %vm1740, %v1647, 0
        %v1862 = vsel %vm1740, %v1648, 0
        %v1865 = vsel %vm1740, %v1649, 0
        %v1868 = vsel %vm1740, %v1650, 0
        %v1871 = vsel %vm1740, %v1651, 0
        %v1874 = vsel %vm1740, %v1652, 0
        %v1877 = vsel %vm1740, %v1653, 0
        %v1880 = vsel %vm1740, %v1654, 0
        %v1883 = vsel %vm1740, %v1655, 0
        %v1886 = vsel %vm1740, %v1656, 0
        %v1889 = vsel %vm1740, %v1657, 0
        %v1892 = vsel %vm1740, %v1658, 0
        %v1895 = vsel %vm1740, %v1659, 0
        %v1898 = vsel %vm1740, %v1660, 0
        %v1901 = vsel %vm1740, %v1661, 0
        %v1904 = vsel %vm1740, %v1662, 0
        %v1907 = vsel %vm1740, %v1663, 0
        %v1910 = vsel %vm1740, %v1664, 0
        %v1913 = vsel %vm1740, %v1665, 0
        %v1916 = vsel %vm1740, %v1666, 0
        %v1919 = vsel %vm1740, %v1667, 0
        %v1922 = vsel %vm1740, %v1668, 0
        %v1925 = vsel %vm1740, %v1669, 0
        %v1928 = vsel %vm1740, %v1670, 0
        %v1931 = vsel %vm1740, %v1671, 0
        %v1934 = vsel %vm1740, %v1672, 0
        %v1937 = vsel %vm1740, %v1673, 0
        %v1940 = vsel %vm1740, %v1674, 0
        %v1943 = vsel %vm1740, %v1675, 0
        %v1946 = vsel %vm1740, %v1676, 0
        %v1949 = vsel %vm1740, %v1677, 0
        %v1952 = vsel %vm1740, %v1678, 0
        %v1955 = vsel %vm1740, %v1679, 0
        %v1958 = vsel %vm1740, %v1680, 0
        %v1961 = vsel %vm1740, %v1681, 0
        %v1964 = vsel %vm1740, %v1682, 0
        %v1967 = vsel %vm1740, %v1683, 0
        %v1970 = vsel %vm1740, %v1684, 0
        %v1973 = vsel %vm1740, %v1685, 0
        %v1976 = vsel %vm1740, %v1686, 0
        %v1979 = vsel %vm1740, %v1687, 0
        %v1982 = vsel %vm1740, %v1688, 0
        %v1985 = vsel %vm1740, %v1689, 0
        %v1988 = vsel %vm1740, %v1690, 0
        %v1991 = vsel %vm1740, %v1691, 0
        %v1994 = vsel %vm1740, %v1692, 0
        %v1997 = vsel %vm1740, %v1693, 0
        %v2000 = vsel %vm1740, %v1694, 0
        %v2003 = vsel %vm1740, %v1695, 0
        %v2006 = vsel %vm1740, %v1696, 0
        %v2009 = vsel %vm1740, %v1697, 0
        %v2012 = vsel %vm1740, %v1698, 0
        %v2015 = vsel %vm1740, %v1699, 0
        %v2018 = vsel %vm1740, %v1700, 0
        %v2021 = vsel %vm1740, %v1701, 0
        %v2024 = vsel %vm1740, %v1702, 0
        %v2027 = vsel %vm1740, %v1703, 0
        %v2030 = vsel %vm1740, %v1704, 0
        %v2033 = vsel %vm1740, %v1705, 0
        %v2036 = vsel %vm1740, %v1706, 0
        %v2039 = vsel %vm1740, %v1707, 0
        %v2042 = vsel %vm1740, %v1708, 0
        %v2045 = vsel %vm1740, %v1709, 0
        %v2048 = vsel %vm1740, %v1710, 0
        %v2051 = vsel %vm1740, %v1711, 0
        %v2054 = vsel %vm1740, %v1712, 0
        %v2057 = vsel %vm1740, %v1713, 0
        %v2060 = vsel %vm1740, %v1714, 0
        %v2063 = vsel %vm1740, %v1715, 0
        %v2066 = vsel %vm1740, %v1716, 0
        %v2069 = vsel %vm1740, %v1717, 0
        %v2072 = vsel %vm1740, %v1718, 0
        %v2075 = vsel %vm1740, %v1719, 0
        %v2078 = vsel %vm1740, %v1720, 0
        %v2081 = vsel %vm1740, %v1721, 0
        %v2084 = vsel %vm1740, %v1722, 0
        %v2087 = vsel %vm1740, %v1723, 0
        %v2090 = vsel %vm1740, %v1724, 0
        %v2093 = vsel %vm1740, %v1725, 0
        %v2096 = vsel %vm1740, %v1726, 0
        %v2099 = vsel %vm1740, %v1727, 0
        %v2102 = vsel %vm1740, %v1728, 0
        %v2105 = vsel %vm1740, %v1729, 0
        %v2108 = vsel %vm1740, %v1730, 0
        %v2111 = vsel %vm1740, %v1731, 0
        %v2114 = vsel %vm1740, %v1732, 0
        %v2117 = vsel %vm1740, %v1733, 0
        %v2120 = vsel %vm1740, %v1734, 0
        %v2123 = vsel %vm1740, %v1735, 0
        %2125 = vmatpush.msra.mxu0 0.0
        %2126 = vmatpush.msra.mxu0 0.0
        %2127 = vmatpush.msra.mxu0 0.0
        %2128 = vmatpush.msra.mxu0 0.0
        %2129 = vmatpush.msra.mxu0 0.0
        %2130 = vmatpush.msra.mxu0 0.0
        %2131 = vmatpush.msra.mxu0 0.0
        %2132 = vmatpush.msra.mxu0 0.0
        %2133 = vmatpush.msra.mxu0 0.0
        %2134 = vmatpush.msra.mxu0 0.0
        %2135 = vmatpush.msra.mxu0 0.0
        %2136 = vmatpush.msra.mxu0 0.0
        %2137 = vmatpush.msra.mxu0 0.0
        %2138 = vmatpush.msra.mxu0 0.0
        %2139 = vmatpush.msra.mxu0 %v1739
        %2140 = vmatpush.msra.mxu0 %v1738
        %2141 = vmatmul.f32.gmra.mxu0 %v1742
        %v2142 = vpop.f32.mrf.mxu0
        %v2143 = vadd.f32 0.0, %v2142
        %2144 = vmatmul.f32.gmra.mxu0 %v1745
        %v2145 = vpop.f32.mrf.mxu0
        %v2146 = vadd.f32 0.0, %v2145
        %2147 = vmatmul.f32.gmra.mxu0 %v1748
        %v2148 = vpop.f32.mrf.mxu0
        %v2149 = vadd.f32 0.0, %v2148
        %2150 = vmatmul.f32.gmra.mxu0 %v1751
        %v2151 = vpop.f32.mrf.mxu0
        %v2152 = vadd.f32 0.0, %v2151
        %2153 = vmatmul.f32.gmra.mxu0 %v1754
        %v2154 = vpop.f32.mrf.mxu0
        %v2155 = vadd.f32 0.0, %v2154
        %2156 = vmatmul.f32.gmra.mxu0 %v1757
        %v2157 = vpop.f32.mrf.mxu0
        %v2158 = vadd.f32 0.0, %v2157
        %2159 = vmatmul.f32.gmra.mxu0 %v1760
        %v2160 = vpop.f32.mrf.mxu0
        %v2161 = vadd.f32 0.0, %v2160
        %2162 = vmatmul.f32.gmra.mxu0 %v1763
        %v2163 = vpop.f32.mrf.mxu0
        %v2164 = vadd.f32 0.0, %v2163
        %2165 = vmatmul.f32.gmra.mxu0 %v1766
        %v2166 = vpop.f32.mrf.mxu0
        %v2167 = vadd.f32 0.0, %v2166
        %2168 = vmatmul.f32.gmra.mxu0 %v1769
        %v2169 = vpop.f32.mrf.mxu0
        %v2170 = vadd.f32 0.0, %v2169
        %2171 = vmatmul.f32.gmra.mxu0 %v1772
        %v2172 = vpop.f32.mrf.mxu0
        %v2173 = vadd.f32 0.0, %v2172
        %2174 = vmatmul.f32.gmra.mxu0 %v1775
        %v2175 = vpop.f32.mrf.mxu0
        %v2176 = vadd.f32 0.0, %v2175
        %2177 = vmatmul.f32.gmra.mxu0 %v1778
        %v2178 = vpop.f32.mrf.mxu0
        %v2179 = vadd.f32 0.0, %v2178
        %2180 = vmatmul.f32.gmra.mxu0 %v1781
        %v2181 = vpop.f32.mrf.mxu0
        %v2182 = vadd.f32 0.0, %v2181
        %2183 = vmatmul.f32.gmra.mxu0 %v1784
        %v2184 = vpop.f32.mrf.mxu0
        %v2185 = vadd.f32 0.0, %v2184
        %2186 = vmatmul.f32.gmra.mxu0 %v1787
        %v2187 = vpop.f32.mrf.mxu0
        %v2188 = vadd.f32 0.0, %v2187
        %2189 = vmatmul.f32.gmra.mxu0 %v1790
        %v2190 = vpop.f32.mrf.mxu0
        %v2191 = vadd.f32 0.0, %v2190
        %2192 = vmatmul.f32.gmra.mxu0 %v1793
        %v2193 = vpop.f32.mrf.mxu0
        %v2194 = vadd.f32 0.0, %v2193
        %2195 = vmatmul.f32.gmra.mxu0 %v1796
        %v2196 = vpop.f32.mrf.mxu0
        %v2197 = vadd.f32 0.0, %v2196
        %2198 = vmatmul.f32.gmra.mxu0 %v1799
        %v2199 = vpop.f32.mrf.mxu0
        %v2200 = vadd.f32 0.0, %v2199
        %2201 = vmatmul.f32.gmra.mxu0 %v1802
        %v2202 = vpop.f32.mrf.mxu0
        %v2203 = vadd.f32 0.0, %v2202
        %2204 = vmatmul.f32.gmra.mxu0 %v1805
        %v2205 = vpop.f32.mrf.mxu0
        %v2206 = vadd.f32 0.0, %v2205
        %2207 = vmatmul.f32.gmra.mxu0 %v1808
        %v2208 = vpop.f32.mrf.mxu0
        %v2209 = vadd.f32 0.0, %v2208
        %2210 = vmatmul.f32.gmra.mxu0 %v1811
        %v2211 = vpop.f32.mrf.mxu0
        %v2212 = vadd.f32 0.0, %v2211
        %2213 = vmatmul.f32.gmra.mxu0 %v1814
        %v2214 = vpop.f32.mrf.mxu0
        %v2215 = vadd.f32 0.0, %v2214
        %2216 = vmatmul.f32.gmra.mxu0 %v1817
        %v2217 = vpop.f32.mrf.mxu0
        %v2218 = vadd.f32 0.0, %v2217
        %2219 = vmatmul.f32.gmra.mxu0 %v1820
        %v2220 = vpop.f32.mrf.mxu0
        %v2221 = vadd.f32 0.0, %v2220
        %2222 = vmatmul.f32.gmra.mxu0 %v1823
        %v2223 = vpop.f32.mrf.mxu0
        %v2224 = vadd.f32 0.0, %v2223
        %2225 = vmatmul.f32.gmra.mxu0 %v1826
        %v2226 = vpop.f32.mrf.mxu0
        %v2227 = vadd.f32 0.0, %v2226
        %2228 = vmatmul.f32.gmra.mxu0 %v1829
        %v2229 = vpop.f32.mrf.mxu0
        %v2230 = vadd.f32 0.0, %v2229
        %2231 = vmatmul.f32.gmra.mxu0 %v1832
        %v2232 = vpop.f32.mrf.mxu0
        %v2233 = vadd.f32 0.0, %v2232
        %2234 = vmatmul.f32.gmra.mxu0 %v1835
        %v2235 = vpop.f32.mrf.mxu0
        %v2236 = vadd.f32 0.0, %v2235
        %2237 = vmatmul.f32.gmra.mxu0 %v1838
        %v2238 = vpop.f32.mrf.mxu0
        %v2239 = vadd.f32 0.0, %v2238
        %2240 = vmatmul.f32.gmra.mxu0 %v1841
        %v2241 = vpop.f32.mrf.mxu0
        %v2242 = vadd.f32 0.0, %v2241
        %2243 = vmatmul.f32.gmra.mxu0 %v1844
        %v2244 = vpop.f32.mrf.mxu0
        %v2245 = vadd.f32 0.0, %v2244
        %2246 = vmatmul.f32.gmra.mxu0 %v1847
        %v2247 = vpop.f32.mrf.mxu0
        %v2248 = vadd.f32 0.0, %v2247
        %2249 = vmatmul.f32.gmra.mxu0 %v1850
        %v2250 = vpop.f32.mrf.mxu0
        %v2251 = vadd.f32 0.0, %v2250
        %2252 = vmatmul.f32.gmra.mxu0 %v1853
        %v2253 = vpop.f32.mrf.mxu0
        %v2254 = vadd.f32 0.0, %v2253
        %2255 = vmatmul.f32.gmra.mxu0 %v1856
        %v2256 = vpop.f32.mrf.mxu0
        %v2257 = vadd.f32 0.0, %v2256
        %2258 = vmatmul.f32.gmra.mxu0 %v1859
        %v2259 = vpop.f32.mrf.mxu0
        %v2260 = vadd.f32 0.0, %v2259
        %2261 = vmatmul.f32.gmra.mxu0 %v1862
        %v2262 = vpop.f32.mrf.mxu0
        %v2263 = vadd.f32 0.0, %v2262
        %2264 = vmatmul.f32.gmra.mxu0 %v1865
        %v2265 = vpop.f32.mrf.mxu0
        %v2266 = vadd.f32 0.0, %v2265
        %2267 = vmatmul.f32.gmra.mxu0 %v1868
        %v2268 = vpop.f32.mrf.mxu0
        %v2269 = vadd.f32 0.0, %v2268
        %2270 = vmatmul.f32.gmra.mxu0 %v1871
        %v2271 = vpop.f32.mrf.mxu0
        %v2272 = vadd.f32 0.0, %v2271
        %2273 = vmatmul.f32.gmra.mxu0 %v1874
        %v2274 = vpop.f32.mrf.mxu0
        %v2275 = vadd.f32 0.0, %v2274
        %2276 = vmatmul.f32.gmra.mxu0 %v1877
        %v2277 = vpop.f32.mrf.mxu0
        %v2278 = vadd.f32 0.0, %v2277
        %2279 = vmatmul.f32.gmra.mxu0 %v1880
        %v2280 = vpop.f32.mrf.mxu0
        %v2281 = vadd.f32 0.0, %v2280
        %2282 = vmatmul.f32.gmra.mxu0 %v1883
        %v2283 = vpop.f32.mrf.mxu0
        %v2284 = vadd.f32 0.0, %v2283
        %2285 = vmatmul.f32.gmra.mxu0 %v1886
        %v2286 = vpop.f32.mrf.mxu0
        %v2287 = vadd.f32 0.0, %v2286
        %2288 = vmatmul.f32.gmra.mxu0 %v1889
        %v2289 = vpop.f32.mrf.mxu0
        %v2290 = vadd.f32 0.0, %v2289
        %2291 = vmatmul.f32.gmra.mxu0 %v1892
        %v2292 = vpop.f32.mrf.mxu0
        %v2293 = vadd.f32 0.0, %v2292
        %2294 = vmatmul.f32.gmra.mxu0 %v1895
        %v2295 = vpop.f32.mrf.mxu0
        %v2296 = vadd.f32 0.0, %v2295
        %2297 = vmatmul.f32.gmra.mxu0 %v1898
        %v2298 = vpop.f32.mrf.mxu0
        %v2299 = vadd.f32 0.0, %v2298
        %2300 = vmatmul.f32.gmra.mxu0 %v1901
        %v2301 = vpop.f32.mrf.mxu0
        %v2302 = vadd.f32 0.0, %v2301
        %2303 = vmatmul.f32.gmra.mxu0 %v1904
        %v2304 = vpop.f32.mrf.mxu0
        %v2305 = vadd.f32 0.0, %v2304
        %2306 = vmatmul.f32.gmra.mxu0 %v1907
        %v2307 = vpop.f32.mrf.mxu0
        %v2308 = vadd.f32 0.0, %v2307
        %2309 = vmatmul.f32.gmra.mxu0 %v1910
        %v2310 = vpop.f32.mrf.mxu0
        %v2311 = vadd.f32 0.0, %v2310
        %2312 = vmatmul.f32.gmra.mxu0 %v1913
        %v2313 = vpop.f32.mrf.mxu0
        %v2314 = vadd.f32 0.0, %v2313
        %2315 = vmatmul.f32.gmra.mxu0 %v1916
        %v2316 = vpop.f32.mrf.mxu0
        %v2317 = vadd.f32 0.0, %v2316
        %2318 = vmatmul.f32.gmra.mxu0 %v1919
        %v2319 = vpop.f32.mrf.mxu0
        %v2320 = vadd.f32 0.0, %v2319
        %2321 = vmatmul.f32.gmra.mxu0 %v1922
        %v2322 = vpop.f32.mrf.mxu0
        %v2323 = vadd.f32 0.0, %v2322
        %2324 = vmatmul.f32.gmra.mxu0 %v1925
        %v2325 = vpop.f32.mrf.mxu0
        %v2326 = vadd.f32 0.0, %v2325
        %2327 = vmatmul.f32.gmra.mxu0 %v1928
        %v2328 = vpop.f32.mrf.mxu0
        %v2329 = vadd.f32 0.0, %v2328
        %2330 = vmatmul.f32.gmra.mxu0 %v1931
        %v2331 = vpop.f32.mrf.mxu0
        %v2332 = vadd.f32 0.0, %v2331
        %2333 = vmatmul.f32.gmra.mxu0 %v1934
        %v2334 = vpop.f32.mrf.mxu0
        %v2335 = vadd.f32 0.0, %v2334
        %2336 = vmatmul.f32.gmra.mxu0 %v1937
        %v2337 = vpop.f32.mrf.mxu0
        %v2338 = vadd.f32 0.0, %v2337
        %2339 = vmatmul.f32.gmra.mxu0 %v1940
        %v2340 = vpop.f32.mrf.mxu0
        %v2341 = vadd.f32 0.0, %v2340
        %2342 = vmatmul.f32.gmra.mxu0 %v1943
        %v2343 = vpop.f32.mrf.mxu0
        %v2344 = vadd.f32 0.0, %v2343
        %2345 = vmatmul.f32.gmra.mxu0 %v1946
        %v2346 = vpop.f32.mrf.mxu0
        %v2347 = vadd.f32 0.0, %v2346
        %2348 = vmatmul.f32.gmra.mxu0 %v1949
        %v2349 = vpop.f32.mrf.mxu0
        %v2350 = vadd.f32 0.0, %v2349
        %2351 = vmatmul.f32.gmra.mxu0 %v1952
        %v2352 = vpop.f32.mrf.mxu0
        %v2353 = vadd.f32 0.0, %v2352
        %2354 = vmatmul.f32.gmra.mxu0 %v1955
        %v2355 = vpop.f32.mrf.mxu0
        %v2356 = vadd.f32 0.0, %v2355
        %2357 = vmatmul.f32.gmra.mxu0 %v1958
        %v2358 = vpop.f32.mrf.mxu0
        %v2359 = vadd.f32 0.0, %v2358
        %2360 = vmatmul.f32.gmra.mxu0 %v1961
        %v2361 = vpop.f32.mrf.mxu0
        %v2362 = vadd.f32 0.0, %v2361
        %2363 = vmatmul.f32.gmra.mxu0 %v1964
        %v2364 = vpop.f32.mrf.mxu0
        %v2365 = vadd.f32 0.0, %v2364
        %2366 = vmatmul.f32.gmra.mxu0 %v1967
        %v2367 = vpop.f32.mrf.mxu0
        %v2368 = vadd.f32 0.0, %v2367
        %2369 = vmatmul.f32.gmra.mxu0 %v1970
        %v2370 = vpop.f32.mrf.mxu0
        %v2371 = vadd.f32 0.0, %v2370
        %2372 = vmatmul.f32.gmra.mxu0 %v1973
        %v2373 = vpop.f32.mrf.mxu0
        %v2374 = vadd.f32 0.0, %v2373
        %2375 = vmatmul.f32.gmra.mxu0 %v1976
        %v2376 = vpop.f32.mrf.mxu0
        %v2377 = vadd.f32 0.0, %v2376
        %2378 = vmatmul.f32.gmra.mxu0 %v1979
        %v2379 = vpop.f32.mrf.mxu0
        %v2380 = vadd.f32 0.0, %v2379
        %2381 = vmatmul.f32.gmra.mxu0 %v1982
        %v2382 = vpop.f32.mrf.mxu0
        %v2383 = vadd.f32 0.0, %v2382
        %2384 = vmatmul.f32.gmra.mxu0 %v1985
        %v2385 = vpop.f32.mrf.mxu0
        %v2386 = vadd.f32 0.0, %v2385
        %2387 = vmatmul.f32.gmra.mxu0 %v1988
        %v2388 = vpop.f32.mrf.mxu0
        %v2389 = vadd.f32 0.0, %v2388
        %2390 = vmatmul.f32.gmra.mxu0 %v1991
        %v2391 = vpop.f32.mrf.mxu0
        %v2392 = vadd.f32 0.0, %v2391
        %2393 = vmatmul.f32.gmra.mxu0 %v1994
        %v2394 = vpop.f32.mrf.mxu0
        %v2395 = vadd.f32 0.0, %v2394
        %2396 = vmatmul.f32.gmra.mxu0 %v1997
        %v2397 = vpop.f32.mrf.mxu0
        %v2398 = vadd.f32 0.0, %v2397
        %2399 = vmatmul.f32.gmra.mxu0 %v2000
        %v2400 = vpop.f32.mrf.mxu0
        %v2401 = vadd.f32 0.0, %v2400
        %2402 = vmatmul.f32.gmra.mxu0 %v2003
        %v2403 = vpop.f32.mrf.mxu0
        %v2404 = vadd.f32 0.0, %v2403
        %2405 = vmatmul.f32.gmra.mxu0 %v2006
        %v2406 = vpop.f32.mrf.mxu0
        %v2407 = vadd.f32 0.0, %v2406
        %2408 = vmatmul.f32.gmra.mxu0 %v2009
        %v2409 = vpop.f32.mrf.mxu0
        %v2410 = vadd.f32 0.0, %v2409
        %2411 = vmatmul.f32.gmra.mxu0 %v2012
        %v2412 = vpop.f32.mrf.mxu0
        %v2413 = vadd.f32 0.0, %v2412
        %2414 = vmatmul.f32.gmra.mxu0 %v2015
        %v2415 = vpop.f32.mrf.mxu0
        %v2416 = vadd.f32 0.0, %v2415
        %2417 = vmatmul.f32.gmra.mxu0 %v2018
        %v2418 = vpop.f32.mrf.mxu0
        %v2419 = vadd.f32 0.0, %v2418
        %2420 = vmatmul.f32.gmra.mxu0 %v2021
        %v2421 = vpop.f32.mrf.mxu0
        %v2422 = vadd.f32 0.0, %v2421
        %2423 = vmatmul.f32.gmra.mxu0 %v2024
        %v2424 = vpop.f32.mrf.mxu0
        %v2425 = vadd.f32 0.0, %v2424
        %2426 = vmatmul.f32.gmra.mxu0 %v2027
        %v2427 = vpop.f32.mrf.mxu0
        %v2428 = vadd.f32 0.0, %v2427
        %2429 = vmatmul.f32.gmra.mxu0 %v2030
        %v2430 = vpop.f32.mrf.mxu0
        %v2431 = vadd.f32 0.0, %v2430
        %2432 = vmatmul.f32.gmra.mxu0 %v2033
        %v2433 = vpop.f32.mrf.mxu0
        %v2434 = vadd.f32 0.0, %v2433
        %2435 = vmatmul.f32.gmra.mxu0 %v2036
        %v2436 = vpop.f32.mrf.mxu0
        %v2437 = vadd.f32 0.0, %v2436
        %2438 = vmatmul.f32.gmra.mxu0 %v2039
        %v2439 = vpop.f32.mrf.mxu0
        %v2440 = vadd.f32 0.0, %v2439
        %2441 = vmatmul.f32.gmra.mxu0 %v2042
        %v2442 = vpop.f32.mrf.mxu0
        %v2443 = vadd.f32 0.0, %v2442
        %2444 = vmatmul.f32.gmra.mxu0 %v2045
        %v2445 = vpop.f32.mrf.mxu0
        %v2446 = vadd.f32 0.0, %v2445
        %2447 = vmatmul.f32.gmra.mxu0 %v2048
        %v2448 = vpop.f32.mrf.mxu0
        %v2449 = vadd.f32 0.0, %v2448
        %2450 = vmatmul.f32.gmra.mxu0 %v2051
        %v2451 = vpop.f32.mrf.mxu0
        %v2452 = vadd.f32 0.0, %v2451
        %2453 = vmatmul.f32.gmra.mxu0 %v2054
        %v2454 = vpop.f32.mrf.mxu0
        %v2455 = vadd.f32 0.0, %v2454
        %2456 = vmatmul.f32.gmra.mxu0 %v2057
        %v2457 = vpop.f32.mrf.mxu0
        %v2458 = vadd.f32 0.0, %v2457
        %2459 = vmatmul.f32.gmra.mxu0 %v2060
        %v2460 = vpop.f32.mrf.mxu0
        %v2461 = vadd.f32 0.0, %v2460
        %2462 = vmatmul.f32.gmra.mxu0 %v2063
        %v2463 = vpop.f32.mrf.mxu0
        %v2464 = vadd.f32 0.0, %v2463
        %2465 = vmatmul.f32.gmra.mxu0 %v2066
        %v2466 = vpop.f32.mrf.mxu0
        %v2467 = vadd.f32 0.0, %v2466
        %2468 = vmatmul.f32.gmra.mxu0 %v2069
        %v2469 = vpop.f32.mrf.mxu0
        %v2470 = vadd.f32 0.0, %v2469
        %2471 = vmatmul.f32.gmra.mxu0 %v2072
        %v2472 = vpop.f32.mrf.mxu0
        %v2473 = vadd.f32 0.0, %v2472
        %2474 = vmatmul.f32.gmra.mxu0 %v2075
        %v2475 = vpop.f32.mrf.mxu0
        %v2476 = vadd.f32 0.0, %v2475
        %2477 = vmatmul.f32.gmra.mxu0 %v2078
        %v2478 = vpop.f32.mrf.mxu0
        %v2479 = vadd.f32 0.0, %v2478
        %2480 = vmatmul.f32.gmra.mxu0 %v2081
        %v2481 = vpop.f32.mrf.mxu0
        %v2482 = vadd.f32 0.0, %v2481
        %2483 = vmatmul.f32.gmra.mxu0 %v2084
        %v2484 = vpop.f32.mrf.mxu0
        %v2485 = vadd.f32 0.0, %v2484
        %2486 = vmatmul.f32.gmra.mxu0 %v2087
        %v2487 = vpop.f32.mrf.mxu0
        %v2488 = vadd.f32 0.0, %v2487
        %2489 = vmatmul.f32.gmra.mxu0 %v2090
        %v2490 = vpop.f32.mrf.mxu0
        %v2491 = vadd.f32 0.0, %v2490
        %2492 = vmatmul.f32.gmra.mxu0 %v2093
        %v2493 = vpop.f32.mrf.mxu0
        %v2494 = vadd.f32 0.0, %v2493
        %2495 = vmatmul.f32.gmra.mxu0 %v2096
        %v2496 = vpop.f32.mrf.mxu0
        %v2497 = vadd.f32 0.0, %v2496
        %2498 = vmatmul.f32.gmra.mxu0 %v2099
        %v2499 = vpop.f32.mrf.mxu0
        %v2500 = vadd.f32 0.0, %v2499
        %2501 = vmatmul.f32.gmra.mxu0 %v2102
        %v2502 = vpop.f32.mrf.mxu0
        %v2503 = vadd.f32 0.0, %v2502
        %2504 = vmatmul.f32.gmra.mxu0 %v2105
        %v2505 = vpop.f32.mrf.mxu0
        %v2506 = vadd.f32 0.0, %v2505
        %2507 = vmatmul.f32.gmra.mxu0 %v2108
        %v2508 = vpop.f32.mrf.mxu0
        %v2509 = vadd.f32 0.0, %v2508
        %2510 = vmatmul.f32.gmra.mxu0 %v2111
        %v2511 = vpop.f32.mrf.mxu0
        %v2512 = vadd.f32 0.0, %v2511
        %2513 = vmatmul.f32.gmra.mxu0 %v2114
        %v2514 = vpop.f32.mrf.mxu0
        %v2515 = vadd.f32 0.0, %v2514
        %2516 = vmatmul.f32.gmra.mxu0 %v2117
        %v2517 = vpop.f32.mrf.mxu0
        %v2518 = vadd.f32 0.0, %v2517
        %2519 = vmatmul.f32.gmra.mxu0 %v2120
        %v2520 = vpop.f32.mrf.mxu0
        %v2521 = vadd.f32 0.0, %v2520
        %2522 = vmatmul.f32.gmra.mxu0 %v2123
        %v2523 = vpop.f32.mrf.mxu0
        %v2524 = vadd.f32 0.0, %v2523
        %2525 = vdwg.mxu0
        %v2527 = vsel %vm1740, %v968, 0
        %v2530 = vsel %vm1740, %v969, 0
        %v2533 = vsel %vm1740, %v970, 0
        %v2536 = vsel %vm1740, %v971, 0
        %v2539 = vsel %vm1740, %v972, 0
        %v2542 = vsel %vm1740, %v973, 0
        %v2545 = vsel %vm1740, %v974, 0
        %v2548 = vsel %vm1740, %v975, 0
        %v2551 = vsel %vm1740, %v976, 0
        %v2554 = vsel %vm1740, %v977, 0
        %v2557 = vsel %vm1740, %v978, 0
        %v2560 = vsel %vm1740, %v979, 0
        %v2563 = vsel %vm1740, %v980, 0
        %v2566 = vsel %vm1740, %v981, 0
        %v2569 = vsel %vm1740, %v982, 0
        %v2572 = vsel %vm1740, %v983, 0
        %v2575 = vsel %vm1740, %v984, 0
        %v2578 = vsel %vm1740, %v985, 0
        %v2581 = vsel %vm1740, %v986, 0
        %v2584 = vsel %vm1740, %v987, 0
        %v2587 = vsel %vm1740, %v988, 0
        %v2590 = vsel %vm1740, %v989, 0
        %v2593 = vsel %vm1740, %v990, 0
        %v2596 = vsel %vm1740, %v991, 0
        %v2599 = vsel %vm1740, %v992, 0
        %v2602 = vsel %vm1740, %v993, 0
        %v2605 = vsel %vm1740, %v994, 0
        %v2608 = vsel %vm1740, %v995, 0
        %v2611 = vsel %vm1740, %v996, 0
        %v2614 = vsel %vm1740, %v997, 0
        %v2617 = vsel %vm1740, %v998, 0
        %v2620 = vsel %vm1740, %v999, 0
        %v2623 = vsel %vm1740, %v1000, 0
        %v2626 = vsel %vm1740, %v1001, 0
        %v2629 = vsel %vm1740, %v1002, 0
        %v2632 = vsel %vm1740, %v1003, 0
        %v2635 = vsel %vm1740, %v1004, 0
        %v2638 = vsel %vm1740, %v1005, 0
        %v2641 = vsel %vm1740, %v1006, 0
        %v2644 = vsel %vm1740, %v1007, 0
        %v2647 = vsel %vm1740, %v1008, 0
        %v2650 = vsel %vm1740, %v1009, 0
        %v2653 = vsel %vm1740, %v1010, 0
        %v2656 = vsel %vm1740, %v1011, 0
        %v2659 = vsel %vm1740, %v1012, 0
        %v2662 = vsel %vm1740, %v1013, 0
        %v2665 = vsel %vm1740, %v1014, 0
        %v2668 = vsel %vm1740, %v1015, 0
        %v2671 = vsel %vm1740, %v1016, 0
        %v2674 = vsel %vm1740, %v1017, 0
        %v2677 = vsel %vm1740, %v1018, 0
        %v2680 = vsel %vm1740, %v1019, 0
        %v2683 = vsel %vm1740, %v1020, 0
        %v2686 = vsel %vm1740, %v1021, 0
        %v2689 = vsel %vm1740, %v1022, 0
        %v2692 = vsel %vm1740, %v1023, 0
        %v2695 = vsel %vm1740, %v1024, 0
        %v2698 = vsel %vm1740, %v1025, 0
        %v2701 = vsel %vm1740, %v1026, 0
        %v2704 = vsel %vm1740, %v1027, 0
        %v2707 = vsel %vm1740, %v1028, 0
        %v2710 = vsel %vm1740, %v1029, 0
        %v2713 = vsel %vm1740, %v1030, 0
        %v2716 = vsel %vm1740, %v1031, 0
        %v2719 = vsel %vm1740, %v1032, 0
        %v2722 = vsel %vm1740, %v1033, 0
        %v2725 = vsel %vm1740, %v1034, 0
        %v2728 = vsel %vm1740, %v1035, 0
        %v2731 = vsel %vm1740, %v1036, 0
        %v2734 = vsel %vm1740, %v1037, 0
        %v2737 = vsel %vm1740, %v1038, 0
        %v2740 = vsel %vm1740, %v1039, 0
        %v2743 = vsel %vm1740, %v1040, 0
        %v2746 = vsel %vm1740, %v1041, 0
        %v2749 = vsel %vm1740, %v1042, 0
        %v2752 = vsel %vm1740, %v1043, 0
        %v2755 = vsel %vm1740, %v1044, 0
        %v2758 = vsel %vm1740, %v1045, 0
        %v2761 = vsel %vm1740, %v1046, 0
        %v2764 = vsel %vm1740, %v1047, 0
        %v2767 = vsel %vm1740, %v1048, 0
        %v2770 = vsel %vm1740, %v1049, 0
        %v2773 = vsel %vm1740, %v1050, 0
        %v2776 = vsel %vm1740, %v1051, 0
        %v2779 = vsel %vm1740, %v1052, 0
        %v2782 = vsel %vm1740, %v1053, 0
        %v2785 = vsel %vm1740, %v1054, 0
        %v2788 = vsel %vm1740, %v1055, 0
        %v2791 = vsel %vm1740, %v1056, 0
        %v2794 = vsel %vm1740, %v1057, 0
        %v2797 = vsel %vm1740, %v1058, 0
        %v2800 = vsel %vm1740, %v1059, 0
        %v2803 = vsel %vm1740, %v1060, 0
        %v2806 = vsel %vm1740, %v1061, 0
        %v2809 = vsel %vm1740, %v1062, 0
        %v2812 = vsel %vm1740, %v1063, 0
        %v2815 = vsel %vm1740, %v1064, 0
        %v2818 = vsel %vm1740, %v1065, 0
        %v2821 = vsel %vm1740, %v1066, 0
        %v2824 = vsel %vm1740, %v1067, 0
        %v2827 = vsel %vm1740, %v1068, 0
        %v2830 = vsel %vm1740, %v1069, 0
        %v2833 = vsel %vm1740, %v1070, 0
        %v2836 = vsel %vm1740, %v1071, 0
        %v2839 = vsel %vm1740, %v1072, 0
        %v2842 = vsel %vm1740, %v1073, 0
        %v2845 = vsel %vm1740, %v1074, 0
        %v2848 = vsel %vm1740, %v1075, 0
        %v2851 = vsel %vm1740, %v1076, 0
        %v2854 = vsel %vm1740, %v1077, 0
        %v2857 = vsel %vm1740, %v1078, 0
        %v2860 = vsel %vm1740, %v1079, 0
        %v2863 = vsel %vm1740, %v1080, 0
        %v2866 = vsel %vm1740, %v1081, 0
        %v2869 = vsel %vm1740, %v1082, 0
        %v2872 = vsel %vm1740, %v1083, 0
        %v2875 = vsel %vm1740, %v1084, 0
        %v2878 = vsel %vm1740, %v1085, 0
        %v2881 = vsel %vm1740, %v1086, 0
        %v2884 = vsel %vm1740, %v1087, 0
        %v2887 = vsel %vm1740, %v1088, 0
        %v2890 = vsel %vm1740, %v1089, 0
        %v2893 = vsel %vm1740, %v1090, 0
        %v2896 = vsel %vm1740, %v1091, 0
        %v2899 = vsel %vm1740, %v1092, 0
        %v2902 = vsel %vm1740, %v1093, 0
        %v2905 = vsel %vm1740, %v1094, 0
        %v2908 = vsel %vm1740, %v1095, 0
        %2910 = vmatpush.msra.mxu0 0.0
        %2911 = vmatpush.msra.mxu0 0.0
        %2912 = vmatpush.msra.mxu0 0.0
        %2913 = vmatpush.msra.mxu0 0.0
        %2914 = vmatpush.msra.mxu0 0.0
        %2915 = vmatpush.msra.mxu0 0.0
        %2916 = vmatpush.msra.mxu0 0.0
        %2917 = vmatpush.msra.mxu0 0.0
        %2918 = vmatpush.msra.mxu0 0.0
        %2919 = vmatpush.msra.mxu0 0.0
        %2920 = vmatpush.msra.mxu0 0.0
        %2921 = vmatpush.msra.mxu0 0.0
        %2922 = vmatpush.msra.mxu0 0.0
        %2923 = vmatpush.msra.mxu0 0.0
        %2924 = vmatpush.msra.mxu0 %v1737
        %2925 = vmatpush.msra.mxu0 %v1736
        %2926 = vmatmul.f32.gmra.mxu0 %v2527
        %v2927 = vpop.f32.mrf.mxu0
        %v2928 = vadd.f32 %v2143, %v2927
        %2929 = vmatmul.f32.gmra.mxu0 %v2530
        %v2930 = vpop.f32.mrf.mxu0
        %v2931 = vadd.f32 %v2146, %v2930
        %2932 = vmatmul.f32.gmra.mxu0 %v2533
        %v2933 = vpop.f32.mrf.mxu0
        %v2934 = vadd.f32 %v2149, %v2933
        %2935 = vmatmul.f32.gmra.mxu0 %v2536
        %v2936 = vpop.f32.mrf.mxu0
        %v2937 = vadd.f32 %v2152, %v2936
        %2938 = vmatmul.f32.gmra.mxu0 %v2539
        %v2939 = vpop.f32.mrf.mxu0
        %v2940 = vadd.f32 %v2155, %v2939
        %2941 = vmatmul.f32.gmra.mxu0 %v2542
        %v2942 = vpop.f32.mrf.mxu0
        %v2943 = vadd.f32 %v2158, %v2942
        %2944 = vmatmul.f32.gmra.mxu0 %v2545
        %v2945 = vpop.f32.mrf.mxu0
        %v2946 = vadd.f32 %v2161, %v2945
        %2947 = vmatmul.f32.gmra.mxu0 %v2548
        %v2948 = vpop.f32.mrf.mxu0
        %v2949 = vadd.f32 %v2164, %v2948
        %2950 = vmatmul.f32.gmra.mxu0 %v2551
        %v2951 = vpop.f32.mrf.mxu0
        %v2952 = vadd.f32 %v2167, %v2951
        %2953 = vmatmul.f32.gmra.mxu0 %v2554
        %v2954 = vpop.f32.mrf.mxu0
        %v2955 = vadd.f32 %v2170, %v2954
        %2956 = vmatmul.f32.gmra.mxu0 %v2557
        %v2957 = vpop.f32.mrf.mxu0
        %v2958 = vadd.f32 %v2173, %v2957
        %2959 = vmatmul.f32.gmra.mxu0 %v2560
        %v2960 = vpop.f32.mrf.mxu0
        %v2961 = vadd.f32 %v2176, %v2960
        %2962 = vmatmul.f32.gmra.mxu0 %v2563
        %v2963 = vpop.f32.mrf.mxu0
        %v2964 = vadd.f32 %v2179, %v2963
        %2965 = vmatmul.f32.gmra.mxu0 %v2566
        %v2966 = vpop.f32.mrf.mxu0
        %v2967 = vadd.f32 %v2182, %v2966
        %2968 = vmatmul.f32.gmra.mxu0 %v2569
        %v2969 = vpop.f32.mrf.mxu0
        %v2970 = vadd.f32 %v2185, %v2969
        %2971 = vmatmul.f32.gmra.mxu0 %v2572
        %v2972 = vpop.f32.mrf.mxu0
        %v2973 = vadd.f32 %v2188, %v2972
        %2974 = vmatmul.f32.gmra.mxu0 %v2575
        %v2975 = vpop.f32.mrf.mxu0
        %v2976 = vadd.f32 %v2191, %v2975
        %2977 = vmatmul.f32.gmra.mxu0 %v2578
        %v2978 = vpop.f32.mrf.mxu0
        %v2979 = vadd.f32 %v2194, %v2978
        %2980 = vmatmul.f32.gmra.mxu0 %v2581
        %v2981 = vpop.f32.mrf.mxu0
        %v2982 = vadd.f32 %v2197, %v2981
        %2983 = vmatmul.f32.gmra.mxu0 %v2584
        %v2984 = vpop.f32.mrf.mxu0
        %v2985 = vadd.f32 %v2200, %v2984
        %2986 = vmatmul.f32.gmra.mxu0 %v2587
        %v2987 = vpop.f32.mrf.mxu0
        %v2988 = vadd.f32 %v2203, %v2987
        %2989 = vmatmul.f32.gmra.mxu0 %v2590
        %v2990 = vpop.f32.mrf.mxu0
        %v2991 = vadd.f32 %v2206, %v2990
        %2992 = vmatmul.f32.gmra.mxu0 %v2593
        %v2993 = vpop.f32.mrf.mxu0
        %v2994 = vadd.f32 %v2209, %v2993
        %2995 = vmatmul.f32.gmra.mxu0 %v2596
        %v2996 = vpop.f32.mrf.mxu0
        %v2997 = vadd.f32 %v2212, %v2996
        %2998 = vmatmul.f32.gmra.mxu0 %v2599
        %v2999 = vpop.f32.mrf.mxu0
        %v3000 = vadd.f32 %v2215, %v2999
        %3001 = vmatmul.f32.gmra.mxu0 %v2602
        %v3002 = vpop.f32.mrf.mxu0
        %v3003 = vadd.f32 %v2218, %v3002
        %3004 = vmatmul.f32.gmra.mxu0 %v2605
        %v3005 = vpop.f32.mrf.mxu0
        %v3006 = vadd.f32 %v2221, %v3005
        %3007 = vmatmul.f32.gmra.mxu0 %v2608
        %v3008 = vpop.f32.mrf.mxu0
        %v3009 = vadd.f32 %v2224, %v3008
        %3010 = vmatmul.f32.gmra.mxu0 %v2611
        %v3011 = vpop.f32.mrf.mxu0
        %v3012 = vadd.f32 %v2227, %v3011
        %3013 = vmatmul.f32.gmra.mxu0 %v2614
        %v3014 = vpop.f32.mrf.mxu0
        %v3015 = vadd.f32 %v2230, %v3014
        %3016 = vmatmul.f32.gmra.mxu0 %v2617
        %v3017 = vpop.f32.mrf.mxu0
        %v3018 = vadd.f32 %v2233, %v3017
        %3019 = vmatmul.f32.gmra.mxu0 %v2620
        %v3020 = vpop.f32.mrf.mxu0
        %v3021 = vadd.f32 %v2236, %v3020
        %3022 = vmatmul.f32.gmra.mxu0 %v2623
        %v3023 = vpop.f32.mrf.mxu0
        %v3024 = vadd.f32 %v2239, %v3023
        %3025 = vmatmul.f32.gmra.mxu0 %v2626
        %v3026 = vpop.f32.mrf.mxu0
        %v3027 = vadd.f32 %v2242, %v3026
        %3028 = vmatmul.f32.gmra.mxu0 %v2629
        %v3029 = vpop.f32.mrf.mxu0
        %v3030 = vadd.f32 %v2245, %v3029
        %3031 = vmatmul.f32.gmra.mxu0 %v2632
        %v3032 = vpop.f32.mrf.mxu0
        %v3033 = vadd.f32 %v2248, %v3032
        %3034 = vmatmul.f32.gmra.mxu0 %v2635
        %v3035 = vpop.f32.mrf.mxu0
        %v3036 = vadd.f32 %v2251, %v3035
        %3037 = vmatmul.f32.gmra.mxu0 %v2638
        %v3038 = vpop.f32.mrf.mxu0
        %v3039 = vadd.f32 %v2254, %v3038
        %3040 = vmatmul.f32.gmra.mxu0 %v2641
        %v3041 = vpop.f32.mrf.mxu0
        %v3042 = vadd.f32 %v2257, %v3041
        %3043 = vmatmul.f32.gmra.mxu0 %v2644
        %v3044 = vpop.f32.mrf.mxu0
        %v3045 = vadd.f32 %v2260, %v3044
        %3046 = vmatmul.f32.gmra.mxu0 %v2647
        %v3047 = vpop.f32.mrf.mxu0
        %v3048 = vadd.f32 %v2263, %v3047
        %3049 = vmatmul.f32.gmra.mxu0 %v2650
        %v3050 = vpop.f32.mrf.mxu0
        %v3051 = vadd.f32 %v2266, %v3050
        %3052 = vmatmul.f32.gmra.mxu0 %v2653
        %v3053 = vpop.f32.mrf.mxu0
        %v3054 = vadd.f32 %v2269, %v3053
        %3055 = vmatmul.f32.gmra.mxu0 %v2656
        %v3056 = vpop.f32.mrf.mxu0
        %v3057 = vadd.f32 %v2272, %v3056
        %3058 = vmatmul.f32.gmra.mxu0 %v2659
        %v3059 = vpop.f32.mrf.mxu0
        %v3060 = vadd.f32 %v2275, %v3059
        %3061 = vmatmul.f32.gmra.mxu0 %v2662
        %v3062 = vpop.f32.mrf.mxu0
        %v3063 = vadd.f32 %v2278, %v3062
        %3064 = vmatmul.f32.gmra.mxu0 %v2665
        %v3065 = vpop.f32.mrf.mxu0
        %v3066 = vadd.f32 %v2281, %v3065
        %3067 = vmatmul.f32.gmra.mxu0 %v2668
        %v3068 = vpop.f32.mrf.mxu0
        %v3069 = vadd.f32 %v2284, %v3068
        %3070 = vmatmul.f32.gmra.mxu0 %v2671
        %v3071 = vpop.f32.mrf.mxu0
        %v3072 = vadd.f32 %v2287, %v3071
        %3073 = vmatmul.f32.gmra.mxu0 %v2674
        %v3074 = vpop.f32.mrf.mxu0
        %v3075 = vadd.f32 %v2290, %v3074
        %3076 = vmatmul.f32.gmra.mxu0 %v2677
        %v3077 = vpop.f32.mrf.mxu0
        %v3078 = vadd.f32 %v2293, %v3077
        %3079 = vmatmul.f32.gmra.mxu0 %v2680
        %v3080 = vpop.f32.mrf.mxu0
        %v3081 = vadd.f32 %v2296, %v3080
        %3082 = vmatmul.f32.gmra.mxu0 %v2683
        %v3083 = vpop.f32.mrf.mxu0
        %v3084 = vadd.f32 %v2299, %v3083
        %3085 = vmatmul.f32.gmra.mxu0 %v2686
        %v3086 = vpop.f32.mrf.mxu0
        %v3087 = vadd.f32 %v2302, %v3086
        %3088 = vmatmul.f32.gmra.mxu0 %v2689
        %v3089 = vpop.f32.mrf.mxu0
        %v3090 = vadd.f32 %v2305, %v3089
        %3091 = vmatmul.f32.gmra.mxu0 %v2692
        %v3092 = vpop.f32.mrf.mxu0
        %v3093 = vadd.f32 %v2308, %v3092
        %3094 = vmatmul.f32.gmra.mxu0 %v2695
        %v3095 = vpop.f32.mrf.mxu0
        %v3096 = vadd.f32 %v2311, %v3095
        %3097 = vmatmul.f32.gmra.mxu0 %v2698
        %v3098 = vpop.f32.mrf.mxu0
        %v3099 = vadd.f32 %v2314, %v3098
        %3100 = vmatmul.f32.gmra.mxu0 %v2701
        %v3101 = vpop.f32.mrf.mxu0
        %v3102 = vadd.f32 %v2317, %v3101
        %3103 = vmatmul.f32.gmra.mxu0 %v2704
        %v3104 = vpop.f32.mrf.mxu0
        %v3105 = vadd.f32 %v2320, %v3104
        %3106 = vmatmul.f32.gmra.mxu0 %v2707
        %v3107 = vpop.f32.mrf.mxu0
        %v3108 = vadd.f32 %v2323, %v3107
        %3109 = vmatmul.f32.gmra.mxu0 %v2710
        %v3110 = vpop.f32.mrf.mxu0
        %v3111 = vadd.f32 %v2326, %v3110
        %3112 = vmatmul.f32.gmra.mxu0 %v2713
        %v3113 = vpop.f32.mrf.mxu0
        %v3114 = vadd.f32 %v2329, %v3113
        %3115 = vmatmul.f32.gmra.mxu0 %v2716
        %v3116 = vpop.f32.mrf.mxu0
        %v3117 = vadd.f32 %v2332, %v3116
        %3118 = vmatmul.f32.gmra.mxu0 %v2719
        %v3119 = vpop.f32.mrf.mxu0
        %v3120 = vadd.f32 %v2335, %v3119
        %3121 = vmatmul.f32.gmra.mxu0 %v2722
        %v3122 = vpop.f32.mrf.mxu0
        %v3123 = vadd.f32 %v2338, %v3122
        %3124 = vmatmul.f32.gmra.mxu0 %v2725
        %v3125 = vpop.f32.mrf.mxu0
        %v3126 = vadd.f32 %v2341, %v3125
        %3127 = vmatmul.f32.gmra.mxu0 %v2728
        %v3128 = vpop.f32.mrf.mxu0
        %v3129 = vadd.f32 %v2344, %v3128
        %3130 = vmatmul.f32.gmra.mxu0 %v2731
        %v3131 = vpop.f32.mrf.mxu0
        %v3132 = vadd.f32 %v2347, %v3131
        %3133 = vmatmul.f32.gmra.mxu0 %v2734
        %v3134 = vpop.f32.mrf.mxu0
        %v3135 = vadd.f32 %v2350, %v3134
        %3136 = vmatmul.f32.gmra.mxu0 %v2737
        %v3137 = vpop.f32.mrf.mxu0
        %v3138 = vadd.f32 %v2353, %v3137
        %3139 = vmatmul.f32.gmra.mxu0 %v2740
        %v3140 = vpop.f32.mrf.mxu0
        %v3141 = vadd.f32 %v2356, %v3140
        %3142 = vmatmul.f32.gmra.mxu0 %v2743
        %v3143 = vpop.f32.mrf.mxu0
        %v3144 = vadd.f32 %v2359, %v3143
        %3145 = vmatmul.f32.gmra.mxu0 %v2746
        %v3146 = vpop.f32.mrf.mxu0
        %v3147 = vadd.f32 %v2362, %v3146
        %3148 = vmatmul.f32.gmra.mxu0 %v2749
        %v3149 = vpop.f32.mrf.mxu0
        %v3150 = vadd.f32 %v2365, %v3149
        %3151 = vmatmul.f32.gmra.mxu0 %v2752
        %v3152 = vpop.f32.mrf.mxu0
        %v3153 = vadd.f32 %v2368, %v3152
        %3154 = vmatmul.f32.gmra.mxu0 %v2755
        %v3155 = vpop.f32.mrf.mxu0
        %v3156 = vadd.f32 %v2371, %v3155
        %3157 = vmatmul.f32.gmra.mxu0 %v2758
        %v3158 = vpop.f32.mrf.mxu0
        %v3159 = vadd.f32 %v2374, %v3158
        %3160 = vmatmul.f32.gmra.mxu0 %v2761
        %v3161 = vpop.f32.mrf.mxu0
        %v3162 = vadd.f32 %v2377, %v3161
        %3163 = vmatmul.f32.gmra.mxu0 %v2764
        %v3164 = vpop.f32.mrf.mxu0
        %v3165 = vadd.f32 %v2380, %v3164
        %3166 = vmatmul.f32.gmra.mxu0 %v2767
        %v3167 = vpop.f32.mrf.mxu0
        %v3168 = vadd.f32 %v2383, %v3167
        %3169 = vmatmul.f32.gmra.mxu0 %v2770
        %v3170 = vpop.f32.mrf.mxu0
        %v3171 = vadd.f32 %v2386, %v3170
        %3172 = vmatmul.f32.gmra.mxu0 %v2773
        %v3173 = vpop.f32.mrf.mxu0
        %v3174 = vadd.f32 %v2389, %v3173
        %3175 = vmatmul.f32.gmra.mxu0 %v2776
        %v3176 = vpop.f32.mrf.mxu0
        %v3177 = vadd.f32 %v2392, %v3176
        %3178 = vmatmul.f32.gmra.mxu0 %v2779
        %v3179 = vpop.f32.mrf.mxu0
        %v3180 = vadd.f32 %v2395, %v3179
        %3181 = vmatmul.f32.gmra.mxu0 %v2782
        %v3182 = vpop.f32.mrf.mxu0
        %v3183 = vadd.f32 %v2398, %v3182
        %3184 = vmatmul.f32.gmra.mxu0 %v2785
        %v3185 = vpop.f32.mrf.mxu0
        %v3186 = vadd.f32 %v2401, %v3185
        %3187 = vmatmul.f32.gmra.mxu0 %v2788
        %v3188 = vpop.f32.mrf.mxu0
        %v3189 = vadd.f32 %v2404, %v3188
        %3190 = vmatmul.f32.gmra.mxu0 %v2791
        %v3191 = vpop.f32.mrf.mxu0
        %v3192 = vadd.f32 %v2407, %v3191
        %3193 = vmatmul.f32.gmra.mxu0 %v2794
        %v3194 = vpop.f32.mrf.mxu0
        %v3195 = vadd.f32 %v2410, %v3194
        %3196 = vmatmul.f32.gmra.mxu0 %v2797
        %v3197 = vpop.f32.mrf.mxu0
        %v3198 = vadd.f32 %v2413, %v3197
        %3199 = vmatmul.f32.gmra.mxu0 %v2800
        %v3200 = vpop.f32.mrf.mxu0
        %v3201 = vadd.f32 %v2416, %v3200
        %3202 = vmatmul.f32.gmra.mxu0 %v2803
        %v3203 = vpop.f32.mrf.mxu0
        %v3204 = vadd.f32 %v2419, %v3203
        %3205 = vmatmul.f32.gmra.mxu0 %v2806
        %v3206 = vpop.f32.mrf.mxu0
        %v3207 = vadd.f32 %v2422, %v3206
        %3208 = vmatmul.f32.gmra.mxu0 %v2809
        %v3209 = vpop.f32.mrf.mxu0
        %v3210 = vadd.f32 %v2425, %v3209
        %3211 = vmatmul.f32.gmra.mxu0 %v2812
        %v3212 = vpop.f32.mrf.mxu0
        %v3213 = vadd.f32 %v2428, %v3212
        %3214 = vmatmul.f32.gmra.mxu0 %v2815
        %v3215 = vpop.f32.mrf.mxu0
        %v3216 = vadd.f32 %v2431, %v3215
        %3217 = vmatmul.f32.gmra.mxu0 %v2818
        %v3218 = vpop.f32.mrf.mxu0
        %v3219 = vadd.f32 %v2434, %v3218
        %3220 = vmatmul.f32.gmra.mxu0 %v2821
        %v3221 = vpop.f32.mrf.mxu0
        %v3222 = vadd.f32 %v2437, %v3221
        %3223 = vmatmul.f32.gmra.mxu0 %v2824
        %v3224 = vpop.f32.mrf.mxu0
        %v3225 = vadd.f32 %v2440, %v3224
        %3226 = vmatmul.f32.gmra.mxu0 %v2827
        %v3227 = vpop.f32.mrf.mxu0
        %v3228 = vadd.f32 %v2443, %v3227
        %3229 = vmatmul.f32.gmra.mxu0 %v2830
        %v3230 = vpop.f32.mrf.mxu0
        %v3231 = vadd.f32 %v2446, %v3230
        %3232 = vmatmul.f32.gmra.mxu0 %v2833
        %v3233 = vpop.f32.mrf.mxu0
        %v3234 = vadd.f32 %v2449, %v3233
        %3235 = vmatmul.f32.gmra.mxu0 %v2836
        %v3236 = vpop.f32.mrf.mxu0
        %v3237 = vadd.f32 %v2452, %v3236
        %3238 = vmatmul.f32.gmra.mxu0 %v2839
        %v3239 = vpop.f32.mrf.mxu0
        %v3240 = vadd.f32 %v2455, %v3239
        %3241 = vmatmul.f32.gmra.mxu0 %v2842
        %v3242 = vpop.f32.mrf.mxu0
        %v3243 = vadd.f32 %v2458, %v3242
        %3244 = vmatmul.f32.gmra.mxu0 %v2845
        %v3245 = vpop.f32.mrf.mxu0
        %v3246 = vadd.f32 %v2461, %v3245
        %3247 = vmatmul.f32.gmra.mxu0 %v2848
        %v3248 = vpop.f32.mrf.mxu0
        %v3249 = vadd.f32 %v2464, %v3248
        %3250 = vmatmul.f32.gmra.mxu0 %v2851
        %v3251 = vpop.f32.mrf.mxu0
        %v3252 = vadd.f32 %v2467, %v3251
        %3253 = vmatmul.f32.gmra.mxu0 %v2854
        %v3254 = vpop.f32.mrf.mxu0
        %v3255 = vadd.f32 %v2470, %v3254
        %3256 = vmatmul.f32.gmra.mxu0 %v2857
        %v3257 = vpop.f32.mrf.mxu0
        %v3258 = vadd.f32 %v2473, %v3257
        %3259 = vmatmul.f32.gmra.mxu0 %v2860
        %v3260 = vpop.f32.mrf.mxu0
        %v3261 = vadd.f32 %v2476, %v3260
        %3262 = vmatmul.f32.gmra.mxu0 %v2863
        %v3263 = vpop.f32.mrf.mxu0
        %v3264 = vadd.f32 %v2479, %v3263
        %3265 = vmatmul.f32.gmra.mxu0 %v2866
        %v3266 = vpop.f32.mrf.mxu0
        %v3267 = vadd.f32 %v2482, %v3266
        %3268 = vmatmul.f32.gmra.mxu0 %v2869
        %v3269 = vpop.f32.mrf.mxu0
        %v3270 = vadd.f32 %v2485, %v3269
        %3271 = vmatmul.f32.gmra.mxu0 %v2872
        %v3272 = vpop.f32.mrf.mxu0
        %v3273 = vadd.f32 %v2488, %v3272
        %3274 = vmatmul.f32.gmra.mxu0 %v2875
        %v3275 = vpop.f32.mrf.mxu0
        %v3276 = vadd.f32 %v2491, %v3275
        %3277 = vmatmul.f32.gmra.mxu0 %v2878
        %v3278 = vpop.f32.mrf.mxu0
        %v3279 = vadd.f32 %v2494, %v3278
        %3280 = vmatmul.f32.gmra.mxu0 %v2881
        %v3281 = vpop.f32.mrf.mxu0
        %v3282 = vadd.f32 %v2497, %v3281
        %3283 = vmatmul.f32.gmra.mxu0 %v2884
        %v3284 = vpop.f32.mrf.mxu0
        %v3285 = vadd.f32 %v2500, %v3284
        %3286 = vmatmul.f32.gmra.mxu0 %v2887
        %v3287 = vpop.f32.mrf.mxu0
        %v3288 = vadd.f32 %v2503, %v3287
        %3289 = vmatmul.f32.gmra.mxu0 %v2890
        %v3290 = vpop.f32.mrf.mxu0
        %v3291 = vadd.f32 %v2506, %v3290
        %3292 = vmatmul.f32.gmra.mxu0 %v2893
        %v3293 = vpop.f32.mrf.mxu0
        %v3294 = vadd.f32 %v2509, %v3293
        %3295 = vmatmul.f32.gmra.mxu0 %v2896
        %v3296 = vpop.f32.mrf.mxu0
        %v3297 = vadd.f32 %v2512, %v3296
        %3298 = vmatmul.f32.gmra.mxu0 %v2899
        %v3299 = vpop.f32.mrf.mxu0
        %v3300 = vadd.f32 %v2515, %v3299
        %3301 = vmatmul.f32.gmra.mxu0 %v2902
        %v3302 = vpop.f32.mrf.mxu0
        %v3303 = vadd.f32 %v2518, %v3302
        %3304 = vmatmul.f32.gmra.mxu0 %v2905
        %v3305 = vpop.f32.mrf.mxu0
        %v3306 = vadd.f32 %v2521, %v3305
        %3307 = vmatmul.f32.gmra.mxu0 %v2908
        %v3308 = vpop.f32.mrf.mxu0
        %v3309 = vadd.f32 %v2524, %v3308
        %3310 = vdwg.mxu0
        %v3311 = vld [vmem:[%s6] sm:$0x1]
        %v3313 = vperm.slane %v3311, 0
        %v3315 = vadd.f32 %v2928, %v3313
        %v3316 = vadd.f32 %v2931, %v3313
        %v3317 = vadd.f32 %v2934, %v3313
        %v3318 = vadd.f32 %v2937, %v3313
        %v3319 = vadd.f32 %v2940, %v3313
        %v3320 = vadd.f32 %v2943, %v3313
        %v3321 = vadd.f32 %v2946, %v3313
        %v3322 = vadd.f32 %v2949, %v3313
        %v3323 = vadd.f32 %v2952, %v3313
        %v3324 = vadd.f32 %v2955, %v3313
        %v3325 = vadd.f32 %v2958, %v3313
        %v3326 = vadd.f32 %v2961, %v3313
        %v3327 = vadd.f32 %v2964, %v3313
        %v3328 = vadd.f32 %v2967, %v3313
        %v3329 = vadd.f32 %v2970, %v3313
        %v3330 = vadd.f32 %v2973, %v3313
        %v3331 = vadd.f32 %v2976, %v3313
        %v3332 = vadd.f32 %v2979, %v3313
        %v3333 = vadd.f32 %v2982, %v3313
        %v3334 = vadd.f32 %v2985, %v3313
        %v3335 = vadd.f32 %v2988, %v3313
        %v3336 = vadd.f32 %v2991, %v3313
        %v3337 = vadd.f32 %v2994, %v3313
        %v3338 = vadd.f32 %v2997, %v3313
        %v3339 = vadd.f32 %v3000, %v3313
        %v3340 = vadd.f32 %v3003, %v3313
        %v3341 = vadd.f32 %v3006, %v3313
        %v3342 = vadd.f32 %v3009, %v3313
        %v3343 = vadd.f32 %v3012, %v3313
        %v3344 = vadd.f32 %v3015, %v3313
        %v3345 = vadd.f32 %v3018, %v3313
        %v3346 = vadd.f32 %v3021, %v3313
        %v3347 = vadd.f32 %v3024, %v3313
        %v3348 = vadd.f32 %v3027, %v3313
        %v3349 = vadd.f32 %v3030, %v3313
        %v3350 = vadd.f32 %v3033, %v3313
        %v3351 = vadd.f32 %v3036, %v3313
        %v3352 = vadd.f32 %v3039, %v3313
        %v3353 = vadd.f32 %v3042, %v3313
        %v3354 = vadd.f32 %v3045, %v3313
        %v3355 = vadd.f32 %v3048, %v3313
        %v3356 = vadd.f32 %v3051, %v3313
        %v3357 = vadd.f32 %v3054, %v3313
        %v3358 = vadd.f32 %v3057, %v3313
        %v3359 = vadd.f32 %v3060, %v3313
        %v3360 = vadd.f32 %v3063, %v3313
        %v3361 = vadd.f32 %v3066, %v3313
        %v3362 = vadd.f32 %v3069, %v3313
        %v3363 = vadd.f32 %v3072, %v3313
        %v3364 = vadd.f32 %v3075, %v3313
        %v3365 = vadd.f32 %v3078, %v3313
        %v3366 = vadd.f32 %v3081, %v3313
        %v3367 = vadd.f32 %v3084, %v3313
        %v3368 = vadd.f32 %v3087, %v3313
        %v3369 = vadd.f32 %v3090, %v3313
        %v3370 = vadd.f32 %v3093, %v3313
        %v3371 = vadd.f32 %v3096, %v3313
        %v3372 = vadd.f32 %v3099, %v3313
        %v3373 = vadd.f32 %v3102, %v3313
        %v3374 = vadd.f32 %v3105, %v3313
        %v3375 = vadd.f32 %v3108, %v3313
        %v3376 = vadd.f32 %v3111, %v3313
        %v3377 = vadd.f32 %v3114, %v3313
        %v3378 = vadd.f32 %v3117, %v3313
        %v3379 = vadd.f32 %v3120, %v3313
        %v3380 = vadd.f32 %v3123, %v3313
        %v3381 = vadd.f32 %v3126, %v3313
        %v3382 = vadd.f32 %v3129, %v3313
        %v3383 = vadd.f32 %v3132, %v3313
        %v3384 = vadd.f32 %v3135, %v3313
        %v3385 = vadd.f32 %v3138, %v3313
        %v3386 = vadd.f32 %v3141, %v3313
        %v3387 = vadd.f32 %v3144, %v3313
        %v3388 = vadd.f32 %v3147, %v3313
        %v3389 = vadd.f32 %v3150, %v3313
        %v3390 = vadd.f32 %v3153, %v3313
        %v3391 = vadd.f32 %v3156, %v3313
        %v3392 = vadd.f32 %v3159, %v3313
        %v3393 = vadd.f32 %v3162, %v3313
        %v3394 = vadd.f32 %v3165, %v3313
        %v3395 = vadd.f32 %v3168, %v3313
        %v3396 = vadd.f32 %v3171, %v3313
        %v3397 = vadd.f32 %v3174, %v3313
        %v3398 = vadd.f32 %v3177, %v3313
        %v3399 = vadd.f32 %v3180, %v3313
        %v3400 = vadd.f32 %v3183, %v3313
        %v3401 = vadd.f32 %v3186, %v3313
        %v3402 = vadd.f32 %v3189, %v3313
        %v3403 = vadd.f32 %v3192, %v3313
        %v3404 = vadd.f32 %v3195, %v3313
        %v3405 = vadd.f32 %v3198, %v3313
        %v3406 = vadd.f32 %v3201, %v3313
        %v3407 = vadd.f32 %v3204, %v3313
        %v3408 = vadd.f32 %v3207, %v3313
        %v3409 = vadd.f32 %v3210, %v3313
        %v3410 = vadd.f32 %v3213, %v3313
        %v3411 = vadd.f32 %v3216, %v3313
        %v3412 = vadd.f32 %v3219, %v3313
        %v3413 = vadd.f32 %v3222, %v3313
        %v3414 = vadd.f32 %v3225, %v3313
        %v3415 = vadd.f32 %v3228, %v3313
        %v3416 = vadd.f32 %v3231, %v3313
        %v3417 = vadd.f32 %v3234, %v3313
        %v3418 = vadd.f32 %v3237, %v3313
        %v3419 = vadd.f32 %v3240, %v3313
        %v3420 = vadd.f32 %v3243, %v3313
        %v3421 = vadd.f32 %v3246, %v3313
        %v3422 = vadd.f32 %v3249, %v3313
        %v3423 = vadd.f32 %v3252, %v3313
        %v3424 = vadd.f32 %v3255, %v3313
        %v3425 = vadd.f32 %v3258, %v3313
        %v3426 = vadd.f32 %v3261, %v3313
        %v3427 = vadd.f32 %v3264, %v3313
        %v3428 = vadd.f32 %v3267, %v3313
        %v3429 = vadd.f32 %v3270, %v3313
        %v3430 = vadd.f32 %v3273, %v3313
        %v3431 = vadd.f32 %v3276, %v3313
        %v3432 = vadd.f32 %v3279, %v3313
        %v3433 = vadd.f32 %v3282, %v3313
        %v3434 = vadd.f32 %v3285, %v3313
        %v3435 = vadd.f32 %v3288, %v3313
        %v3436 = vadd.f32 %v3291, %v3313
        %v3437 = vadd.f32 %v3294, %v3313
        %v3438 = vadd.f32 %v3297, %v3313
        %v3439 = vadd.f32 %v3300, %v3313
        %v3440 = vadd.f32 %v3303, %v3313
        %v3441 = vadd.f32 %v3306, %v3313
        %v3442 = vadd.f32 %v3309, %v3313
        %v3443 = vmax.f32 %v3315, 0.0
        %v3444 = vmax.f32 %v3316, 0.0
        %v3445 = vmax.f32 %v3317, 0.0
        %v3446 = vmax.f32 %v3318, 0.0
        %v3447 = vmax.f32 %v3319, 0.0
        %v3448 = vmax.f32 %v3320, 0.0
        %v3449 = vmax.f32 %v3321, 0.0
        %v3450 = vmax.f32 %v3322, 0.0
        %v3451 = vmax.f32 %v3323, 0.0
        %v3452 = vmax.f32 %v3324, 0.0
        %v3453 = vmax.f32 %v3325, 0.0
        %v3454 = vmax.f32 %v3326, 0.0
        %v3455 = vmax.f32 %v3327, 0.0
        %v3456 = vmax.f32 %v3328, 0.0
        %v3457 = vmax.f32 %v3329, 0.0
        %v3458 = vmax.f32 %v3330, 0.0
        %v3459 = vmax.f32 %v3331, 0.0
        %v3460 = vmax.f32 %v3332, 0.0
        %v3461 = vmax.f32 %v3333, 0.0
        %v3462 = vmax.f32 %v3334, 0.0
        %v3463 = vmax.f32 %v3335, 0.0
        %v3464 = vmax.f32 %v3336, 0.0
        %v3465 = vmax.f32 %v3337, 0.0
        %v3466 = vmax.f32 %v3338, 0.0
        %v3467 = vmax.f32 %v3339, 0.0
        %v3468 = vmax.f32 %v3340, 0.0
        %v3469 = vmax.f32 %v3341, 0.0
        %v3470 = vmax.f32 %v3342, 0.0
        %v3471 = vmax.f32 %v3343, 0.0
        %v3472 = vmax.f32 %v3344, 0.0
        %v3473 = vmax.f32 %v3345, 0.0
        %v3474 = vmax.f32 %v3346, 0.0
        %v3475 = vmax.f32 %v3347, 0.0
        %v3476 = vmax.f32 %v3348, 0.0
        %v3477 = vmax.f32 %v3349, 0.0
        %v3478 = vmax.f32 %v3350, 0.0
        %v3479 = vmax.f32 %v3351, 0.0
        %v3480 = vmax.f32 %v3352, 0.0
        %v3481 = vmax.f32 %v3353, 0.0
        %v3482 = vmax.f32 %v3354, 0.0
        %v3483 = vmax.f32 %v3355, 0.0
        %v3484 = vmax.f32 %v3356, 0.0
        %v3485 = vmax.f32 %v3357, 0.0
        %v3486 = vmax.f32 %v3358, 0.0
        %v3487 = vmax.f32 %v3359, 0.0
        %v3488 = vmax.f32 %v3360, 0.0
        %v3489 = vmax.f32 %v3361, 0.0
        %v3490 = vmax.f32 %v3362, 0.0
        %v3491 = vmax.f32 %v3363, 0.0
        %v3492 = vmax.f32 %v3364, 0.0
        %v3493 = vmax.f32 %v3365, 0.0
        %v3494 = vmax.f32 %v3366, 0.0
        %v3495 = vmax.f32 %v3367, 0.0
        %v3496 = vmax.f32 %v3368, 0.0
        %v3497 = vmax.f32 %v3369, 0.0
        %v3498 = vmax.f32 %v3370, 0.0
        %v3499 = vmax.f32 %v3371, 0.0
        %v3500 = vmax.f32 %v3372, 0.0
        %v3501 = vmax.f32 %v3373, 0.0
        %v3502 = vmax.f32 %v3374, 0.0
        %v3503 = vmax.f32 %v3375, 0.0
        %v3504 = vmax.f32 %v3376, 0.0
        %v3505 = vmax.f32 %v3377, 0.0
        %v3506 = vmax.f32 %v3378, 0.0
        %v3507 = vmax.f32 %v3379, 0.0
        %v3508 = vmax.f32 %v3380, 0.0
        %v3509 = vmax.f32 %v3381, 0.0
        %v3510 = vmax.f32 %v3382, 0.0
        %v3511 = vmax.f32 %v3383, 0.0
        %v3512 = vmax.f32 %v3384, 0.0
        %v3513 = vmax.f32 %v3385, 0.0
        %v3514 = vmax.f32 %v3386, 0.0
        %v3515 = vmax.f32 %v3387, 0.0
        %v3516 = vmax.f32 %v3388, 0.0
        %v3517 = vmax.f32 %v3389, 0.0
        %v3518 = vmax.f32 %v3390, 0.0
        %v3519 = vmax.f32 %v3391, 0.0
        %v3520 = vmax.f32 %v3392, 0.0
        %v3521 = vmax.f32 %v3393, 0.0
        %v3522 = vmax.f32 %v3394, 0.0
        %v3523 = vmax.f32 %v3395, 0.0
        %v3524 = vmax.f32 %v3396, 0.0
        %v3525 = vmax.f32 %v3397, 0.0
        %v3526 = vmax.f32 %v3398, 0.0
        %v3527 = vmax.f32 %v3399, 0.0
        %v3528 = vmax.f32 %v3400, 0.0
        %v3529 = vmax.f32 %v3401, 0.0
        %v3530 = vmax.f32 %v3402, 0.0
        %v3531 = vmax.f32 %v3403, 0.0
        %v3532 = vmax.f32 %v3404, 0.0
        %v3533 = vmax.f32 %v3405, 0.0
        %v3534 = vmax.f32 %v3406, 0.0
        %v3535 = vmax.f32 %v3407, 0.0
        %v3536 = vmax.f32 %v3408, 0.0
        %v3537 = vmax.f32 %v3409, 0.0
        %v3538 = vmax.f32 %v3410, 0.0
        %v3539 = vmax.f32 %v3411, 0.0
        %v3540 = vmax.f32 %v3412, 0.0
        %v3541 = vmax.f32 %v3413, 0.0
        %v3542 = vmax.f32 %v3414, 0.0
        %v3543 = vmax.f32 %v3415, 0.0
        %v3544 = vmax.f32 %v3416, 0.0
        %v3545 = vmax.f32 %v3417, 0.0
        %v3546 = vmax.f32 %v3418, 0.0
        %v3547 = vmax.f32 %v3419, 0.0
        %v3548 = vmax.f32 %v3420, 0.0
        %v3549 = vmax.f32 %v3421, 0.0
        %v3550 = vmax.f32 %v3422, 0.0
        %v3551 = vmax.f32 %v3423, 0.0
        %v3552 = vmax.f32 %v3424, 0.0
        %v3553 = vmax.f32 %v3425, 0.0
        %v3554 = vmax.f32 %v3426, 0.0
        %v3555 = vmax.f32 %v3427, 0.0
        %v3556 = vmax.f32 %v3428, 0.0
        %v3557 = vmax.f32 %v3429, 0.0
        %v3558 = vmax.f32 %v3430, 0.0
        %v3559 = vmax.f32 %v3431, 0.0
        %v3560 = vmax.f32 %v3432, 0.0
        %v3561 = vmax.f32 %v3433, 0.0
        %v3562 = vmax.f32 %v3434, 0.0
        %v3563 = vmax.f32 %v3435, 0.0
        %v3564 = vmax.f32 %v3436, 0.0
        %v3565 = vmax.f32 %v3437, 0.0
        %v3566 = vmax.f32 %v3438, 0.0
        %v3567 = vmax.f32 %v3439, 0.0
        %v3568 = vmax.f32 %v3440, 0.0
        %v3569 = vmax.f32 %v3441, 0.0
        %v3570 = vmax.f32 %v3442, 0.0
        %v3571 = vld [vmem:[%s7] sm:$0xff]
        %v3572 = vld [vmem:[%s7 + $0x8] sm:$0xff]
        %v3573 = vld [vmem:[%s7 + $0x10] sm:$0xff]
        %v3574 = vld [vmem:[%s7 + $0x18] sm:$0xff]
        %v3575 = vld [vmem:[%s7 + $0x20] sm:$0xff]
        %v3576 = vld [vmem:[%s7 + $0x28] sm:$0xff]
        %v3577 = vld [vmem:[%s7 + $0x30] sm:$0xff]
        %v3578 = vld [vmem:[%s7 + $0x38] sm:$0xff]
        %v3579 = vld [vmem:[%s7 + $0x40] sm:$0xff]
        %v3580 = vld [vmem:[%s7 + $0x48] sm:$0xff]
        %v3581 = vld [vmem:[%s7 + $0x50] sm:$0xff]
        %v3582 = vld [vmem:[%s7 + $0x58] sm:$0xff]
        %v3583 = vld [vmem:[%s7 + $0x60] sm:$0xff]
        %v3584 = vld [vmem:[%s7 + $0x68] sm:$0xff]
        %v3585 = vld [vmem:[%s7 + $0x70] sm:$0xff]
        %v3586 = vld [vmem:[%s7 + $0x78] sm:$0xff]
        %v3587 = vld [vmem:[%s8] sm:$0x1]
        %v3589 = vperm.slane %v3587, 0
        %3591 = vmatpush.msra.mxu0 %v3586
        %3592 = vmatpush.msra.mxu0 %v3585
        %3593 = vmatpush.msra.mxu0 %v3584
        %3594 = vmatpush.msra.mxu0 %v3583
        %3595 = vmatpush.msra.mxu0 %v3582
        %3596 = vmatpush.msra.mxu0 %v3581
        %3597 = vmatpush.msra.mxu0 %v3580
        %3598 = vmatpush.msra.mxu0 %v3579
        %3599 = vmatpush.msra.mxu0 %v3578
        %3600 = vmatpush.msra.mxu0 %v3577
        %3601 = vmatpush.msra.mxu0 %v3576
        %3602 = vmatpush.msra.mxu0 %v3575
        %3603 = vmatpush.msra.mxu0 %v3574
        %3604 = vmatpush.msra.mxu0 %v3573
        %3605 = vmatpush.msra.mxu0 %v3572
        %3606 = vmatpush.msra.mxu0 %v3571
        %3607 = vmatmul.f32.gmra.mxu0 %v3443
        %v3608 = vpop.f32.mrf.mxu0
        %v3609 = vadd.f32 %v3589, %v3608
        %3610 = vmatmul.f32.gmra.mxu0 %v3444
        %v3611 = vpop.f32.mrf.mxu0
        %v3612 = vadd.f32 %v3589, %v3611
        %3613 = vmatmul.f32.gmra.mxu0 %v3445
        %v3614 = vpop.f32.mrf.mxu0
        %v3615 = vadd.f32 %v3589, %v3614
        %3616 = vmatmul.f32.gmra.mxu0 %v3446
        %v3617 = vpop.f32.mrf.mxu0
        %v3618 = vadd.f32 %v3589, %v3617
        %3619 = vmatmul.f32.gmra.mxu0 %v3447
        %v3620 = vpop.f32.mrf.mxu0
        %v3621 = vadd.f32 %v3589, %v3620
        %3622 = vmatmul.f32.gmra.mxu0 %v3448
        %v3623 = vpop.f32.mrf.mxu0
        %v3624 = vadd.f32 %v3589, %v3623
        %3625 = vmatmul.f32.gmra.mxu0 %v3449
        %v3626 = vpop.f32.mrf.mxu0
        %v3627 = vadd.f32 %v3589, %v3626
        %3628 = vmatmul.f32.gmra.mxu0 %v3450
        %v3629 = vpop.f32.mrf.mxu0
        %v3630 = vadd.f32 %v3589, %v3629
        %3631 = vmatmul.f32.gmra.mxu0 %v3451
        %v3632 = vpop.f32.mrf.mxu0
        %v3633 = vadd.f32 %v3589, %v3632
        %3634 = vmatmul.f32.gmra.mxu0 %v3452
        %v3635 = vpop.f32.mrf.mxu0
        %v3636 = vadd.f32 %v3589, %v3635
        %3637 = vmatmul.f32.gmra.mxu0 %v3453
        %v3638 = vpop.f32.mrf.mxu0
        %v3639 = vadd.f32 %v3589, %v3638
        %3640 = vmatmul.f32.gmra.mxu0 %v3454
        %v3641 = vpop.f32.mrf.mxu0
        %v3642 = vadd.f32 %v3589, %v3641
        %3643 = vmatmul.f32.gmra.mxu0 %v3455
        %v3644 = vpop.f32.mrf.mxu0
        %v3645 = vadd.f32 %v3589, %v3644
        %3646 = vmatmul.f32.gmra.mxu0 %v3456
        %v3647 = vpop.f32.mrf.mxu0
        %v3648 = vadd.f32 %v3589, %v3647
        %3649 = vmatmul.f32.gmra.mxu0 %v3457
        %v3650 = vpop.f32.mrf.mxu0
        %v3651 = vadd.f32 %v3589, %v3650
        %3652 = vmatmul.f32.gmra.mxu0 %v3458
        %v3653 = vpop.f32.mrf.mxu0
        %v3654 = vadd.f32 %v3589, %v3653
        %3655 = vmatmul.f32.gmra.mxu0 %v3459
        %v3656 = vpop.f32.mrf.mxu0
        %v3657 = vadd.f32 %v3589, %v3656
        %3658 = vmatmul.f32.gmra.mxu0 %v3460
        %v3659 = vpop.f32.mrf.mxu0
        %v3660 = vadd.f32 %v3589, %v3659
        %3661 = vmatmul.f32.gmra.mxu0 %v3461
        %v3662 = vpop.f32.mrf.mxu0
        %v3663 = vadd.f32 %v3589, %v3662
        %3664 = vmatmul.f32.gmra.mxu0 %v3462
        %v3665 = vpop.f32.mrf.mxu0
        %v3666 = vadd.f32 %v3589, %v3665
        %3667 = vmatmul.f32.gmra.mxu0 %v3463
        %v3668 = vpop.f32.mrf.mxu0
        %v3669 = vadd.f32 %v3589, %v3668
        %3670 = vmatmul.f32.gmra.mxu0 %v3464
        %v3671 = vpop.f32.mrf.mxu0
        %v3672 = vadd.f32 %v3589, %v3671
        %3673 = vmatmul.f32.gmra.mxu0 %v3465
        %v3674 = vpop.f32.mrf.mxu0
        %v3675 = vadd.f32 %v3589, %v3674
        %3676 = vmatmul.f32.gmra.mxu0 %v3466
        %v3677 = vpop.f32.mrf.mxu0
        %v3678 = vadd.f32 %v3589, %v3677
        %3679 = vmatmul.f32.gmra.mxu0 %v3467
        %v3680 = vpop.f32.mrf.mxu0
        %v3681 = vadd.f32 %v3589, %v3680
        %3682 = vmatmul.f32.gmra.mxu0 %v3468
        %v3683 = vpop.f32.mrf.mxu0
        %v3684 = vadd.f32 %v3589, %v3683
        %3685 = vmatmul.f32.gmra.mxu0 %v3469
        %v3686 = vpop.f32.mrf.mxu0
        %v3687 = vadd.f32 %v3589, %v3686
        %3688 = vmatmul.f32.gmra.mxu0 %v3470
        %v3689 = vpop.f32.mrf.mxu0
        %v3690 = vadd.f32 %v3589, %v3689
        %3691 = vmatmul.f32.gmra.mxu0 %v3471
        %v3692 = vpop.f32.mrf.mxu0
        %v3693 = vadd.f32 %v3589, %v3692
        %3694 = vmatmul.f32.gmra.mxu0 %v3472
        %v3695 = vpop.f32.mrf.mxu0
        %v3696 = vadd.f32 %v3589, %v3695
        %3697 = vmatmul.f32.gmra.mxu0 %v3473
        %v3698 = vpop.f32.mrf.mxu0
        %v3699 = vadd.f32 %v3589, %v3698
        %3700 = vmatmul.f32.gmra.mxu0 %v3474
        %v3701 = vpop.f32.mrf.mxu0
        %v3702 = vadd.f32 %v3589, %v3701
        %3703 = vmatmul.f32.gmra.mxu0 %v3475
        %v3704 = vpop.f32.mrf.mxu0
        %v3705 = vadd.f32 %v3589, %v3704
        %3706 = vmatmul.f32.gmra.mxu0 %v3476
        %v3707 = vpop.f32.mrf.mxu0
        %v3708 = vadd.f32 %v3589, %v3707
        %3709 = vmatmul.f32.gmra.mxu0 %v3477
        %v3710 = vpop.f32.mrf.mxu0
        %v3711 = vadd.f32 %v3589, %v3710
        %3712 = vmatmul.f32.gmra.mxu0 %v3478
        %v3713 = vpop.f32.mrf.mxu0
        %v3714 = vadd.f32 %v3589, %v3713
        %3715 = vmatmul.f32.gmra.mxu0 %v3479
        %v3716 = vpop.f32.mrf.mxu0
        %v3717 = vadd.f32 %v3589, %v3716
        %3718 = vmatmul.f32.gmra.mxu0 %v3480
        %v3719 = vpop.f32.mrf.mxu0
        %v3720 = vadd.f32 %v3589, %v3719
        %3721 = vmatmul.f32.gmra.mxu0 %v3481
        %v3722 = vpop.f32.mrf.mxu0
        %v3723 = vadd.f32 %v3589, %v3722
        %3724 = vmatmul.f32.gmra.mxu0 %v3482
        %v3725 = vpop.f32.mrf.mxu0
        %v3726 = vadd.f32 %v3589, %v3725
        %3727 = vmatmul.f32.gmra.mxu0 %v3483
        %v3728 = vpop.f32.mrf.mxu0
        %v3729 = vadd.f32 %v3589, %v3728
        %3730 = vmatmul.f32.gmra.mxu0 %v3484
        %v3731 = vpop.f32.mrf.mxu0
        %v3732 = vadd.f32 %v3589, %v3731
        %3733 = vmatmul.f32.gmra.mxu0 %v3485
        %v3734 = vpop.f32.mrf.mxu0
        %v3735 = vadd.f32 %v3589, %v3734
        %3736 = vmatmul.f32.gmra.mxu0 %v3486
        %v3737 = vpop.f32.mrf.mxu0
        %v3738 = vadd.f32 %v3589, %v3737
        %3739 = vmatmul.f32.gmra.mxu0 %v3487
        %v3740 = vpop.f32.mrf.mxu0
        %v3741 = vadd.f32 %v3589, %v3740
        %3742 = vmatmul.f32.gmra.mxu0 %v3488
        %v3743 = vpop.f32.mrf.mxu0
        %v3744 = vadd.f32 %v3589, %v3743
        %3745 = vmatmul.f32.gmra.mxu0 %v3489
        %v3746 = vpop.f32.mrf.mxu0
        %v3747 = vadd.f32 %v3589, %v3746
        %3748 = vmatmul.f32.gmra.mxu0 %v3490
        %v3749 = vpop.f32.mrf.mxu0
        %v3750 = vadd.f32 %v3589, %v3749
        %3751 = vmatmul.f32.gmra.mxu0 %v3491
        %v3752 = vpop.f32.mrf.mxu0
        %v3753 = vadd.f32 %v3589, %v3752
        %3754 = vmatmul.f32.gmra.mxu0 %v3492
        %v3755 = vpop.f32.mrf.mxu0
        %v3756 = vadd.f32 %v3589, %v3755
        %3757 = vmatmul.f32.gmra.mxu0 %v3493
        %v3758 = vpop.f32.mrf.mxu0
        %v3759 = vadd.f32 %v3589, %v3758
        %3760 = vmatmul.f32.gmra.mxu0 %v3494
        %v3761 = vpop.f32.mrf.mxu0
        %v3762 = vadd.f32 %v3589, %v3761
        %3763 = vmatmul.f32.gmra.mxu0 %v3495
        %v3764 = vpop.f32.mrf.mxu0
        %v3765 = vadd.f32 %v3589, %v3764
        %3766 = vmatmul.f32.gmra.mxu0 %v3496
        %v3767 = vpop.f32.mrf.mxu0
        %v3768 = vadd.f32 %v3589, %v3767
        %3769 = vmatmul.f32.gmra.mxu0 %v3497
        %v3770 = vpop.f32.mrf.mxu0
        %v3771 = vadd.f32 %v3589, %v3770
        %3772 = vmatmul.f32.gmra.mxu0 %v3498
        %v3773 = vpop.f32.mrf.mxu0
        %v3774 = vadd.f32 %v3589, %v3773
        %3775 = vmatmul.f32.gmra.mxu0 %v3499
        %v3776 = vpop.f32.mrf.mxu0
        %v3777 = vadd.f32 %v3589, %v3776
        %3778 = vmatmul.f32.gmra.mxu0 %v3500
        %v3779 = vpop.f32.mrf.mxu0
        %v3780 = vadd.f32 %v3589, %v3779
        %3781 = vmatmul.f32.gmra.mxu0 %v3501
        %v3782 = vpop.f32.mrf.mxu0
        %v3783 = vadd.f32 %v3589, %v3782
        %3784 = vmatmul.f32.gmra.mxu0 %v3502
        %v3785 = vpop.f32.mrf.mxu0
        %v3786 = vadd.f32 %v3589, %v3785
        %3787 = vmatmul.f32.gmra.mxu0 %v3503
        %v3788 = vpop.f32.mrf.mxu0
        %v3789 = vadd.f32 %v3589, %v3788
        %3790 = vmatmul.f32.gmra.mxu0 %v3504
        %v3791 = vpop.f32.mrf.mxu0
        %v3792 = vadd.f32 %v3589, %v3791
        %3793 = vmatmul.f32.gmra.mxu0 %v3505
        %v3794 = vpop.f32.mrf.mxu0
        %v3795 = vadd.f32 %v3589, %v3794
        %3796 = vmatmul.f32.gmra.mxu0 %v3506
        %v3797 = vpop.f32.mrf.mxu0
        %v3798 = vadd.f32 %v3589, %v3797
        %3799 = vmatmul.f32.gmra.mxu0 %v3507
        %v3800 = vpop.f32.mrf.mxu0
        %v3801 = vadd.f32 %v3589, %v3800
        %3802 = vmatmul.f32.gmra.mxu0 %v3508
        %v3803 = vpop.f32.mrf.mxu0
        %v3804 = vadd.f32 %v3589, %v3803
        %3805 = vmatmul.f32.gmra.mxu0 %v3509
        %v3806 = vpop.f32.mrf.mxu0
        %v3807 = vadd.f32 %v3589, %v3806
        %3808 = vmatmul.f32.gmra.mxu0 %v3510
        %v3809 = vpop.f32.mrf.mxu0
        %v3810 = vadd.f32 %v3589, %v3809
        %3811 = vmatmul.f32.gmra.mxu0 %v3511
        %v3812 = vpop.f32.mrf.mxu0
        %v3813 = vadd.f32 %v3589, %v3812
        %3814 = vmatmul.f32.gmra.mxu0 %v3512
        %v3815 = vpop.f32.mrf.mxu0
        %v3816 = vadd.f32 %v3589, %v3815
        %3817 = vmatmul.f32.gmra.mxu0 %v3513
        %v3818 = vpop.f32.mrf.mxu0
        %v3819 = vadd.f32 %v3589, %v3818
        %3820 = vmatmul.f32.gmra.mxu0 %v3514
        %v3821 = vpop.f32.mrf.mxu0
        %v3822 = vadd.f32 %v3589, %v3821
        %3823 = vmatmul.f32.gmra.mxu0 %v3515
        %v3824 = vpop.f32.mrf.mxu0
        %v3825 = vadd.f32 %v3589, %v3824
        %3826 = vmatmul.f32.gmra.mxu0 %v3516
        %v3827 = vpop.f32.mrf.mxu0
        %v3828 = vadd.f32 %v3589, %v3827
        %3829 = vmatmul.f32.gmra.mxu0 %v3517
        %v3830 = vpop.f32.mrf.mxu0
        %v3831 = vadd.f32 %v3589, %v3830
        %3832 = vmatmul.f32.gmra.mxu0 %v3518
        %v3833 = vpop.f32.mrf.mxu0
        %v3834 = vadd.f32 %v3589, %v3833
        %3835 = vmatmul.f32.gmra.mxu0 %v3519
        %v3836 = vpop.f32.mrf.mxu0
        %v3837 = vadd.f32 %v3589, %v3836
        %3838 = vmatmul.f32.gmra.mxu0 %v3520
        %v3839 = vpop.f32.mrf.mxu0
        %v3840 = vadd.f32 %v3589, %v3839
        %3841 = vmatmul.f32.gmra.mxu0 %v3521
        %v3842 = vpop.f32.mrf.mxu0
        %v3843 = vadd.f32 %v3589, %v3842
        %3844 = vmatmul.f32.gmra.mxu0 %v3522
        %v3845 = vpop.f32.mrf.mxu0
        %v3846 = vadd.f32 %v3589, %v3845
        %3847 = vmatmul.f32.gmra.mxu0 %v3523
        %v3848 = vpop.f32.mrf.mxu0
        %v3849 = vadd.f32 %v3589, %v3848
        %3850 = vmatmul.f32.gmra.mxu0 %v3524
        %v3851 = vpop.f32.mrf.mxu0
        %v3852 = vadd.f32 %v3589, %v3851
        %3853 = vmatmul.f32.gmra.mxu0 %v3525
        %v3854 = vpop.f32.mrf.mxu0
        %v3855 = vadd.f32 %v3589, %v3854
        %3856 = vmatmul.f32.gmra.mxu0 %v3526
        %v3857 = vpop.f32.mrf.mxu0
        %v3858 = vadd.f32 %v3589, %v3857
        %3859 = vmatmul.f32.gmra.mxu0 %v3527
        %v3860 = vpop.f32.mrf.mxu0
        %v3861 = vadd.f32 %v3589, %v3860
        %3862 = vmatmul.f32.gmra.mxu0 %v3528
        %v3863 = vpop.f32.mrf.mxu0
        %v3864 = vadd.f32 %v3589, %v3863
        %3865 = vmatmul.f32.gmra.mxu0 %v3529
        %v3866 = vpop.f32.mrf.mxu0
        %v3867 = vadd.f32 %v3589, %v3866
        %3868 = vmatmul.f32.gmra.mxu0 %v3530
        %v3869 = vpop.f32.mrf.mxu0
        %v3870 = vadd.f32 %v3589, %v3869
        %3871 = vmatmul.f32.gmra.mxu0 %v3531
        %v3872 = vpop.f32.mrf.mxu0
        %v3873 = vadd.f32 %v3589, %v3872
        %3874 = vmatmul.f32.gmra.mxu0 %v3532
        %v3875 = vpop.f32.mrf.mxu0
        %v3876 = vadd.f32 %v3589, %v3875
        %3877 = vmatmul.f32.gmra.mxu0 %v3533
        %v3878 = vpop.f32.mrf.mxu0
        %v3879 = vadd.f32 %v3589, %v3878
        %3880 = vmatmul.f32.gmra.mxu0 %v3534
        %v3881 = vpop.f32.mrf.mxu0
        %v3882 = vadd.f32 %v3589, %v3881
        %3883 = vmatmul.f32.gmra.mxu0 %v3535
        %v3884 = vpop.f32.mrf.mxu0
        %v3885 = vadd.f32 %v3589, %v3884
        %3886 = vmatmul.f32.gmra.mxu0 %v3536
        %v3887 = vpop.f32.mrf.mxu0
        %v3888 = vadd.f32 %v3589, %v3887
        %3889 = vmatmul.f32.gmra.mxu0 %v3537
        %v3890 = vpop.f32.mrf.mxu0
        %v3891 = vadd.f32 %v3589, %v3890
        %3892 = vmatmul.f32.gmra.mxu0 %v3538
        %v3893 = vpop.f32.mrf.mxu0
        %v3894 = vadd.f32 %v3589, %v3893
        %3895 = vmatmul.f32.gmra.mxu0 %v3539
        %v3896 = vpop.f32.mrf.mxu0
        %v3897 = vadd.f32 %v3589, %v3896
        %3898 = vmatmul.f32.gmra.mxu0 %v3540
        %v3899 = vpop.f32.mrf.mxu0
        %v3900 = vadd.f32 %v3589, %v3899
        %3901 = vmatmul.f32.gmra.mxu0 %v3541
        %v3902 = vpop.f32.mrf.mxu0
        %v3903 = vadd.f32 %v3589, %v3902
        %3904 = vmatmul.f32.gmra.mxu0 %v3542
        %v3905 = vpop.f32.mrf.mxu0
        %v3906 = vadd.f32 %v3589, %v3905
        %3907 = vmatmul.f32.gmra.mxu0 %v3543
        %v3908 = vpop.f32.mrf.mxu0
        %v3909 = vadd.f32 %v3589, %v3908
        %3910 = vmatmul.f32.gmra.mxu0 %v3544
        %v3911 = vpop.f32.mrf.mxu0
        %v3912 = vadd.f32 %v3589, %v3911
        %3913 = vmatmul.f32.gmra.mxu0 %v3545
        %v3914 = vpop.f32.mrf.mxu0
        %v3915 = vadd.f32 %v3589, %v3914
        %3916 = vmatmul.f32.gmra.mxu0 %v3546
        %v3917 = vpop.f32.mrf.mxu0
        %v3918 = vadd.f32 %v3589, %v3917
        %3919 = vmatmul.f32.gmra.mxu0 %v3547
        %v3920 = vpop.f32.mrf.mxu0
        %v3921 = vadd.f32 %v3589, %v3920
        %3922 = vmatmul.f32.gmra.mxu0 %v3548
        %v3923 = vpop.f32.mrf.mxu0
        %v3924 = vadd.f32 %v3589, %v3923
        %3925 = vmatmul.f32.gmra.mxu0 %v3549
        %v3926 = vpop.f32.mrf.mxu0
        %v3927 = vadd.f32 %v3589, %v3926
        %3928 = vmatmul.f32.gmra.mxu0 %v3550
        %v3929 = vpop.f32.mrf.mxu0
        %v3930 = vadd.f32 %v3589, %v3929
        %3931 = vmatmul.f32.gmra.mxu0 %v3551
        %v3932 = vpop.f32.mrf.mxu0
        %v3933 = vadd.f32 %v3589, %v3932
        %3934 = vmatmul.f32.gmra.mxu0 %v3552
        %v3935 = vpop.f32.mrf.mxu0
        %v3936 = vadd.f32 %v3589, %v3935
        %3937 = vmatmul.f32.gmra.mxu0 %v3553
        %v3938 = vpop.f32.mrf.mxu0
        %v3939 = vadd.f32 %v3589, %v3938
        %3940 = vmatmul.f32.gmra.mxu0 %v3554
        %v3941 = vpop.f32.mrf.mxu0
        %v3942 = vadd.f32 %v3589, %v3941
        %3943 = vmatmul.f32.gmra.mxu0 %v3555
        %v3944 = vpop.f32.mrf.mxu0
        %v3945 = vadd.f32 %v3589, %v3944
        %3946 = vmatmul.f32.gmra.mxu0 %v3556
        %v3947 = vpop.f32.mrf.mxu0
        %v3948 = vadd.f32 %v3589, %v3947
        %3949 = vmatmul.f32.gmra.mxu0 %v3557
        %v3950 = vpop.f32.mrf.mxu0
        %v3951 = vadd.f32 %v3589, %v3950
        %3952 = vmatmul.f32.gmra.mxu0 %v3558
        %v3953 = vpop.f32.mrf.mxu0
        %v3954 = vadd.f32 %v3589, %v3953
        %3955 = vmatmul.f32.gmra.mxu0 %v3559
        %v3956 = vpop.f32.mrf.mxu0
        %v3957 = vadd.f32 %v3589, %v3956
        %3958 = vmatmul.f32.gmra.mxu0 %v3560
        %v3959 = vpop.f32.mrf.mxu0
        %v3960 = vadd.f32 %v3589, %v3959
        %3961 = vmatmul.f32.gmra.mxu0 %v3561
        %v3962 = vpop.f32.mrf.mxu0
        %v3963 = vadd.f32 %v3589, %v3962
        %3964 = vmatmul.f32.gmra.mxu0 %v3562
        %v3965 = vpop.f32.mrf.mxu0
        %v3966 = vadd.f32 %v3589, %v3965
        %3967 = vmatmul.f32.gmra.mxu0 %v3563
        %v3968 = vpop.f32.mrf.mxu0
        %v3969 = vadd.f32 %v3589, %v3968
        %3970 = vmatmul.f32.gmra.mxu0 %v3564
        %v3971 = vpop.f32.mrf.mxu0
        %v3972 = vadd.f32 %v3589, %v3971
        %3973 = vmatmul.f32.gmra.mxu0 %v3565
        %v3974 = vpop.f32.mrf.mxu0
        %v3975 = vadd.f32 %v3589, %v3974
        %3976 = vmatmul.f32.gmra.mxu0 %v3566
        %v3977 = vpop.f32.mrf.mxu0
        %v3978 = vadd.f32 %v3589, %v3977
        %3979 = vmatmul.f32.gmra.mxu0 %v3567
        %v3980 = vpop.f32.mrf.mxu0
        %v3981 = vadd.f32 %v3589, %v3980
        %3982 = vmatmul.f32.gmra.mxu0 %v3568
        %v3983 = vpop.f32.mrf.mxu0
        %v3984 = vadd.f32 %v3589, %v3983
        %3985 = vmatmul.f32.gmra.mxu0 %v3569
        %v3986 = vpop.f32.mrf.mxu0
        %v3987 = vadd.f32 %v3589, %v3986
        %3988 = vmatmul.f32.gmra.mxu0 %v3570
        %v3989 = vpop.f32.mrf.mxu0
        %v3990 = vadd.f32 %v3589, %v3989
        %3991 = vdwg.mxu0
        %v3992 = vmax.f32 %v3609, 0.0
        %v3993 = vmax.f32 %v3612, 0.0
        %v3994 = vmax.f32 %v3615, 0.0
        %v3995 = vmax.f32 %v3618, 0.0
        %v3996 = vmax.f32 %v3621, 0.0
        %v3997 = vmax.f32 %v3624, 0.0
        %v3998 = vmax.f32 %v3627, 0.0
        %v3999 = vmax.f32 %v3630, 0.0
        %v4000 = vmax.f32 %v3633, 0.0
        %v4001 = vmax.f32 %v3636, 0.0
        %v4002 = vmax.f32 %v3639, 0.0
        %v4003 = vmax.f32 %v3642, 0.0
        %v4004 = vmax.f32 %v3645, 0.0
        %v4005 = vmax.f32 %v3648, 0.0
        %v4006 = vmax.f32 %v3651, 0.0
        %v4007 = vmax.f32 %v3654, 0.0
        %v4008 = vmax.f32 %v3657, 0.0
        %v4009 = vmax.f32 %v3660, 0.0
        %v4010 = vmax.f32 %v3663, 0.0
        %v4011 = vmax.f32 %v3666, 0.0
        %v4012 = vmax.f32 %v3669, 0.0
        %v4013 = vmax.f32 %v3672, 0.0
        %v4014 = vmax.f32 %v3675, 0.0
        %v4015 = vmax.f32 %v3678, 0.0
        %v4016 = vmax.f32 %v3681, 0.0
        %v4017 = vmax.f32 %v3684, 0.0
        %v4018 = vmax.f32 %v3687, 0.0
        %v4019 = vmax.f32 %v3690, 0.0
        %v4020 = vmax.f32 %v3693, 0.0
        %v4021 = vmax.f32 %v3696, 0.0
        %v4022 = vmax.f32 %v3699, 0.0
        %v4023 = vmax.f32 %v3702, 0.0
        %v4024 = vmax.f32 %v3705, 0.0
        %v4025 = vmax.f32 %v3708, 0.0
        %v4026 = vmax.f32 %v3711, 0.0
        %v4027 = vmax.f32 %v3714, 0.0
        %v4028 = vmax.f32 %v3717, 0.0
        %v4029 = vmax.f32 %v3720, 0.0
        %v4030 = vmax.f32 %v3723, 0.0
        %v4031 = vmax.f32 %v3726, 0.0
        %v4032 = vmax.f32 %v3729, 0.0
        %v4033 = vmax.f32 %v3732, 0.0
        %v4034 = vmax.f32 %v3735, 0.0
        %v4035 = vmax.f32 %v3738, 0.0
        %v4036 = vmax.f32 %v3741, 0.0
        %v4037 = vmax.f32 %v3744, 0.0
        %v4038 = vmax.f32 %v3747, 0.0
        %v4039 = vmax.f32 %v3750, 0.0
        %v4040 = vmax.f32 %v3753, 0.0
        %v4041 = vmax.f32 %v3756, 0.0
        %v4042 = vmax.f32 %v3759, 0.0
        %v4043 = vmax.f32 %v3762, 0.0
        %v4044 = vmax.f32 %v3765, 0.0
        %v4045 = vmax.f32 %v3768, 0.0
        %v4046 = vmax.f32 %v3771, 0.0
        %v4047 = vmax.f32 %v3774, 0.0
        %v4048 = vmax.f32 %v3777, 0.0
        %v4049 = vmax.f32 %v3780, 0.0
        %v4050 = vmax.f32 %v3783, 0.0
        %v4051 = vmax.f32 %v3786, 0.0
        %v4052 = vmax.f32 %v3789, 0.0
        %v4053 = vmax.f32 %v3792, 0.0
        %v4054 = vmax.f32 %v3795, 0.0
        %v4055 = vmax.f32 %v3798, 0.0
        %v4056 = vmax.f32 %v3801, 0.0
        %v4057 = vmax.f32 %v3804, 0.0
        %v4058 = vmax.f32 %v3807, 0.0
        %v4059 = vmax.f32 %v3810, 0.0
        %v4060 = vmax.f32 %v3813, 0.0
        %v4061 = vmax.f32 %v3816, 0.0
        %v4062 = vmax.f32 %v3819, 0.0
        %v4063 = vmax.f32 %v3822, 0.0
        %v4064 = vmax.f32 %v3825, 0.0
        %v4065 = vmax.f32 %v3828, 0.0
        %v4066 = vmax.f32 %v3831, 0.0
        %v4067 = vmax.f32 %v3834, 0.0
        %v4068 = vmax.f32 %v3837, 0.0
        %v4069 = vmax.f32 %v3840, 0.0
        %v4070 = vmax.f32 %v3843, 0.0
        %v4071 = vmax.f32 %v3846, 0.0
        %v4072 = vmax.f32 %v3849, 0.0
        %v4073 = vmax.f32 %v3852, 0.0
        %v4074 = vmax.f32 %v3855, 0.0
        %v4075 = vmax.f32 %v3858, 0.0
        %v4076 = vmax.f32 %v3861, 0.0
        %v4077 = vmax.f32 %v3864, 0.0
        %v4078 = vmax.f32 %v3867, 0.0
        %v4079 = vmax.f32 %v3870, 0.0
        %v4080 = vmax.f32 %v3873, 0.0
        %v4081 = vmax.f32 %v3876, 0.0
        %v4082 = vmax.f32 %v3879, 0.0
        %v4083 = vmax.f32 %v3882, 0.0
        %v4084 = vmax.f32 %v3885, 0.0
        %v4085 = vmax.f32 %v3888, 0.0
        %v4086 = vmax.f32 %v3891, 0.0
        %v4087 = vmax.f32 %v3894, 0.0
        %v4088 = vmax.f32 %v3897, 0.0
        %v4089 = vmax.f32 %v3900, 0.0
        %v4090 = vmax.f32 %v3903, 0.0
        %v4091 = vmax.f32 %v3906, 0.0
        %v4092 = vmax.f32 %v3909, 0.0
        %v4093 = vmax.f32 %v3912, 0.0
        %v4094 = vmax.f32 %v3915, 0.0
        %v4095 = vmax.f32 %v3918, 0.0
        %v4096 = vmax.f32 %v3921, 0.0
        %v4097 = vmax.f32 %v3924, 0.0
        %v4098 = vmax.f32 %v3927, 0.0
        %v4099 = vmax.f32 %v3930, 0.0
        %v4100 = vmax.f32 %v3933, 0.0
        %v4101 = vmax.f32 %v3936, 0.0
        %v4102 = vmax.f32 %v3939, 0.0
        %v4103 = vmax.f32 %v3942, 0.0
        %v4104 = vmax.f32 %v3945, 0.0
        %v4105 = vmax.f32 %v3948, 0.0
        %v4106 = vmax.f32 %v3951, 0.0
        %v4107 = vmax.f32 %v3954, 0.0
        %v4108 = vmax.f32 %v3957, 0.0
        %v4109 = vmax.f32 %v3960, 0.0
        %v4110 = vmax.f32 %v3963, 0.0
        %v4111 = vmax.f32 %v3966, 0.0
        %v4112 = vmax.f32 %v3969, 0.0
        %v4113 = vmax.f32 %v3972, 0.0
        %v4114 = vmax.f32 %v3975, 0.0
        %v4115 = vmax.f32 %v3978, 0.0
        %v4116 = vmax.f32 %v3981, 0.0
        %v4117 = vmax.f32 %v3984, 0.0
        %v4118 = vmax.f32 %v3987, 0.0
        %v4119 = vmax.f32 %v3990, 0.0
        %v4120 = vld [vmem:[%s9] sm:$0xff]
        %4121 = vmatpush.xpose.msra.mxu0 %v4007
        %4122 = vmatpush.xpose.msra.mxu0 %v4006
        %4123 = vmatpush.xpose.msra.mxu0 %v4005
        %4124 = vmatpush.xpose.msra.mxu0 %v4004
        %4125 = vmatpush.xpose.msra.mxu0 %v4003
        %4126 = vmatpush.xpose.msra.mxu0 %v4002
        %4127 = vmatpush.xpose.msra.mxu0 %v4001
        %4128 = vmatpush.xpose.msra.mxu0 %v4000
        %4129 = vmatpush.xpose.msra.mxu0 %v3999
        %4130 = vmatpush.xpose.msra.mxu0 %v3998
        %4131 = vmatpush.xpose.msra.mxu0 %v3997
        %4132 = vmatpush.xpose.msra.mxu0 %v3996
        %4133 = vmatpush.xpose.msra.mxu0 %v3995
        %4134 = vmatpush.xpose.msra.mxu0 %v3994
        %4135 = vmatpush.xpose.msra.mxu0 %v3993
        %4136 = vmatpush.xpose.msra.mxu0 %v3992
        %4137 = vmatmul.f32.gmra.mxu0 %v4120
        %v4138 = vpop.f32.mrf.mxu0
        %v4139 = vadd.f32 0.0, %v4138
        %4140 = vdwg.mxu0
        %4141 = vmatpush.xpose.msra.mxu0 %v4023
        %4142 = vmatpush.xpose.msra.mxu0 %v4022
        %4143 = vmatpush.xpose.msra.mxu0 %v4021
        %4144 = vmatpush.xpose.msra.mxu0 %v4020
        %4145 = vmatpush.xpose.msra.mxu0 %v4019
        %4146 = vmatpush.xpose.msra.mxu0 %v4018
        %4147 = vmatpush.xpose.msra.mxu0 %v4017
        %4148 = vmatpush.xpose.msra.mxu0 %v4016
        %4149 = vmatpush.xpose.msra.mxu0 %v4015
        %4150 = vmatpush.xpose.msra.mxu0 %v4014
        %4151 = vmatpush.xpose.msra.mxu0 %v4013
        %4152 = vmatpush.xpose.msra.mxu0 %v4012
        %4153 = vmatpush.xpose.msra.mxu0 %v4011
        %4154 = vmatpush.xpose.msra.mxu0 %v4010
        %4155 = vmatpush.xpose.msra.mxu0 %v4009
        %4156 = vmatpush.xpose.msra.mxu0 %v4008
        %4157 = vmatmul.f32.gmra.mxu0 %v4120
        %v4158 = vpop.f32.mrf.mxu0
        %v4159 = vadd.f32 0.0, %v4158
        %4160 = vdwg.mxu0
        %4161 = vmatpush.xpose.msra.mxu0 %v4039
        %4162 = vmatpush.xpose.msra.mxu0 %v4038
        %4163 = vmatpush.xpose.msra.mxu0 %v4037
        %4164 = vmatpush.xpose.msra.mxu0 %v4036
        %4165 = vmatpush.xpose.msra.mxu0 %v4035
        %4166 = vmatpush.xpose.msra.mxu0 %v4034
        %4167 = vmatpush.xpose.msra.mxu0 %v4033
        %4168 = vmatpush.xpose.msra.mxu0 %v4032
        %4169 = vmatpush.xpose.msra.mxu0 %v4031
        %4170 = vmatpush.xpose.msra.mxu0 %v4030
        %4171 = vmatpush.xpose.msra.mxu0 %v4029
        %4172 = vmatpush.xpose.msra.mxu0 %v4028
        %4173 = vmatpush.xpose.msra.mxu0 %v4027
        %4174 = vmatpush.xpose.msra.mxu0 %v4026
        %4175 = vmatpush.xpose.msra.mxu0 %v4025
        %4176 = vmatpush.xpose.msra.mxu0 %v4024
        %4177 = vmatmul.f32.gmra.mxu0 %v4120
        %v4178 = vpop.f32.mrf.mxu0
        %v4179 = vadd.f32 0.0, %v4178
        %4180 = vdwg.mxu0
        %4181 = vmatpush.xpose.msra.mxu0 %v4055
        %4182 = vmatpush.xpose.msra.mxu0 %v4054
        %4183 = vmatpush.xpose.msra.mxu0 %v4053
        %4184 = vmatpush.xpose.msra.mxu0 %v4052
        %4185 = vmatpush.xpose.msra.mxu0 %v4051
        %4186 = vmatpush.xpose.msra.mxu0 %v4050
        %4187 = vmatpush.xpose.msra.mxu0 %v4049
        %4188 = vmatpush.xpose.msra.mxu0 %v4048
        %4189 = vmatpush.xpose.msra.mxu0 %v4047
        %4190 = vmatpush.xpose.msra.mxu0 %v4046
        %4191 = vmatpush.xpose.msra.mxu0 %v4045
        %4192 = vmatpush.xpose.msra.mxu0 %v4044
        %4193 = vmatpush.xpose.msra.mxu0 %v4043
        %4194 = vmatpush.xpose.msra.mxu0 %v4042
        %4195 = vmatpush.xpose.msra.mxu0 %v4041
        %4196 = vmatpush.xpose.msra.mxu0 %v4040
        %4197 = vmatmul.f32.gmra.mxu0 %v4120
        %v4198 = vpop.f32.mrf.mxu0
        %v4199 = vadd.f32 0.0, %v4198
        %4200 = vdwg.mxu0
        %4201 = vmatpush.xpose.msra.mxu0 %v4071
        %4202 = vmatpush.xpose.msra.mxu0 %v4070
        %4203 = vmatpush.xpose.msra.mxu0 %v4069
        %4204 = vmatpush.xpose.msra.mxu0 %v4068
        %4205 = vmatpush.xpose.msra.mxu0 %v4067
        %4206 = vmatpush.xpose.msra.mxu0 %v4066
        %4207 = vmatpush.xpose.msra.mxu0 %v4065
        %4208 = vmatpush.xpose.msra.mxu0 %v4064
        %4209 = vmatpush.xpose.msra.mxu0 %v4063
        %4210 = vmatpush.xpose.msra.mxu0 %v4062
        %4211 = vmatpush.xpose.msra.mxu0 %v4061
        %4212 = vmatpush.xpose.msra.mxu0 %v4060
        %4213 = vmatpush.xpose.msra.mxu0 %v4059
        %4214 = vmatpush.xpose.msra.mxu0 %v4058
        %4215 = vmatpush.xpose.msra.mxu0 %v4057
        %4216 = vmatpush.xpose.msra.mxu0 %v4056
        %4217 = vmatmul.f32.gmra.mxu0 %v4120
        %v4218 = vpop.f32.mrf.mxu0
        %v4219 = vadd.f32 0.0, %v4218
        %4220 = vdwg.mxu0
        %4221 = vmatpush.xpose.msra.mxu0 %v4087
        %4222 = vmatpush.xpose.msra.mxu0 %v4086
        %4223 = vmatpush.xpose.msra.mxu0 %v4085
        %4224 = vmatpush.xpose.msra.mxu0 %v4084
        %4225 = vmatpush.xpose.msra.mxu0 %v4083
        %4226 = vmatpush.xpose.msra.mxu0 %v4082
        %4227 = vmatpush.xpose.msra.mxu0 %v4081
        %4228 = vmatpush.xpose.msra.mxu0 %v4080
        %4229 = vmatpush.xpose.msra.mxu0 %v4079
        %4230 = vmatpush.xpose.msra.mxu0 %v4078
        %4231 = vmatpush.xpose.msra.mxu0 %v4077
        %4232 = vmatpush.xpose.msra.mxu0 %v4076
        %4233 = vmatpush.xpose.msra.mxu0 %v4075
        %4234 = vmatpush.xpose.msra.mxu0 %v4074
        %4235 = vmatpush.xpose.msra.mxu0 %v4073
        %4236 = vmatpush.xpose.msra.mxu0 %v4072
        %4237 = vmatmul.f32.gmra.mxu0 %v4120
        %v4238 = vpop.f32.mrf.mxu0
        %v4239 = vadd.f32 0.0, %v4238
        %4240 = vdwg.mxu0
        %4241 = vmatpush.xpose.msra.mxu0 %v4103
        %4242 = vmatpush.xpose.msra.mxu0 %v4102
        %4243 = vmatpush.xpose.msra.mxu0 %v4101
        %4244 = vmatpush.xpose.msra.mxu0 %v4100
        %4245 = vmatpush.xpose.msra.mxu0 %v4099
        %4246 = vmatpush.xpose.msra.mxu0 %v4098
        %4247 = vmatpush.xpose.msra.mxu0 %v4097
        %4248 = vmatpush.xpose.msra.mxu0 %v4096
        %4249 = vmatpush.xpose.msra.mxu0 %v4095
        %4250 = vmatpush.xpose.msra.mxu0 %v4094
        %4251 = vmatpush.xpose.msra.mxu0 %v4093
        %4252 = vmatpush.xpose.msra.mxu0 %v4092
        %4253 = vmatpush.xpose.msra.mxu0 %v4091
        %4254 = vmatpush.xpose.msra.mxu0 %v4090
        %4255 = vmatpush.xpose.msra.mxu0 %v4089
        %4256 = vmatpush.xpose.msra.mxu0 %v4088
        %4257 = vmatmul.f32.gmra.mxu0 %v4120
        %v4258 = vpop.f32.mrf.mxu0
        %v4259 = vadd.f32 0.0, %v4258
        %4260 = vdwg.mxu0
        %4261 = vmatpush.xpose.msra.mxu0 %v4119
        %4262 = vmatpush.xpose.msra.mxu0 %v4118
        %4263 = vmatpush.xpose.msra.mxu0 %v4117
        %4264 = vmatpush.xpose.msra.mxu0 %v4116
        %4265 = vmatpush.xpose.msra.mxu0 %v4115
        %4266 = vmatpush.xpose.msra.mxu0 %v4114
        %4267 = vmatpush.xpose.msra.mxu0 %v4113
        %4268 = vmatpush.xpose.msra.mxu0 %v4112
        %4269 = vmatpush.xpose.msra.mxu0 %v4111
        %4270 = vmatpush.xpose.msra.mxu0 %v4110
        %4271 = vmatpush.xpose.msra.mxu0 %v4109
        %4272 = vmatpush.xpose.msra.mxu0 %v4108
        %4273 = vmatpush.xpose.msra.mxu0 %v4107
        %4274 = vmatpush.xpose.msra.mxu0 %v4106
        %4275 = vmatpush.xpose.msra.mxu0 %v4105
        %4276 = vmatpush.xpose.msra.mxu0 %v4104
        %4277 = vmatmul.f32.gmra.mxu0 %v4120
        %v4278 = vpop.f32.mrf.mxu0
        %v4279 = vadd.f32 0.0, %v4278
        %4280 = vdwg.mxu0
        %v4281 = vld [vmem:[#allocation2] sm:$0x1]
        %4283 = vset.pattern.permute.xlu0 0
        %4284 = vperm.xlu0 %4283, %v4281
        %v4285 = vpop.permute.xlu0 %4284
        %v4287 = vperm.slane %v4285, 0
        %v4288 = vadd.f32 %v4139, %v4287
        %v4289 = vadd.f32 %v4159, %v4287
        %v4290 = vadd.f32 %v4179, %v4287
        %v4291 = vadd.f32 %v4199, %v4287
        %v4292 = vadd.f32 %v4219, %v4287
        %v4293 = vadd.f32 %v4239, %v4287
        %v4294 = vadd.f32 %v4259, %v4287
        %v4295 = vadd.f32 %v4279, %v4287
        %v4296 = vxor.u32 %v4288, 2147483648
        %v4297 = vxor.u32 %v4289, 2147483648
        %v4298 = vxor.u32 %v4290, 2147483648
        %v4299 = vxor.u32 %v4291, 2147483648
        %v4300 = vxor.u32 %v4292, 2147483648
        %v4301 = vxor.u32 %v4293, 2147483648
        %v4302 = vxor.u32 %v4294, 2147483648
        %v4303 = vxor.u32 %v4295, 2147483648
        %v4304 = vmul.f32 %v4296, 1.442695
        %v4305 = vpow.pop %v4304
        %v4306 = vmul.f32 %v4297, 1.442695
        %v4307 = vpow.pop %v4306
        %v4308 = vmul.f32 %v4298, 1.442695
        %v4309 = vpow.pop %v4308
        %v4310 = vmul.f32 %v4299, 1.442695
        %v4311 = vpow.pop %v4310
        %v4312 = vmul.f32 %v4300, 1.442695
        %v4313 = vpow.pop %v4312
        %v4314 = vmul.f32 %v4301, 1.442695
        %v4315 = vpow.pop %v4314
        %v4316 = vmul.f32 %v4302, 1.442695
        %v4317 = vpow.pop %v4316
        %v4318 = vmul.f32 %v4303, 1.442695
        %v4319 = vpow.pop %v4318
        %v4320 = vadd.f32 %v4305, 1.0
        %v4321 = vadd.f32 %v4307, 1.0
        %v4322 = vadd.f32 %v4309, 1.0
        %v4323 = vadd.f32 %v4311, 1.0
        %v4324 = vadd.f32 %v4313, 1.0
        %v4325 = vadd.f32 %v4315, 1.0
        %v4326 = vadd.f32 %v4317, 1.0
        %v4327 = vadd.f32 %v4319, 1.0
        %v4328 = vrcp.pop %v4320
        %v4329 = vmul.f32 %v4320, %v4328
        %v4330 = vsub.f32 1.0, %v4329
        %v4331 = vmul.f32 %v4328, %v4330
        %v4332 = vadd.f32 %v4328, %v4331
        %vm4333 = vweird.f32 %v4320
        %vm4334 = vweird.f32 %v4328
        %vm4335 = vmor %vm4333, %vm4334
        %v4336 = vsel %vm4335, %v4328, %v4332
        %v4337 = vand.u32 2147483647, %v4320
        %vm4338 = vcmp.eq.f32.partialorder %v4337, 8.507059e+37
        %v4339 = vand.u32 %v4320, 2147483648
        %v4340 = vor.u32 1.1754944e-38, %v4339
        %v4341 = vsel %vm4338, %v4340, %v4336
        %v4342 = vmul.f32 1.0, %v4341
        %v4343 = vrcp.pop %v4321
        %v4344 = vmul.f32 %v4321, %v4343
        %v4345 = vsub.f32 1.0, %v4344
        %v4346 = vmul.f32 %v4343, %v4345
        %v4347 = vadd.f32 %v4343, %v4346
        %vm4348 = vweird.f32 %v4321
        %vm4349 = vweird.f32 %v4343
        %vm4350 = vmor %vm4348, %vm4349
        %v4351 = vsel %vm4350, %v4343, %v4347
        %v4352 = vand.u32 2147483647, %v4321
        %vm4353 = vcmp.eq.f32.partialorder %v4352, 8.507059e+37
        %v4354 = vand.u32 %v4321, 2147483648
        %v4355 = vor.u32 1.1754944e-38, %v4354
        %v4356 = vsel %vm4353, %v4355, %v4351
        %v4357 = vmul.f32 1.0, %v4356
        %v4358 = vrcp.pop %v4322
        %v4359 = vmul.f32 %v4322, %v4358
        %v4360 = vsub.f32 1.0, %v4359
        %v4361 = vmul.f32 %v4358, %v4360
        %v4362 = vadd.f32 %v4358, %v4361
        %vm4363 = vweird.f32 %v4322
        %vm4364 = vweird.f32 %v4358
        %vm4365 = vmor %vm4363, %vm4364
        %v4366 = vsel %vm4365, %v4358, %v4362
        %v4367 = vand.u32 2147483647, %v4322
        %vm4368 = vcmp.eq.f32.partialorder %v4367, 8.507059e+37
        %v4369 = vand.u32 %v4322, 2147483648
        %v4370 = vor.u32 1.1754944e-38, %v4369
        %v4371 = vsel %vm4368, %v4370, %v4366
        %v4372 = vmul.f32 1.0, %v4371
        %v4373 = vrcp.pop %v4323
        %v4374 = vmul.f32 %v4323, %v4373
        %v4375 = vsub.f32 1.0, %v4374
        %v4376 = vmul.f32 %v4373, %v4375
        %v4377 = vadd.f32 %v4373, %v4376
        %vm4378 = vweird.f32 %v4323
        %vm4379 = vweird.f32 %v4373
        %vm4380 = vmor %vm4378, %vm4379
        %v4381 = vsel %vm4380, %v4373, %v4377
        %v4382 = vand.u32 2147483647, %v4323
        %vm4383 = vcmp.eq.f32.partialorder %v4382, 8.507059e+37
        %v4384 = vand.u32 %v4323, 2147483648
        %v4385 = vor.u32 1.1754944e-38, %v4384
        %v4386 = vsel %vm4383, %v4385, %v4381
        %v4387 = vmul.f32 1.0, %v4386
        %v4388 = vrcp.pop %v4324
        %v4389 = vmul.f32 %v4324, %v4388
        %v4390 = vsub.f32 1.0, %v4389
        %v4391 = vmul.f32 %v4388, %v4390
        %v4392 = vadd.f32 %v4388, %v4391
        %vm4393 = vweird.f32 %v4324
        %vm4394 = vweird.f32 %v4388
        %vm4395 = vmor %vm4393, %vm4394
        %v4396 = vsel %vm4395, %v4388, %v4392
        %v4397 = vand.u32 2147483647, %v4324
        %vm4398 = vcmp.eq.f32.partialorder %v4397, 8.507059e+37
        %v4399 = vand.u32 %v4324, 2147483648
        %v4400 = vor.u32 1.1754944e-38, %v4399
        %v4401 = vsel %vm4398, %v4400, %v4396
        %v4402 = vmul.f32 1.0, %v4401
        %v4403 = vrcp.pop %v4325
        %v4404 = vmul.f32 %v4325, %v4403
        %v4405 = vsub.f32 1.0, %v4404
        %v4406 = vmul.f32 %v4403, %v4405
        %v4407 = vadd.f32 %v4403, %v4406
        %vm4408 = vweird.f32 %v4325
        %vm4409 = vweird.f32 %v4403
        %vm4410 = vmor %vm4408, %vm4409
        %v4411 = vsel %vm4410, %v4403, %v4407
        %v4412 = vand.u32 2147483647, %v4325
        %vm4413 = vcmp.eq.f32.partialorder %v4412, 8.507059e+37
        %v4414 = vand.u32 %v4325, 2147483648
        %v4415 = vor.u32 1.1754944e-38, %v4414
        %v4416 = vsel %vm4413, %v4415, %v4411
        %v4417 = vmul.f32 1.0, %v4416
        %v4418 = vrcp.pop %v4326
        %v4419 = vmul.f32 %v4326, %v4418
        %v4420 = vsub.f32 1.0, %v4419
        %v4421 = vmul.f32 %v4418, %v4420
        %v4422 = vadd.f32 %v4418, %v4421
        %vm4423 = vweird.f32 %v4326
        %vm4424 = vweird.f32 %v4418
        %vm4425 = vmor %vm4423, %vm4424
        %v4426 = vsel %vm4425, %v4418, %v4422
        %v4427 = vand.u32 2147483647, %v4326
        %vm4428 = vcmp.eq.f32.partialorder %v4427, 8.507059e+37
        %v4429 = vand.u32 %v4326, 2147483648
        %v4430 = vor.u32 1.1754944e-38, %v4429
        %v4431 = vsel %vm4428, %v4430, %v4426
        %v4432 = vmul.f32 1.0, %v4431
        %v4433 = vrcp.pop %v4327
        %v4434 = vmul.f32 %v4327, %v4433
        %v4435 = vsub.f32 1.0, %v4434
        %v4436 = vmul.f32 %v4433, %v4435
        %v4437 = vadd.f32 %v4433, %v4436
        %vm4438 = vweird.f32 %v4327
        %vm4439 = vweird.f32 %v4433
        %vm4440 = vmor %vm4438, %vm4439
        %v4441 = vsel %vm4440, %v4433, %v4437
        %v4442 = vand.u32 2147483647, %v4327
        %vm4443 = vcmp.eq.f32.partialorder %v4442, 8.507059e+37
        %v4444 = vand.u32 %v4327, 2147483648
        %v4445 = vor.u32 1.1754944e-38, %v4444
        %v4446 = vsel %vm4443, %v4445, %v4441
        %v4447 = vmul.f32 1.0, %v4446
        %v4456 = vrot.slane %v4357, 7
        %v4457 = vrot.slane %v4372, 6
        %v4458 = vrot.slane %v4387, 5
        %v4459 = vrot.slane %v4402, 4
        %v4460 = vrot.slane %v4417, 3
        %v4461 = vrot.slane %v4432, 2
        %v4462 = vrot.slane %v4447, 1
        %vm4463 = vcmask 1040384
        %v4464 = vsel %vm4463, %v4342, %v4456
        %vm4465 = vcmask 1042434
        %v4466 = vsel %vm4465, %v4457, %v4458
        %vm4467 = vcmask 1041408
        %v4468 = vsel %vm4467, %v4464, %v4466
        %vm4469 = vcmask 1044484
        %v4470 = vsel %vm4469, %v4459, %v4460
        %vm4471 = vcmask 1046534
        %v4472 = vsel %vm4471, %v4461, %v4462
        %vm4473 = vcmask 1045508
        %v4474 = vsel %vm4473, %v4470, %v4472
        %vm4475 = vcmask 1043456
        %v4476 = vsel %vm4475, %v4468, %v4474
        %4478 = vst [vmem:[%s430] sm:$0xff] %v4476
        %s4479 = sand.u32 %s286, 1
        %s4480 = scalar_lea.sflag [#allocation4], %s4479
        %s4481 = sand.u32 %s286, 1
        %s4482 = smul.addr %s4481, 8
        %s4483 = scalar_lea.vmem [#allocation3], %s4482
        // Predicated region
        $region65: #{tpu_custom_call.1} parent=63 // pred_check
          %p4484 = pneg %p296
        $region66: #{tpu_custom_call.1} parent=63 // pred_check_branch
          %4486 = sbr.rel (%p4484) target = $region68
        $region67: #{tpu_custom_call.1} parent=63 // pred_region
          %s4487 = smul.u32 8, %s27
          %4489 = vsyncadd %s4480, 0
          %s4490 = scalar_lea.hbm %s11, %s4487
          %s4492 = sshll.u32 %s4483, 4
          %s4493 = int_to_ptr.vmem [resolvable:$true] %s4492
          %s4494 = sshll.u32 %s4490, 4
          %s4495 = int_to_ptr.hbm [resolvable:$true] %s4494
          %4497 = dma.vmem_to_hbm [thread:$0]  %s4493, 128, %s4495, %s4480
        $region68: #{tpu_custom_call.1} parent=63 // pred_fallthru
          _
      $region64: #{tpu_custom_call.1} parent=5 // pred_fallthru
        _
      %p4498 = scmp.le.s32.totalorder 2, %s22
      // Predicated region
      $region69: #{tpu_custom_call.1} parent=5 // pred_check
        %p4499 = pneg %p4498
      $region70: #{tpu_custom_call.1} parent=5 // pred_check_branch
        %4501 = sbr.rel (%p4499) target = $region72
      $region71: #{tpu_custom_call.1} parent=5 // pred_region
        %s4502 = ssub.s32 %s22, 2
        // Predicated region
        $region73: #{tpu_custom_call.1} parent=71 // pred_check
          %p4503 = pneg %p302
        $region74: #{tpu_custom_call.1} parent=71 // pred_check_branch
          %4505 = sbr.rel (%p4503) target = $region76
        $region75: #{tpu_custom_call.1} parent=71 // pred_region
          %s4506 = sand.u32 %s287, 1
          %s4507 = scalar_lea.sflag [#allocation4], %s4506
          %s4508 = sand.u32 %s287, 1
          %s4509 = smul.addr %s4508, 8
          %s4510 = scalar_lea.vmem [#allocation3], %s4509
          %4512 = dma.done %s4507, 128
        $region76: #{tpu_custom_call.1} parent=71 // pred_fallthru
          _
      $region72: #{tpu_custom_call.1} parent=5 // pred_fallthru
        _
    $region6: #{tpu_custom_call.1} parent=1 // loop_footer
      %s26 = sadd.s32 1, %s22
    $region7: #{tpu_custom_call.1} parent=1 // loop_footer_branch
      %21 = sbr.rel target = $region3
    $region8: #{tpu_custom_call.1} parent=1 // loop_exit
      _
    %4513 = vsyncpa [#allocation4], 1
    %s4514 = scalar_lea.sflag [#allocation4], 1
    %4515 = vsyncpa %s4514, 1

</llo_original>
